<compile_context>
chip_gen: v5e
topology: v5e:2x2
jax: 0.10.0
libtpu: 0.0.40
codegen_flags: <defaults>
</compile_context>

<pallas_src>
import jax
import jax.numpy as jnp
from jax.experimental import pallas as pl
from jax.experimental.pallas import tpu as pltpu

EPS = 1e-5                       # nn.BatchNorm2d default eps
LANE = 128                       # TPU lane width -> lane-dense channel padding
_VMEM_LIMIT = 32 * 1024 * 1024   # explicit scoped-VMEM limit (safe on v5e/v6e/v7x)


def _pad_to(n, m):
    return ((n + m - 1) // m) * m


def _pick_row_tile(m):
    """Largest row tile <= 512 that divides M and leaves >= 2 grid steps."""
    for t in (512, 256, 128, 64, 32, 16, 8):
        if m % t == 0 and m // t >= 2:
            return t
    return m


# ---------------------------------------------------------------------------
# Kernels
# ---------------------------------------------------------------------------
def _conv1x1_stats_kernel(x_ref, w_ref, y_ref, st_ref):
    """y = x @ w (bf16 MXU, f32 acc); emit per-tile (sum, sum_sq) for BN."""
    y = jnp.dot(x_ref[...].astype(jnp.bfloat16), w_ref[...],
                preferred_element_type=jnp.float32)
    y_ref[...] = y
    st_ref[0] = jnp.concatenate(
        [jnp.sum(y, axis=0, keepdims=True),
         jnp.sum(y * y, axis=0, keepdims=True)], axis=0)


def _bn_relu_conv1x1_stats_kernel(y_ref, s_ref, b_ref, w_ref, o_ref, st_ref):
    """o = relu(y*scale + bias) @ w; emit per-tile (sum, sum_sq) of o."""
    a = jnp.maximum(y_ref[...] * s_ref[...] + b_ref[...], 0.0)   # single FMA + ReLU
    o = jnp.dot(a.astype(jnp.bfloat16), w_ref[...],
                preferred_element_type=jnp.float32)
    o_ref[...] = o
    st_ref[0] = jnp.concatenate(
        [jnp.sum(o, axis=0, keepdims=True),
         jnp.sum(o * o, axis=0, keepdims=True)], axis=0)


def _bn_relu_conv3x3_stats_kernel(y1_ref, s_ref, b_ref, w_ref,
                                  y2_ref, st_ref, o1_scr, acc_scr):
    """Fused bn1+relu -> 3x3 conv (pad=1) -> per-image (sum, sum_sq) for bn2.

    y1_ref: (1, H, W, Cp) raw (unpadded) conv1 output.  The 1-pixel zero halo
    is built entirely in VMEM: o1_scr is zeroed and the bn1+relu interior is
    stored into its [1:H+1, 1:W+1] sub-window.  The 3x3 conv is then 9
    shifted-window matmuls accumulated in a VMEM scratch -- no im2col, no
    padded activations in HBM.
    """
    _, hh, ww, cp = y1_ref.shape
    co = y2_ref.shape[3]

    # Zero halo + bn1 affine (scale/bias precomputed from global stats) + ReLU.
    # Zeroing every step keeps the kernel correct under megacore grid sharding
    # (each core owns its own scratch instance); it is a cheap VPU store.
    o1_scr[...] = jnp.zeros_like(o1_scr)
    o1_scr[pl.ds(1, hh), pl.ds(1, ww), :] = jnp.maximum(
        y1_ref[0] * s_ref[...] + b_ref[...], 0.0)

    acc_scr[...] = jnp.zeros_like(acc_scr)
    # 9 shifted windows; W is a multiple of 8 so the (H,W,C)->(H*W,C) collapse
    # is layout-preserving (no expensive relayout).
    for dy in range(3):
        for dx in range(3):
            patch = o1_scr[pl.ds(dy, hh), pl.ds(dx, ww), :].reshape(hh * ww, cp)
            acc_scr[...] += jnp.dot(patch.astype(jnp.bfloat16),
                                    w_ref[dy * 3 + dx],
                                    preferred_element_type=jnp.float32)

    y2 = acc_scr[...]
    y2_ref[0] = y2.reshape(hh, ww, co)
    st_ref[0] = jnp.concatenate(
        [jnp.sum(y2, axis=0, keepdims=True),
         jnp.sum(y2 * y2, axis=0, keepdims=True)], axis=0)


def _bn_add_relu_kernel(y_ref, s_ref, b_ref, res_ref, o_ref):
    """out = relu(y*scale + bias + residual)."""
    o_ref[...] = jnp.maximum(
        y_ref[...] * s_ref[...] + b_ref[...] + res_ref[...], 0.0)


# ---------------------------------------------------------------------------
# pallas_call wrappers
# ---------------------------------------------------------------------------
def _conv1x1_stats_pass(x2d, w, tm):
    m, kp = x2d.shape
    co = w.shape[1]
    nt = m // tm
    return pl.pallas_call(
        _conv1x1_stats_kernel,
        out_shape=(jax.ShapeDtypeStruct((m, co), jnp.float32),
                   jax.ShapeDtypeStruct((nt, 2, co), jnp.float32)),
        grid=(nt,),
        in_specs=[pl.BlockSpec((tm, kp), lambda i: (i, 0)),
                  pl.BlockSpec((kp, co), lambda i: (0, 0))],
        out_specs=[pl.BlockSpec((tm, co), lambda i: (i, 0)),
                   pl.BlockSpec((1, 2, co), lambda i: (i, 0, 0))],
        compiler_params=pltpu.CompilerParams(
            dimension_semantics=("parallel",),
            vmem_limit_bytes=_VMEM_LIMIT),
        cost_estimate=pl.CostEstimate(
            flops=2 * m * kp * co, transcendentals=0,
            bytes_accessed=m * kp * 4 + kp * co * 2 + m * co * 4),
    )(x2d, w)


def _bn_relu_conv1x1_stats_pass(y, scale, bias, w, tm):
    m, kp = y.shape
    co = w.shape[1]
    nt = m // tm
    return pl.pallas_call(
        _bn_relu_conv1x1_stats_kernel,
        out_shape=(jax.ShapeDtypeStruct((m, co), jnp.float32),
                   jax.ShapeDtypeStruct((nt, 2, co), jnp.float32)),
        grid=(nt,),
        in_specs=[pl.BlockSpec((tm, kp), lambda i: (i, 0)),
                  pl.BlockSpec((1, kp), lambda i: (0, 0)),
                  pl.BlockSpec((1, kp), lambda i: (0, 0)),
                  pl.BlockSpec((kp, co), lambda i: (0, 0))],
        out_specs=[pl.BlockSpec((tm, co), lambda i: (i, 0)),
                   pl.BlockSpec((1, 2, co), lambda i: (i, 0, 0))],
        compiler_params=pltpu.CompilerParams(
            dimension_semantics=("parallel",),
            vmem_limit_bytes=_VMEM_LIMIT),
        cost_estimate=pl.CostEstimate(
            flops=2 * m * kp * co + 3 * m * kp, transcendentals=0,
            bytes_accessed=m * kp * 4 + kp * co * 2 + m * co * 4),
    )(y, scale, bias, w)


def _bn_relu_conv3x3_stats_pass(y1, scale, bias, w2):
    n, hh, ww, cp = y1.shape
    co = w2.shape[2]
    assert ww % 8 == 0, "W must be a multiple of 8 for layout-preserving reshape"
    return pl.pallas_call(
        _bn_relu_conv3x3_stats_kernel,
        out_shape=(jax.ShapeDtypeStruct((n, hh, ww, co), jnp.float32),
                   jax.ShapeDtypeStruct((n, 2, co), jnp.float32)),
        grid=(n,),
        in_specs=[pl.BlockSpec((1, hh, ww, cp), lambda i: (i, 0, 0, 0)),
                  pl.BlockSpec((1, cp), lambda i: (0, 0)),
                  pl.BlockSpec((1, cp), lambda i: (0, 0)),
                  pl.BlockSpec((9, cp, co), lambda i: (0, 0, 0))],
        out_specs=[pl.BlockSpec((1, hh, ww, co), lambda i: (i, 0, 0, 0)),
                   pl.BlockSpec((1, 2, co), lambda i: (i, 0, 0))],
        scratch_shapes=[pltpu.VMEM((hh + 2, ww + 2, cp), jnp.float32),
                        pltpu.VMEM((hh * ww, co), jnp.float32)],
        compiler_params=pltpu.CompilerParams(
            dimension_semantics=("parallel",),
            vmem_limit_bytes=_VMEM_LIMIT),
        cost_estimate=pl.CostEstimate(
            flops=2 * n * hh * ww * 9 * cp * co, transcendentals=0,
            bytes_accessed=(n * hh * ww * cp * 4 + 9 * cp * co * 2
                            + n * hh * ww * co * 4 + n * 2 * co * 4)),
    )(y1, scale, bias, w2)


def _bn_add_relu_pass(y, scale, bias, res, tm):
    m, cp = y.shape
    nt = m // tm
    return pl.pallas_call(
        _bn_add_relu_kernel,
        out_shape=jax.ShapeDtypeStruct((m, cp), jnp.float32),
        grid=(nt,),
        in_specs=[pl.BlockSpec((tm, cp), lambda i: (i, 0)),
                  pl.BlockSpec((1, cp), lambda i: (0, 0)),
                  pl.BlockSpec((1, cp), lambda i: (0, 0)),
                  pl.BlockSpec((tm, cp), lambda i: (i, 0))],
        out_specs=pl.BlockSpec((tm, cp), lambda i: (i, 0)),
        compiler_params=pltpu.CompilerParams(
            dimension_semantics=("parallel",),
            vmem_limit_bytes=_VMEM_LIMIT),
        cost_estimate=pl.CostEstimate(
            flops=3 * m * cp, transcendentals=0,
            bytes_accessed=3 * m * cp * 4),
    )(y, scale, bias, res)


# ---------------------------------------------------------------------------
# BatchNorm finalize (tiny O(C) glue between Pallas passes)
# ---------------------------------------------------------------------------
def _bn_scale_bias(stats, count, gamma, beta):
    """stats: (tiles, 2, C) per-tile [sum, sum_sq]. Returns folded (scale, bias)."""
    s = jnp.sum(stats, axis=0)                            # (2, C)
    mean = s[0:1] / count                                 # (1, C)
    var = jnp.maximum(s[1:2] / count - mean * mean, 0.0)  # biased var, clamped
    scale = gamma * jax.lax.rsqrt(var + EPS)
    bias = beta - mean * scale
    return scale, bias


def _pad_vec(v, c):
    return jnp.pad(v, ((0, 0), (0, c - v.shape[1])))


# ---------------------------------------------------------------------------
# Bottleneck forward
# ---------------------------------------------------------------------------
def bottleneck_forward(x_nchw, p):
    """x_nchw: (N, inplanes, H, W) float32, inplanes == 4 * planes."""
    n, cin, hh, ww = x_nchw.shape
    cip, cpp = p["w1"].shape            # padded inplanes, padded planes
    cop = p["w3"].shape[1]              # padded 4*planes
    assert cip == cop                   # identity skip requires inplanes == 4*planes
    m = n * hh * ww
    tm = _pick_row_tile(m)

    x = jnp.transpose(x_nchw, (0, 2, 3, 1)).reshape(m, cin)   # NCHW -> NHWC -> 2D
    x2d = jnp.pad(x, ((0, 0), (0, cip - cin)))                 # lane-dense f32

    g1 = _pad_vec(p["g1"], cpp); b1 = _pad_vec(p["b1"], cpp)
    g2 = _pad_vec(p["g2"], cpp); b2 = _pad_vec(p["b2"], cpp)
    g3 = _pad_vec(p["g3"], cop); b3 = _pad_vec(p["b3"], cop)

    # conv1 (1x1) + bn1 partial stats
    y1, st1 = _conv1x1_stats_pass(x2d, p["w1"], tm)
    s1, o1b = _bn_scale_bias(st1, m, g1, b1)

    # bn1+relu fused into conv2 (3x3, pad=1) + bn2 partial stats.
    # The zero halo is built inside the kernel's VMEM scratch: the raw conv1
    # output goes through HBM exactly once, unpadded.
    y2, st2 = _bn_relu_conv3x3_stats_pass(
        y1.reshape(n, hh, ww, cpp), s1, o1b, p["w2"])
    s2, o2b = _bn_scale_bias(st2, m, g2, b2)

    # bn2+relu fused into conv3 (1x1, expansion=4) + bn3 partial stats
    y3, st3 = _bn_relu_conv1x1_stats_pass(y2.reshape(m, cpp), s2, o2b, p["w3"], tm)
    s3, o3b = _bn_scale_bias(st3, m, g3, b3)

    # bn3 + identity skip + relu
    out = _bn_add_relu_pass(y3, s3, o3b, x2d, tm)

    cout = p["g3"].shape[1]                                # real 4*planes
    out = out[:, :cout].reshape(n, hh, ww, cout)
    return jnp.transpose(out, (0, 3, 1, 2))                # NHWC -> NCHW


# ---------------------------------------------------------------------------
# Parameters
# ---------------------------------------------------------------------------
def init_params(key, inplanes, planes):
    """Synthetic parameters in matmul layout.
    w2[dy, dx, cin, cout] corresponds to PyTorch conv2.weight[cout, cin, dy, dx]."""
    ks = jax.random.split(key, 9)
    exp = 4 * planes
    return {
        "w1": jax.random.normal(ks[0], (inplanes, planes), jnp.float32) * 0.1,
        "w2": jax.random.normal(ks[1], (3, 3, planes, planes), jnp.float32) * 0.1,
        "w3": jax.random.normal(ks[2], (planes, exp), jnp.float32) * 0.1,
        "g1": 1.0 + 0.1 * jax.random.normal(ks[3], (1, planes), jnp.float32),
        "b1": 0.1 * jax.random.normal(ks[4], (1, planes), jnp.float32),
        "g2": 1.0 + 0.1 * jax.random.normal(ks[5], (1, planes), jnp.float32),
        "b2": 0.1 * jax.random.normal(ks[6], (1, planes), jnp.float32),
        "g3": 1.0 + 0.1 * jax.random.normal(ks[7], (1, exp), jnp.float32),
        "b3": 0.1 * jax.random.normal(ks[8], (1, exp), jnp.float32),
    }


def pack_params(raw, inplanes, planes):
    """Pad channel dims to multiples of 128 and store conv weights as bf16."""
    exp = 4 * planes
    cip, cpp, cop = _pad_to(inplanes, LANE), _pad_to(planes, LANE), _pad_to(exp, LANE)
    w1 = jnp.zeros((cip, cpp), jnp.bfloat16).at[:inplanes, :planes].set(
        raw["w1"].astype(jnp.bfloat16))
    w2 = jnp.zeros((9, cpp, cpp), jnp.bfloat16).at[:, :planes, :planes].set(
        raw["w2"].reshape(9, planes, planes).astype(jnp.bfloat16))
    w3 = jnp.zeros((cpp, cop), jnp.bfloat16).at[:planes, :exp].set(
        raw["w3"].astype(jnp.bfloat16))
    return {"w1": w1, "w2": w2, "w3": w3,
            "g1": raw["g1"], "b1": raw["b1"],
            "g2": raw["g2"], "b2": raw["b2"],
            "g3": raw["g3"], "b3": raw["b3"]}


# ---------------------------------------------------------------------------
# Pure-JAX reference (mirrors the kernel's bf16 rounding of matmul operands)
# ---------------------------------------------------------------------------
def reference_forward(x_nchw, raw):
    def bf(v):
        return v.astype(jnp.bfloat16).astype(jnp.float32)

    def bn(y, g, b):
        mean = jnp.mean(y, axis=(0, 1, 2), keepdims=True)
        var = jnp.mean(jnp.square(y - mean), axis=(0, 1, 2), keepdims=True)
        return (y - mean) * jax.lax.rsqrt(var + EPS) * g + b

    n, _, hh, ww = x_nchw.shape
    planes = raw["w1"].shape[1]
    x = jnp.transpose(x_nchw, (0, 2, 3, 1))

    y1 = jnp.einsum("nhwc,cp->nhwp", bf(x), bf(raw["w1"]))
    o1 = jnp.maximum(bn(y1, raw["g1"][0], raw["b1"][0]), 0.0)
    o1p = jnp.pad(o1, ((0, 0), (1, 1), (1, 1), (0, 0)))
    y2 = jnp.zeros((n, hh, ww, planes), jnp.float32)
    for dy in range(3):
        for dx in range(3):
            y2 = y2 + jnp.einsum("nhwc,cp->nhwp",
                                 bf(o1p[:, dy:dy + hh, dx:dx + ww, :]),
                                 bf(raw["w2"][dy, dx]))
    o2 = jnp.maximum(bn(y2, raw["g2"][0], raw["b2"][0]), 0.0)
    y3 = jnp.einsum("nhwc,cp->nhwp", bf(o2), bf(raw["w3"]))
    out = jnp.maximum(bn(y3, raw["g3"][0], raw["b3"][0]) + x, 0.0)
    return jnp.transpose(out, (0, 3, 1, 2))


if __name__ == "__main__":
    key = jax.random.PRNGKey(0)
    k_x, k_p = jax.random.split(key)

    planes = 4
    inplanes = 4 * planes          # identity skip requires inplanes == 4*planes
    N, H, W = 2, 16, 16

    x = jax.random.normal(k_x, (N, inplanes, H, W), jnp.float32)
    raw = init_params(k_p, inplanes, planes)
    packed = pack_params(raw, inplanes, planes)

    out = jax.block_until_ready(jax.jit(bottleneck_forward)(x, packed))

    assert out.shape == (N, 4 * planes, H, W)
    assert bool(jnp.all(out >= 0.0))                 # final ReLU
    assert bool(jnp.all(jnp.isfinite(out)))

    ref = jax.block_until_ready(jax.jit(reference_forward)(x, raw))
    max_err = float(jnp.max(jnp.abs(out - ref)))
    assert max_err < 2e-2, f"max abs err vs reference: {max_err}"

    print("KERNEL_OK")
</pallas_src>

<mosaic_0001>
module attributes {stable_mosaic.version = 11 : i64} {
  func.func @_conv1x1_stats_kernel(%arg0: i32, %arg1: memref<256x128xf32, #tpu.memory_space<vmem>>, %arg2: memref<128x128xbf16, #tpu.memory_space<vmem>>, %arg3: memref<256x128xf32, #tpu.memory_space<vmem>>, %arg4: memref<1x2x128xf32, #tpu.memory_space<vmem>>) attributes {dimension_semantics = [#tpu.dimension_semantics<parallel>], iteration_bounds = array<i64: 2>, scalar_prefetch = 0 : i64, scratch_operands = 0 : i64, tpu.core_type = #tpu.core_type<tc>, window_params = [{transform_indices = @transform_0, window_bounds = array<i64: 256, 128>}, {pipeline_mode = #tpu.pipeline_mode<synchronous>, transform_indices = @transform_1, window_bounds = array<i64: 128, 128>}, {transform_indices = @transform_2, window_bounds = array<i64: 256, 128>}, {transform_indices = @transform_3, window_bounds = array<i64: 1, 2, 128>}]} {
    %c0 = arith.constant 0 : index
    %c0_0 = arith.constant 0 : index
    %0 = vector.load %arg1[%c0, %c0_0] : memref<256x128xf32, #tpu.memory_space<vmem>>, vector<256x128xf32>
    %1 = arith.truncf %0 : vector<256x128xf32> to vector<256x128xbf16>
    %c0_1 = arith.constant 0 : index
    %c0_2 = arith.constant 0 : index
    %2 = vector.load %arg2[%c0_1, %c0_2] : memref<128x128xbf16, #tpu.memory_space<vmem>>, vector<128x128xbf16>
    %cst = arith.constant dense<0.000000e+00> : vector<256x128xf32>
    %3 = tpu.matmul %1, %2, %cst {dimension_numbers = #tpu.dot_dimension_numbers<[1], [0], [0], [1], [0, 0, 1, 1], [], []>} : vector<256x128xbf16>, vector<128x128xbf16>, vector<256x128xf32> -> vector<256x128xf32>
    %c0_3 = arith.constant 0 : index
    %c0_4 = arith.constant 0 : index
    %4 = vector.load %arg3[%c0_3, %c0_4] : memref<256x128xf32, #tpu.memory_space<vmem>>, vector<256x128xf32>
    tpu.vector_store %arg3[%c0_3, %c0_4], %3 {strides = array<i32>} : memref<256x128xf32, #tpu.memory_space<vmem>>, vector<256x128xf32>,
    %cst_5 = arith.constant dense<0.000000e+00> : vector<128xf32>
    %5 = vector.multi_reduction <add>, %3, %cst_5 [0] : vector<256x128xf32> to vector<128xf32>
    %6 = vector.shape_cast %5 : vector<128xf32> to vector<1x128xf32>
    %7 = arith.mulf %3, %3 : vector<256x128xf32>
    %cst_6 = arith.constant dense<0.000000e+00> : vector<128xf32>
    %8 = vector.multi_reduction <add>, %7, %cst_6 [0] : vector<256x128xf32> to vector<128xf32>
    %9 = vector.shape_cast %8 : vector<128xf32> to vector<1x128xf32>
    %10 = tpu.concatenate %6, %9 in 0 : vector<1x128xf32>, vector<1x128xf32> -> vector<2x128xf32>
    %c0_7 = arith.constant 0 : index
    %c0_8 = arith.constant 0 : index
    %c0_9 = arith.constant 0 : index
    %11 = vector.load %arg4[%c0_7, %c0_8, %c0_9] : memref<1x2x128xf32, #tpu.memory_space<vmem>>, vector<1x2x128xf32>
    %12 = vector.shape_cast %11 : vector<1x2x128xf32> to vector<2x128xf32>
    %13 = vector.shape_cast %10 : vector<2x128xf32> to vector<1x2x128xf32>
    tpu.vector_store %arg4[%c0_7, %c0_8, %c0_9], %13 {strides = array<i32>} : memref<1x2x128xf32, #tpu.memory_space<vmem>>, vector<1x2x128xf32>,
    return
  }
  func.func @transform_0(%arg0: i32) -> (i32, i32) {
    %c0_i32 = arith.constant 0 : i32
    %c0_i32_0 = arith.constant 0 : i32
    return %arg0, %c0_i32 : i32, i32
  }
  func.func @transform_1(%arg0: i32) -> (i32, i32) {
    %c0_i32 = arith.constant 0 : i32
    %c0_i32_0 = arith.constant 0 : i32
    %c0_i32_1 = arith.constant 0 : i32
    return %c0_i32, %c0_i32_0 : i32, i32
  }
  func.func @transform_2(%arg0: i32) -> (i32, i32) {
    %c0_i32 = arith.constant 0 : i32
    %c0_i32_0 = arith.constant 0 : i32
    return %arg0, %c0_i32 : i32, i32
  }
  func.func @transform_3(%arg0: i32) -> (i32, i32, i32) {
    %c0_i32 = arith.constant 0 : i32
    %c0_i32_0 = arith.constant 0 : i32
    %c0_i32_1 = arith.constant 0 : i32
    return %arg0, %c0_i32, %c0_i32_0 : i32, i32, i32
  }
}

module attributes {stable_mosaic.version = 11 : i64} {
  func.func @_bn_relu_conv1x1_stats_kernel(%arg0: i32, %arg1: memref<256x128xf32, #tpu.memory_space<vmem>>, %arg2: memref<1x128xf32, #tpu.memory_space<vmem>>, %arg3: memref<1x128xf32, #tpu.memory_space<vmem>>, %arg4: memref<128x128xbf16, #tpu.memory_space<vmem>>, %arg5: memref<256x128xf32, #tpu.memory_space<vmem>>, %arg6: memref<1x2x128xf32, #tpu.memory_space<vmem>>) attributes {dimension_semantics = [#tpu.dimension_semantics<parallel>], iteration_bounds = array<i64: 2>, scalar_prefetch = 0 : i64, scratch_operands = 0 : i64, tpu.core_type = #tpu.core_type<tc>, window_params = [{transform_indices = @transform_0, window_bounds = array<i64: 256, 128>}, {pipeline_mode = #tpu.pipeline_mode<synchronous>, transform_indices = @transform_1, window_bounds = array<i64: 1, 128>}, {pipeline_mode = #tpu.pipeline_mode<synchronous>, transform_indices = @transform_2, window_bounds = array<i64: 1, 128>}, {pipeline_mode = #tpu.pipeline_mode<synchronous>, transform_indices = @transform_3, window_bounds = array<i64: 128, 128>}, {transform_indices = @transform_4, window_bounds = array<i64: 256, 128>}, {transform_indices = @transform_5, window_bounds = array<i64: 1, 2, 128>}]} {
    %c0 = arith.constant 0 : index
    %c0_0 = arith.constant 0 : index
    %0 = vector.load %arg1[%c0, %c0_0] : memref<256x128xf32, #tpu.memory_space<vmem>>, vector<256x128xf32>
    %c0_1 = arith.constant 0 : index
    %c0_2 = arith.constant 0 : index
    %1 = vector.load %arg2[%c0_1, %c0_2] : memref<1x128xf32, #tpu.memory_space<vmem>>, vector<1x128xf32>
    %2 = vector.broadcast %1 : vector<1x128xf32> to vector<256x128xf32>
    %3 = arith.mulf %0, %2 : vector<256x128xf32>
    %c0_3 = arith.constant 0 : index
    %c0_4 = arith.constant 0 : index
    %4 = vector.load %arg3[%c0_3, %c0_4] : memref<1x128xf32, #tpu.memory_space<vmem>>, vector<1x128xf32>
    %5 = vector.broadcast %4 : vector<1x128xf32> to vector<256x128xf32>
    %6 = arith.addf %3, %5 : vector<256x128xf32>
    %cst = arith.constant 0.000000e+00 : f32
    %7 = vector.broadcast %cst : f32 to vector<256x128xf32>
    %8 = arith.maximumf %6, %7 : vector<256x128xf32>
    %9 = arith.truncf %8 : vector<256x128xf32> to vector<256x128xbf16>
    %c0_5 = arith.constant 0 : index
    %c0_6 = arith.constant 0 : index
    %10 = vector.load %arg4[%c0_5, %c0_6] : memref<128x128xbf16, #tpu.memory_space<vmem>>, vector<128x128xbf16>
    %cst_7 = arith.constant dense<0.000000e+00> : vector<256x128xf32>
    %11 = tpu.matmul %9, %10, %cst_7 {dimension_numbers = #tpu.dot_dimension_numbers<[1], [0], [0], [1], [0, 0, 1, 1], [], []>} : vector<256x128xbf16>, vector<128x128xbf16>, vector<256x128xf32> -> vector<256x128xf32>
    %c0_8 = arith.constant 0 : index
    %c0_9 = arith.constant 0 : index
    %12 = vector.load %arg5[%c0_8, %c0_9] : memref<256x128xf32, #tpu.memory_space<vmem>>, vector<256x128xf32>
    tpu.vector_store %arg5[%c0_8, %c0_9], %11 {strides = array<i32>} : memref<256x128xf32, #tpu.memory_space<vmem>>, vector<256x128xf32>,
    %cst_10 = arith.constant dense<0.000000e+00> : vector<128xf32>
    %13 = vector.multi_reduction <add>, %11, %cst_10 [0] : vector<256x128xf32> to vector<128xf32>
    %14 = vector.shape_cast %13 : vector<128xf32> to vector<1x128xf32>
    %15 = arith.mulf %11, %11 : vector<256x128xf32>
    %cst_11 = arith.constant dense<0.000000e+00> : vector<128xf32>
    %16 = vector.multi_reduction <add>, %15, %cst_11 [0] : vector<256x128xf32> to vector<128xf32>
    %17 = vector.shape_cast %16 : vector<128xf32> to vector<1x128xf32>
    %18 = tpu.concatenate %14, %17 in 0 : vector<1x128xf32>, vector<1x128xf32> -> vector<2x128xf32>
    %c0_12 = arith.constant 0 : index
    %c0_13 = arith.constant 0 : index
    %c0_14 = arith.constant 0 : index
    %19 = vector.load %arg6[%c0_12, %c0_13, %c0_14] : memref<1x2x128xf32, #tpu.memory_space<vmem>>, vector<1x2x128xf32>
    %20 = vector.shape_cast %19 : vector<1x2x128xf32> to vector<2x128xf32>
    %21 = vector.shape_cast %18 : vector<2x128xf32> to vector<1x2x128xf32>
    tpu.vector_store %arg6[%c0_12, %c0_13, %c0_14], %21 {strides = array<i32>} : memref<1x2x128xf32, #tpu.memory_space<vmem>>, vector<1x2x128xf32>,
    return
  }
  func.func @transform_0(%arg0: i32) -> (i32, i32) {
    %c0_i32 = arith.constant 0 : i32
    %c0_i32_0 = arith.constant 0 : i32
    return %arg0, %c0_i32 : i32, i32
  }
  func.func @transform_1(%arg0: i32) -> (i32, i32) {
    %c0_i32 = arith.constant 0 : i32
    %c0_i32_0 = arith.constant 0 : i32
    %c0_i32_1 = arith.constant 0 : i32
    return %c0_i32, %c0_i32_0 : i32, i32
  }
  func.func @transform_2(%arg0: i32) -> (i32, i32) {
    %c0_i32 = arith.constant 0 : i32
    %c0_i32_0 = arith.constant 0 : i32
    %c0_i32_1 = arith.constant 0 : i32
    return %c0_i32, %c0_i32_0 : i32, i32
  }
  func.func @transform_3(%arg0: i32) -> (i32, i32) {
    %c0_i32 = arith.constant 0 : i32
    %c0_i32_0 = arith.constant 0 : i32
    %c0_i32_1 = arith.constant 0 : i32
    return %c0_i32, %c0_i32_0 : i32, i32
  }
  func.func @transform_4(%arg0: i32) -> (i32, i32) {
    %c0_i32 = arith.constant 0 : i32
    %c0_i32_0 = arith.constant 0 : i32
    return %arg0, %c0_i32 : i32, i32
  }
  func.func @transform_5(%arg0: i32) -> (i32, i32, i32) {
    %c0_i32 = arith.constant 0 : i32
    %c0_i32_0 = arith.constant 0 : i32
    %c0_i32_1 = arith.constant 0 : i32
    return %arg0, %c0_i32, %c0_i32_0 : i32, i32, i32
  }
}

module attributes {stable_mosaic.version = 11 : i64} {
  func.func @_bn_add_relu_kernel(%arg0: i32, %arg1: memref<256x128xf32, #tpu.memory_space<vmem>>, %arg2: memref<1x128xf32, #tpu.memory_space<vmem>>, %arg3: memref<1x128xf32, #tpu.memory_space<vmem>>, %arg4: memref<256x128xf32, #tpu.memory_space<vmem>>, %arg5: memref<256x128xf32, #tpu.memory_space<vmem>>) attributes {dimension_semantics = [#tpu.dimension_semantics<parallel>], iteration_bounds = array<i64: 2>, scalar_prefetch = 0 : i64, scratch_operands = 0 : i64, tpu.core_type = #tpu.core_type<tc>, window_params = [{transform_indices = @transform_0, window_bounds = array<i64: 256, 128>}, {pipeline_mode = #tpu.pipeline_mode<synchronous>, transform_indices = @transform_1, window_bounds = array<i64: 1, 128>}, {pipeline_mode = #tpu.pipeline_mode<synchronous>, transform_indices = @transform_2, window_bounds = array<i64: 1, 128>}, {transform_indices = @transform_3, window_bounds = array<i64: 256, 128>}, {transform_indices = @transform_4, window_bounds = array<i64: 256, 128>}]} {
    %c0 = arith.constant 0 : index
    %c0_0 = arith.constant 0 : index
    %0 = vector.load %arg1[%c0, %c0_0] : memref<256x128xf32, #tpu.memory_space<vmem>>, vector<256x128xf32>
    %c0_1 = arith.constant 0 : index
    %c0_2 = arith.constant 0 : index
    %1 = vector.load %arg2[%c0_1, %c0_2] : memref<1x128xf32, #tpu.memory_space<vmem>>, vector<1x128xf32>
    %2 = vector.broadcast %1 : vector<1x128xf32> to vector<256x128xf32>
    %3 = arith.mulf %0, %2 : vector<256x128xf32>
    %c0_3 = arith.constant 0 : index
    %c0_4 = arith.constant 0 : index
    %4 = vector.load %arg3[%c0_3, %c0_4] : memref<1x128xf32, #tpu.memory_space<vmem>>, vector<1x128xf32>
    %5 = vector.broadcast %4 : vector<1x128xf32> to vector<256x128xf32>
    %6 = arith.addf %3, %5 : vector<256x128xf32>
    %c0_5 = arith.constant 0 : index
    %c0_6 = arith.constant 0 : index
    %7 = vector.load %arg4[%c0_5, %c0_6] : memref<256x128xf32, #tpu.memory_space<vmem>>, vector<256x128xf32>
    %8 = arith.addf %6, %7 : vector<256x128xf32>
    %cst = arith.constant 0.000000e+00 : f32
    %9 = vector.broadcast %cst : f32 to vector<256x128xf32>
    %10 = arith.maximumf %8, %9 : vector<256x128xf32>
    %c0_7 = arith.constant 0 : index
    %c0_8 = arith.constant 0 : index
    %11 = vector.load %arg5[%c0_7, %c0_8] : memref<256x128xf32, #tpu.memory_space<vmem>>, vector<256x128xf32>
    tpu.vector_store %arg5[%c0_7, %c0_8], %10 {strides = array<i32>} : memref<256x128xf32, #tpu.memory_space<vmem>>, vector<256x128xf32>,
    return
  }
  func.func @transform_0(%arg0: i32) -> (i32, i32) {
    %c0_i32 = arith.constant 0 : i32
    %c0_i32_0 = arith.constant 0 : i32
    return %arg0, %c0_i32 : i32, i32
  }
  func.func @transform_1(%arg0: i32) -> (i32, i32) {
    %c0_i32 = arith.constant 0 : i32
    %c0_i32_0 = arith.constant 0 : i32
    %c0_i32_1 = arith.constant 0 : i32
    return %c0_i32, %c0_i32_0 : i32, i32
  }
  func.func @transform_2(%arg0: i32) -> (i32, i32) {
    %c0_i32 = arith.constant 0 : i32
    %c0_i32_0 = arith.constant 0 : i32
    %c0_i32_1 = arith.constant 0 : i32
    return %c0_i32, %c0_i32_0 : i32, i32
  }
  func.func @transform_3(%arg0: i32) -> (i32, i32) {
    %c0_i32 = arith.constant 0 : i32
    %c0_i32_0 = arith.constant 0 : i32
    return %arg0, %c0_i32 : i32, i32
  }
  func.func @transform_4(%arg0: i32) -> (i32, i32) {
    %c0_i32 = arith.constant 0 : i32
    %c0_i32_0 = arith.constant 0 : i32
    return %arg0, %c0_i32 : i32, i32
  }
}

module attributes {stable_mosaic.version = 11 : i64} {
  func.func @_bn_relu_conv3x3_stats_kernel(%arg0: i32, %arg1: memref<1x16x16x128xf32, #tpu.memory_space<vmem>>, %arg2: memref<1x128xf32, #tpu.memory_space<vmem>>, %arg3: memref<1x128xf32, #tpu.memory_space<vmem>>, %arg4: memref<9x128x128xbf16, #tpu.memory_space<vmem>>, %arg5: memref<1x16x16x128xf32, #tpu.memory_space<vmem>>, %arg6: memref<1x2x128xf32, #tpu.memory_space<vmem>>, %arg7: memref<18x18x128xf32, #tpu.memory_space<vmem>>, %arg8: memref<256x128xf32, #tpu.memory_space<vmem>>) attributes {dimension_semantics = [#tpu.dimension_semantics<parallel>], iteration_bounds = array<i64: 2>, scalar_prefetch = 0 : i64, scratch_operands = 2 : i64, tpu.core_type = #tpu.core_type<tc>, window_params = [{transform_indices = @transform_0, window_bounds = array<i64: 1, 16, 16, 128>}, {pipeline_mode = #tpu.pipeline_mode<synchronous>, transform_indices = @transform_1, window_bounds = array<i64: 1, 128>}, {pipeline_mode = #tpu.pipeline_mode<synchronous>, transform_indices = @transform_2, window_bounds = array<i64: 1, 128>}, {pipeline_mode = #tpu.pipeline_mode<synchronous>, transform_indices = @transform_3, window_bounds = array<i64: 9, 128, 128>}, {transform_indices = @transform_4, window_bounds = array<i64: 1, 16, 16, 128>}, {transform_indices = @transform_5, window_bounds = array<i64: 1, 2, 128>}]} {
    %cst = arith.constant 0.000000e+00 : f32
    %0 = vector.broadcast %cst : f32 to vector<18x18x128xf32>
    %c0 = arith.constant 0 : index
    %c0_0 = arith.constant 0 : index
    %c0_1 = arith.constant 0 : index
    %1 = vector.load %arg7[%c0, %c0_0, %c0_1] : memref<18x18x128xf32, #tpu.memory_space<vmem>>, vector<18x18x128xf32>
    tpu.vector_store %arg7[%c0, %c0_0, %c0_1], %0 {strides = array<i32>} : memref<18x18x128xf32, #tpu.memory_space<vmem>>, vector<18x18x128xf32>,
    %c0_2 = arith.constant 0 : index
    %c0_3 = arith.constant 0 : index
    %c0_4 = arith.constant 0 : index
    %c0_5 = arith.constant 0 : index
    %2 = vector.load %arg1[%c0_2, %c0_3, %c0_4, %c0_5] : memref<1x16x16x128xf32, #tpu.memory_space<vmem>>, vector<1x16x16x128xf32>
    %3 = vector.shape_cast %2 : vector<1x16x16x128xf32> to vector<16x16x128xf32>
    %c0_6 = arith.constant 0 : index
    %c0_7 = arith.constant 0 : index
    %4 = vector.load %arg2[%c0_6, %c0_7] : memref<1x128xf32, #tpu.memory_space<vmem>>, vector<1x128xf32>
    %5 = vector.shape_cast %4 : vector<1x128xf32> to vector<1x1x128xf32>
    %6 = vector.broadcast %5 : vector<1x1x128xf32> to vector<16x16x128xf32>
    %7 = arith.mulf %3, %6 : vector<16x16x128xf32>
    %c0_8 = arith.constant 0 : index
    %c0_9 = arith.constant 0 : index
    %8 = vector.load %arg3[%c0_8, %c0_9] : memref<1x128xf32, #tpu.memory_space<vmem>>, vector<1x128xf32>
    %9 = vector.shape_cast %8 : vector<1x128xf32> to vector<1x1x128xf32>
    %10 = vector.broadcast %9 : vector<1x1x128xf32> to vector<16x16x128xf32>
    %11 = arith.addf %7, %10 : vector<16x16x128xf32>
    %cst_10 = arith.constant 0.000000e+00 : f32
    %12 = vector.broadcast %cst_10 : f32 to vector<16x16x128xf32>
    %13 = arith.maximumf %11, %12 : vector<16x16x128xf32>
    %c1 = arith.constant 1 : index
    %c1_11 = arith.constant 1 : index
    %c0_12 = arith.constant 0 : index
    %14 = vector.load %arg7[%c1, %c1_11, %c0_12] : memref<18x18x128xf32, #tpu.memory_space<vmem>>, vector<16x16x128xf32>
    tpu.vector_store %arg7[%c1, %c1_11, %c0_12], %13 {strides = array<i32>} : memref<18x18x128xf32, #tpu.memory_space<vmem>>, vector<16x16x128xf32>,
    %cst_13 = arith.constant 0.000000e+00 : f32
    %15 = vector.broadcast %cst_13 : f32 to vector<256x128xf32>
    %c0_14 = arith.constant 0 : index
    %c0_15 = arith.constant 0 : index
    %16 = vector.load %arg8[%c0_14, %c0_15] : memref<256x128xf32, #tpu.memory_space<vmem>>, vector<256x128xf32>
    tpu.vector_store %arg8[%c0_14, %c0_15], %15 {strides = array<i32>} : memref<256x128xf32, #tpu.memory_space<vmem>>, vector<256x128xf32>,
    %c0_16 = arith.constant 0 : index
    %c0_17 = arith.constant 0 : index
    %c0_18 = arith.constant 0 : index
    %17 = vector.load %arg7[%c0_16, %c0_17, %c0_18] : memref<18x18x128xf32, #tpu.memory_space<vmem>>, vector<16x16x128xf32>
    %18 = vector.shape_cast %17 : vector<16x16x128xf32> to vector<256x128xf32>
    %c0_19 = arith.constant 0 : index
    %c0_20 = arith.constant 0 : index
    %19 = vector.load %arg8[%c0_19, %c0_20] : memref<256x128xf32, #tpu.memory_space<vmem>>, vector<256x128xf32>
    %20 = arith.truncf %18 : vector<256x128xf32> to vector<256x128xbf16>
    %c0_21 = arith.constant 0 : index
    %c0_22 = arith.constant 0 : index
    %c0_23 = arith.constant 0 : index
    %21 = vector.load %arg4[%c0_21, %c0_22, %c0_23] : memref<9x128x128xbf16, #tpu.memory_space<vmem>>, vector<1x128x128xbf16>
    %22 = vector.shape_cast %21 : vector<1x128x128xbf16> to vector<128x128xbf16>
    %cst_24 = arith.constant dense<0.000000e+00> : vector<256x128xf32>
    %23 = tpu.matmul %20, %22, %cst_24 {dimension_numbers = #tpu.dot_dimension_numbers<[1], [0], [0], [1], [0, 0, 1, 1], [], []>} : vector<256x128xbf16>, vector<128x128xbf16>, vector<256x128xf32> -> vector<256x128xf32>
    %24 = arith.addf %19, %23 : vector<256x128xf32>
    %c0_25 = arith.constant 0 : index
    %c0_26 = arith.constant 0 : index
    %25 = vector.load %arg8[%c0_25, %c0_26] : memref<256x128xf32, #tpu.memory_space<vmem>>, vector<256x128xf32>
    tpu.vector_store %arg8[%c0_25, %c0_26], %24 {strides = array<i32>} : memref<256x128xf32, #tpu.memory_space<vmem>>, vector<256x128xf32>,
    %c0_27 = arith.constant 0 : index
    %c1_28 = arith.constant 1 : index
    %c0_29 = arith.constant 0 : index
    %26 = vector.load %arg7[%c0_27, %c1_28, %c0_29] : memref<18x18x128xf32, #tpu.memory_space<vmem>>, vector<16x16x128xf32>
    %27 = vector.shape_cast %26 : vector<16x16x128xf32> to vector<256x128xf32>
    %c0_30 = arith.constant 0 : index
    %c0_31 = arith.constant 0 : index
    %28 = vector.load %arg8[%c0_30, %c0_31] : memref<256x128xf32, #tpu.memory_space<vmem>>, vector<256x128xf32>
    %29 = arith.truncf %27 : vector<256x128xf32> to vector<256x128xbf16>
    %c1_32 = arith.constant 1 : index
    %c0_33 = arith.constant 0 : index
    %c0_34 = arith.constant 0 : index
    %30 = vector.load %arg4[%c1_32, %c0_33, %c0_34] : memref<9x128x128xbf16, #tpu.memory_space<vmem>>, vector<1x128x128xbf16>
    %31 = vector.shape_cast %30 : vector<1x128x128xbf16> to vector<128x128xbf16>
    %cst_35 = arith.constant dense<0.000000e+00> : vector<256x128xf32>
    %32 = tpu.matmul %29, %31, %cst_35 {dimension_numbers = #tpu.dot_dimension_numbers<[1], [0], [0], [1], [0, 0, 1, 1], [], []>} : vector<256x128xbf16>, vector<128x128xbf16>, vector<256x128xf32> -> vector<256x128xf32>
    %33 = arith.addf %28, %32 : vector<256x128xf32>
    %c0_36 = arith.constant 0 : index
    %c0_37 = arith.constant 0 : index
    %34 = vector.load %arg8[%c0_36, %c0_37] : memref<256x128xf32, #tpu.memory_space<vmem>>, vector<256x128xf32>
    tpu.vector_store %arg8[%c0_36, %c0_37], %33 {strides = array<i32>} : memref<256x128xf32, #tpu.memory_space<vmem>>, vector<256x128xf32>,
    %c0_38 = arith.constant 0 : index
    %c2 = arith.constant 2 : index
    %c0_39 = arith.constant 0 : index
    %35 = vector.load %arg7[%c0_38, %c2, %c0_39] : memref<18x18x128xf32, #tpu.memory_space<vmem>>, vector<16x16x128xf32>
    %36 = vector.shape_cast %35 : vector<16x16x128xf32> to vector<256x128xf32>
    %c0_40 = arith.constant 0 : index
    %c0_41 = arith.constant 0 : index
    %37 = vector.load %arg8[%c0_40, %c0_41] : memref<256x128xf32, #tpu.memory_space<vmem>>, vector<256x128xf32>
    %38 = arith.truncf %36 : vector<256x128xf32> to vector<256x128xbf16>
    %c2_42 = arith.constant 2 : index
    %c0_43 = arith.constant 0 : index
    %c0_44 = arith.constant 0 : index
    %39 = vector.load %arg4[%c2_42, %c0_43, %c0_44] : memref<9x128x128xbf16, #tpu.memory_space<vmem>>, vector<1x128x128xbf16>
    %40 = vector.shape_cast %39 : vector<1x128x128xbf16> to vector<128x128xbf16>
    %cst_45 = arith.constant dense<0.000000e+00> : vector<256x128xf32>
    %41 = tpu.matmul %38, %40, %cst_45 {dimension_numbers = #tpu.dot_dimension_numbers<[1], [0], [0], [1], [0, 0, 1, 1], [], []>} : vector<256x128xbf16>, vector<128x128xbf16>, vector<256x128xf32> -> vector<256x128xf32>
    %42 = arith.addf %37, %41 : vector<256x128xf32>
    %c0_46 = arith.constant 0 : index
    %c0_47 = arith.constant 0 : index
    %43 = vector.load %arg8[%c0_46, %c0_47] : memref<256x128xf32, #tpu.memory_space<vmem>>, vector<256x128xf32>
    tpu.vector_store %arg8[%c0_46, %c0_47], %42 {strides = array<i32>} : memref<256x128xf32, #tpu.memory_space<vmem>>, vector<256x128xf32>,
    %c1_48 = arith.constant 1 : index
    %c0_49 = arith.constant 0 : index
    %c0_50 = arith.constant 0 : index
    %44 = vector.load %arg7[%c1_48, %c0_49, %c0_50] : memref<18x18x128xf32, #tpu.memory_space<vmem>>, vector<16x16x128xf32>
    %45 = vector.shape_cast %44 : vector<16x16x128xf32> to vector<256x128xf32>
    %c0_51 = arith.constant 0 : index
    %c0_52 = arith.constant 0 : index
    %46 = vector.load %arg8[%c0_51, %c0_52] : memref<256x128xf32, #tpu.memory_space<vmem>>, vector<256x128xf32>
    %47 = arith.truncf %45 : vector<256x128xf32> to vector<256x128xbf16>
    %c3 = arith.constant 3 : index
    %c0_53 = arith.constant 0 : index
    %c0_54 = arith.constant 0 : index
    %48 = vector.load %arg4[%c3, %c0_53, %c0_54] : memref<9x128x128xbf16, #tpu.memory_space<vmem>>, vector<1x128x128xbf16>
    %49 = vector.shape_cast %48 : vector<1x128x128xbf16> to vector<128x128xbf16>
    %cst_55 = arith.constant dense<0.000000e+00> : vector<256x128xf32>
    %50 = tpu.matmul %47, %49, %cst_55 {dimension_numbers = #tpu.dot_dimension_numbers<[1], [0], [0], [1], [0, 0, 1, 1], [], []>} : vector<256x128xbf16>, vector<128x128xbf16>, vector<256x128xf32> -> vector<256x128xf32>
    %51 = arith.addf %46, %50 : vector<256x128xf32>
    %c0_56 = arith.constant 0 : index
    %c0_57 = arith.constant 0 : index
    %52 = vector.load %arg8[%c0_56, %c0_57] : memref<256x128xf32, #tpu.memory_space<vmem>>, vector<256x128xf32>
    tpu.vector_store %arg8[%c0_56, %c0_57], %51 {strides = array<i32>} : memref<256x128xf32, #tpu.memory_space<vmem>>, vector<256x128xf32>,
    %c1_58 = arith.constant 1 : index
    %c1_59 = arith.constant 1 : index
    %c0_60 = arith.constant 0 : index
    %53 = vector.load %arg7[%c1_58, %c1_59, %c0_60] : memref<18x18x128xf32, #tpu.memory_space<vmem>>, vector<16x16x128xf32>
    %54 = vector.shape_cast %53 : vector<16x16x128xf32> to vector<256x128xf32>
    %c0_61 = arith.constant 0 : index
    %c0_62 = arith.constant 0 : index
    %55 = vector.load %arg8[%c0_61, %c0_62] : memref<256x128xf32, #tpu.memory_space<vmem>>, vector<256x128xf32>
    %56 = arith.truncf %54 : vector<256x128xf32> to vector<256x128xbf16>
    %c4 = arith.constant 4 : index
    %c0_63 = arith.constant 0 : index
    %c0_64 = arith.constant 0 : index
    %57 = vector.load %arg4[%c4, %c0_63, %c0_64] : memref<9x128x128xbf16, #tpu.memory_space<vmem>>, vector<1x128x128xbf16>
    %58 = vector.shape_cast %57 : vector<1x128x128xbf16> to vector<128x128xbf16>
    %cst_65 = arith.constant dense<0.000000e+00> : vector<256x128xf32>
    %59 = tpu.matmul %56, %58, %cst_65 {dimension_numbers = #tpu.dot_dimension_numbers<[1], [0], [0], [1], [0, 0, 1, 1], [], []>} : vector<256x128xbf16>, vector<128x128xbf16>, vector<256x128xf32> -> vector<256x128xf32>
    %60 = arith.addf %55, %59 : vector<256x128xf32>
    %c0_66 = arith.constant 0 : index
    %c0_67 = arith.constant 0 : index
    %61 = vector.load %arg8[%c0_66, %c0_67] : memref<256x128xf32, #tpu.memory_space<vmem>>, vector<256x128xf32>
    tpu.vector_store %arg8[%c0_66, %c0_67], %60 {strides = array<i32>} : memref<256x128xf32, #tpu.memory_space<vmem>>, vector<256x128xf32>,
    %c1_68 = arith.constant 1 : index
    %c2_69 = arith.constant 2 : index
    %c0_70 = arith.constant 0 : index
    %62 = vector.load %arg7[%c1_68, %c2_69, %c0_70] : memref<18x18x128xf32, #tpu.memory_space<vmem>>, vector<16x16x128xf32>
    %63 = vector.shape_cast %62 : vector<16x16x128xf32> to vector<256x128xf32>
    %c0_71 = arith.constant 0 : index
    %c0_72 = arith.constant 0 : index
    %64 = vector.load %arg8[%c0_71, %c0_72] : memref<256x128xf32, #tpu.memory_space<vmem>>, vector<256x128xf32>
    %65 = arith.truncf %63 : vector<256x128xf32> to vector<256x128xbf16>
    %c5 = arith.constant 5 : index
    %c0_73 = arith.constant 0 : index
    %c0_74 = arith.constant 0 : index
    %66 = vector.load %arg4[%c5, %c0_73, %c0_74] : memref<9x128x128xbf16, #tpu.memory_space<vmem>>, vector<1x128x128xbf16>
    %67 = vector.shape_cast %66 : vector<1x128x128xbf16> to vector<128x128xbf16>
    %cst_75 = arith.constant dense<0.000000e+00> : vector<256x128xf32>
    %68 = tpu.matmul %65, %67, %cst_75 {dimension_numbers = #tpu.dot_dimension_numbers<[1], [0], [0], [1], [0, 0, 1, 1], [], []>} : vector<256x128xbf16>, vector<128x128xbf16>, vector<256x128xf32> -> vector<256x128xf32>
    %69 = arith.addf %64, %68 : vector<256x128xf32>
    %c0_76 = arith.constant 0 : index
    %c0_77 = arith.constant 0 : index
    %70 = vector.load %arg8[%c0_76, %c0_77] : memref<256x128xf32, #tpu.memory_space<vmem>>, vector<256x128xf32>
    tpu.vector_store %arg8[%c0_76, %c0_77], %69 {strides = array<i32>} : memref<256x128xf32, #tpu.memory_space<vmem>>, vector<256x128xf32>,
    %c2_78 = arith.constant 2 : index
    %c0_79 = arith.constant 0 : index
    %c0_80 = arith.constant 0 : index
    %71 = vector.load %arg7[%c2_78, %c0_79, %c0_80] : memref<18x18x128xf32, #tpu.memory_space<vmem>>, vector<16x16x128xf32>
    %72 = vector.shape_cast %71 : vector<16x16x128xf32> to vector<256x128xf32>
    %c0_81 = arith.constant 0 : index
    %c0_82 = arith.constant 0 : index
    %73 = vector.load %arg8[%c0_81, %c0_82] : memref<256x128xf32, #tpu.memory_space<vmem>>, vector<256x128xf32>
    %74 = arith.truncf %72 : vector<256x128xf32> to vector<256x128xbf16>
    %c6 = arith.constant 6 : index
    %c0_83 = arith.constant 0 : index
    %c0_84 = arith.constant 0 : index
    %75 = vector.load %arg4[%c6, %c0_83, %c0_84] : memref<9x128x128xbf16, #tpu.memory_space<vmem>>, vector<1x128x128xbf16>
    %76 = vector.shape_cast %75 : vector<1x128x128xbf16> to vector<128x128xbf16>
    %cst_85 = arith.constant dense<0.000000e+00> : vector<256x128xf32>
    %77 = tpu.matmul %74, %76, %cst_85 {dimension_numbers = #tpu.dot_dimension_numbers<[1], [0], [0], [1], [0, 0, 1, 1], [], []>} : vector<256x128xbf16>, vector<128x128xbf16>, vector<256x128xf32> -> vector<256x128xf32>
    %78 = arith.addf %73, %77 : vector<256x128xf32>
    %c0_86 = arith.constant 0 : index
    %c0_87 = arith.constant 0 : index
    %79 = vector.load %arg8[%c0_86, %c0_87] : memref<256x128xf32, #tpu.memory_space<vmem>>, vector<256x128xf32>
    tpu.vector_store %arg8[%c0_86, %c0_87], %78 {strides = array<i32>} : memref<256x128xf32, #tpu.memory_space<vmem>>, vector<256x128xf32>,
    %c2_88 = arith.constant 2 : index
    %c1_89 = arith.constant 1 : index
    %c0_90 = arith.constant 0 : index
    %80 = vector.load %arg7[%c2_88, %c1_89, %c0_90] : memref<18x18x128xf32, #tpu.memory_space<vmem>>, vector<16x16x128xf32>
    %81 = vector.shape_cast %80 : vector<16x16x128xf32> to vector<256x128xf32>
    %c0_91 = arith.constant 0 : index
    %c0_92 = arith.constant 0 : index
    %82 = vector.load %arg8[%c0_91, %c0_92] : memref<256x128xf32, #tpu.memory_space<vmem>>, vector<256x128xf32>
    %83 = arith.truncf %81 : vector<256x128xf32> to vector<256x128xbf16>
    %c7 = arith.constant 7 : index
    %c0_93 = arith.constant 0 : index
    %c0_94 = arith.constant 0 : index
    %84 = vector.load %arg4[%c7, %c0_93, %c0_94] : memref<9x128x128xbf16, #tpu.memory_space<vmem>>, vector<1x128x128xbf16>
    %85 = vector.shape_cast %84 : vector<1x128x128xbf16> to vector<128x128xbf16>
    %cst_95 = arith.constant dense<0.000000e+00> : vector<256x128xf32>
    %86 = tpu.matmul %83, %85, %cst_95 {dimension_numbers = #tpu.dot_dimension_numbers<[1], [0], [0], [1], [0, 0, 1, 1], [], []>} : vector<256x128xbf16>, vector<128x128xbf16>, vector<256x128xf32> -> vector<256x128xf32>
    %87 = arith.addf %82, %86 : vector<256x128xf32>
    %c0_96 = arith.constant 0 : index
    %c0_97 = arith.constant 0 : index
    %88 = vector.load %arg8[%c0_96, %c0_97] : memref<256x128xf32, #tpu.memory_space<vmem>>, vector<256x128xf32>
    tpu.vector_store %arg8[%c0_96, %c0_97], %87 {strides = array<i32>} : memref<256x128xf32, #tpu.memory_space<vmem>>, vector<256x128xf32>,
    %c2_98 = arith.constant 2 : index
    %c2_99 = arith.constant 2 : index
    %c0_100 = arith.constant 0 : index
    %89 = vector.load %arg7[%c2_98, %c2_99, %c0_100] : memref<18x18x128xf32, #tpu.memory_space<vmem>>, vector<16x16x128xf32>
    %90 = vector.shape_cast %89 : vector<16x16x128xf32> to vector<256x128xf32>
    %c0_101 = arith.constant 0 : index
    %c0_102 = arith.constant 0 : index
    %91 = vector.load %arg8[%c0_101, %c0_102] : memref<256x128xf32, #tpu.memory_space<vmem>>, vector<256x128xf32>
    %92 = arith.truncf %90 : vector<256x128xf32> to vector<256x128xbf16>
    %c8 = arith.constant 8 : index
    %c0_103 = arith.constant 0 : index
    %c0_104 = arith.constant 0 : index
    %93 = vector.load %arg4[%c8, %c0_103, %c0_104] : memref<9x128x128xbf16, #tpu.memory_space<vmem>>, vector<1x128x128xbf16>
    %94 = vector.shape_cast %93 : vector<1x128x128xbf16> to vector<128x128xbf16>
    %cst_105 = arith.constant dense<0.000000e+00> : vector<256x128xf32>
    %95 = tpu.matmul %92, %94, %cst_105 {dimension_numbers = #tpu.dot_dimension_numbers<[1], [0], [0], [1], [0, 0, 1, 1], [], []>} : vector<256x128xbf16>, vector<128x128xbf16>, vector<256x128xf32> -> vector<256x128xf32>
    %96 = arith.addf %91, %95 : vector<256x128xf32>
    %c0_106 = arith.constant 0 : index
    %c0_107 = arith.constant 0 : index
    %97 = vector.load %arg8[%c0_106, %c0_107] : memref<256x128xf32, #tpu.memory_space<vmem>>, vector<256x128xf32>
    tpu.vector_store %arg8[%c0_106, %c0_107], %96 {strides = array<i32>} : memref<256x128xf32, #tpu.memory_space<vmem>>, vector<256x128xf32>,
    %c0_108 = arith.constant 0 : index
    %c0_109 = arith.constant 0 : index
    %98 = vector.load %arg8[%c0_108, %c0_109] : memref<256x128xf32, #tpu.memory_space<vmem>>, vector<256x128xf32>
    %99 = vector.shape_cast %98 : vector<256x128xf32> to vector<16x16x128xf32>
    %c0_110 = arith.constant 0 : index
    %c0_111 = arith.constant 0 : index
    %c0_112 = arith.constant 0 : index
    %c0_113 = arith.constant 0 : index
    %100 = vector.load %arg5[%c0_110, %c0_111, %c0_112, %c0_113] : memref<1x16x16x128xf32, #tpu.memory_space<vmem>>, vector<1x16x16x128xf32>
    %101 = vector.shape_cast %100 : vector<1x16x16x128xf32> to vector<16x16x128xf32>
    %102 = vector.shape_cast %99 : vector<16x16x128xf32> to vector<1x16x16x128xf32>
    tpu.vector_store %arg5[%c0_110, %c0_111, %c0_112, %c0_113], %102 {strides = array<i32>} : memref<1x16x16x128xf32, #tpu.memory_space<vmem>>, vector<1x16x16x128xf32>,
    %cst_114 = arith.constant dense<0.000000e+00> : vector<128xf32>
    %103 = vector.multi_reduction <add>, %98, %cst_114 [0] : vector<256x128xf32> to vector<128xf32>
    %104 = vector.shape_cast %103 : vector<128xf32> to vector<1x128xf32>
    %105 = arith.mulf %98, %98 : vector<256x128xf32>
    %cst_115 = arith.constant dense<0.000000e+00> : vector<128xf32>
    %106 = vector.multi_reduction <add>, %105, %cst_115 [0] : vector<256x128xf32> to vector<128xf32>
    %107 = vector.shape_cast %106 : vector<128xf32> to vector<1x128xf32>
    %108 = tpu.concatenate %104, %107 in 0 : vector<1x128xf32>, vector<1x128xf32> -> vector<2x128xf32>
    %c0_116 = arith.constant 0 : index
    %c0_117 = arith.constant 0 : index
    %c0_118 = arith.constant 0 : index
    %109 = vector.load %arg6[%c0_116, %c0_117, %c0_118] : memref<1x2x128xf32, #tpu.memory_space<vmem>>, vector<1x2x128xf32>
    %110 = vector.shape_cast %109 : vector<1x2x128xf32> to vector<2x128xf32>
    %111 = vector.shape_cast %108 : vector<2x128xf32> to vector<1x2x128xf32>
    tpu.vector_store %arg6[%c0_116, %c0_117, %c0_118], %111 {strides = array<i32>} : memref<1x2x128xf32, #tpu.memory_space<vmem>>, vector<1x2x128xf32>,
    return
  }
  func.func @transform_0(%arg0: i32) -> (i32, i32, i32, i32) {
    %c0_i32 = arith.constant 0 : i32
    %c0_i32_0 = arith.constant 0 : i32
    %c0_i32_1 = arith.constant 0 : i32
    %c0_i32_2 = arith.constant 0 : i32
    return %arg0, %c0_i32, %c0_i32_0, %c0_i32_1 : i32, i32, i32, i32
  }
  func.func @transform_1(%arg0: i32) -> (i32, i32) {
    %c0_i32 = arith.constant 0 : i32
    %c0_i32_0 = arith.constant 0 : i32
    %c0_i32_1 = arith.constant 0 : i32
    return %c0_i32, %c0_i32_0 : i32, i32
  }
  func.func @transform_2(%arg0: i32) -> (i32, i32) {
    %c0_i32 = arith.constant 0 : i32
    %c0_i32_0 = arith.constant 0 : i32
    %c0_i32_1 = arith.constant 0 : i32
    return %c0_i32, %c0_i32_0 : i32, i32
  }
  func.func @transform_3(%arg0: i32) -> (i32, i32, i32) {
    %c0_i32 = arith.constant 0 : i32
    %c0_i32_0 = arith.constant 0 : i32
    %c0_i32_1 = arith.constant 0 : i32
    %c0_i32_2 = arith.constant 0 : i32
    return %c0_i32, %c0_i32_0, %c0_i32_1 : i32, i32, i32
  }
  func.func @transform_4(%arg0: i32) -> (i32, i32, i32, i32) {
    %c0_i32 = arith.constant 0 : i32
    %c0_i32_0 = arith.constant 0 : i32
    %c0_i32_1 = arith.constant 0 : i32
    %c0_i32_2 = arith.constant 0 : i32
    return %arg0, %c0_i32, %c0_i32_0, %c0_i32_1 : i32, i32, i32, i32
  }
  func.func @transform_5(%arg0: i32) -> (i32, i32, i32) {
    %c0_i32 = arith.constant 0 : i32
    %c0_i32_0 = arith.constant 0 : i32
    %c0_i32_1 = arith.constant 0 : i32
    return %arg0, %c0_i32, %c0_i32_0 : i32, i32, i32
  }
}

</mosaic_0001>

<llo_original>
// kernel: bottleneck_forward.4
$region0: #{bottleneck_forward.4}
  #allocation0 [shape = 'u32[]', space=smem, size = 0x4, offset = 0x4, fixed_abs, tag = 'smem constant byte address 0x4 - core index']
  #allocation1 [shape = 'u32[72,128]{1,0:T(1,128)}', space=vmem, size = 0x9000, scoped, tag = 'internal scratch']
  %s0 = inlined_call_operand.vmem [shape: f32[512,128], index: 0, kind: input, shape index: {}]
  %s1 = inlined_call_operand.vmem [shape: bf16[128,128], index: 1, kind: input, shape index: {}]
  %s2 = inlined_call_operand.vmem [shape: f32[512,128], index: 2, kind: output, shape index: {0}]
  %s3 = inlined_call_operand.vmem [shape: f32[2,2,128], index: 3, kind: output, shape index: {1}]
  %4 = xla_tuple %s2, %s3
  %s5 = sld [smem:[#allocation0]]
  $region49: #{bottleneck_forward.4} parent=0
    _
  %s7 = ssub.s32 1, %s5
  %s8 = scalar_select 0, %s7, %s5
  loop: start=0, step=1, limit=4
  $region2: #{bottleneck_forward.4} parent=0 // loop_pre_header
    _
  $region3: #{bottleneck_forward.4} parent=0 // loop_header
    %s10 = sphi 0, %s14
    %p11 = scmp.ge.s32.totalorder %s10, 4
    %s20 = sphi 0, %s22
    %s23 = sphi 0, %s20
    %s24 = sphi 0, %s23
    %s40 = sphi 0, %s24
    %s44 = sphi 0, %s44
    %s46 = sphi 0, %s44
    %s47 = sphi 0, %s46
    %s61 = sphi 0, %s47
    %s67 = sphi 0, %s69
    %s70 = sphi 0, %s67
    %s71 = sphi 0, %s70
    %s87 = sphi 0, %s71
    %s93 = sphi 0, %s95
    %s96 = sphi 0, %s93
    %s97 = sphi 0, %s96
    %s113 = sphi 0, %s97
  $region4: #{bottleneck_forward.4} parent=0 // loop_header_branch
    %13 = sbr.rel (%p11) target = $region8
  $region5: #{bottleneck_forward.4} parent=0 // loop_body
    %s15 = ssub.s32 %s10, 1
    %s16 = ssub.s32 %s10, 2
    %s17 = sadd.s32 %s10, 1
    %s18 = ssub.s32 %s10, %s17
    %p19 = scmp.eq.s32.totalorder %s18, 0
    %s21 = sadd.s32 %s20, 1
    %s22 = scalar_select %p19, %s20, %s21
    %p25 = pneg %p19
    %p26 = scmp.eq.s32.totalorder %s10, 1
    %p27 = por %p25, %p26
    %p28 = scmp.ne.s32.totalorder %s20, %s23
    %p29 = scmp.eq.s32.totalorder %s10, 0
    %p30 = por %p28, %p29
    %p31 = scmp.ne.s32.totalorder %s20, %s23
    %p32 = scmp.eq.s32.totalorder %s15, 1
    %p33 = por %p31, %p32
    %p34 = scmp.ne.s32.totalorder %s23, %s24
    %p35 = scmp.eq.s32.totalorder %s15, 0
    %p36 = por %p34, %p35
    %p37 = scmp.ne.s32.totalorder %s23, %s24
    %p38 = scmp.eq.s32.totalorder %s16, 1
    %p39 = por %p37, %p38
    %p41 = scmp.ne.s32.totalorder %s24, %s40
    %p42 = scmp.eq.s32.totalorder %s16, 0
    %p43 = por %p41, %p42
    %s45 = sadd.s32 %s44, 1
    %p48 = scmp.eq.s32.totalorder %s10, 1
    %p49 = scmp.ne.s32.totalorder %s44, %s46
    %p50 = scmp.eq.s32.totalorder %s10, 0
    %p51 = por %p49, %p50
    %p52 = scmp.ne.s32.totalorder %s44, %s46
    %p53 = scmp.eq.s32.totalorder %s15, 1
    %p54 = por %p52, %p53
    %p55 = scmp.ne.s32.totalorder %s46, %s47
    %p56 = scmp.eq.s32.totalorder %s15, 0
    %p57 = por %p55, %p56
    %p58 = scmp.ne.s32.totalorder %s46, %s47
    %p59 = scmp.eq.s32.totalorder %s16, 1
    %p60 = por %p58, %p59
    %p62 = scmp.ne.s32.totalorder %s47, %s61
    %p63 = scmp.eq.s32.totalorder %s16, 0
    %p64 = por %p62, %p63
    %s65 = ssub.s32 %s10, %s17
    %p66 = scmp.eq.s32.totalorder %s65, 0
    %s68 = sadd.s32 %s67, 1
    %s69 = scalar_select %p66, %s67, %s68
    %p72 = pneg %p66
    %p73 = scmp.eq.s32.totalorder %s10, 1
    %p74 = por %p72, %p73
    %p75 = scmp.ne.s32.totalorder %s67, %s70
    %p76 = scmp.eq.s32.totalorder %s10, 0
    %p77 = por %p75, %p76
    %p78 = scmp.ne.s32.totalorder %s67, %s70
    %p79 = scmp.eq.s32.totalorder %s15, 1
    %p80 = por %p78, %p79
    %p81 = scmp.ne.s32.totalorder %s70, %s71
    %p82 = scmp.eq.s32.totalorder %s15, 0
    %p83 = por %p81, %p82
    %p84 = scmp.ne.s32.totalorder %s70, %s71
    %p85 = scmp.eq.s32.totalorder %s16, 1
    %p86 = por %p84, %p85
    %p88 = scmp.ne.s32.totalorder %s71, %s87
    %p89 = scmp.eq.s32.totalorder %s16, 0
    %p90 = por %p88, %p89
    %s91 = ssub.s32 %s10, %s17
    %p92 = scmp.eq.s32.totalorder %s91, 0
    %s94 = sadd.s32 %s93, 1
    %s95 = scalar_select %p92, %s93, %s94
    %p98 = pneg %p92
    %p99 = scmp.eq.s32.totalorder %s10, 1
    %p100 = por %p98, %p99
    %p101 = scmp.ne.s32.totalorder %s93, %s96
    %p102 = scmp.eq.s32.totalorder %s10, 0
    %p103 = por %p101, %p102
    %p104 = scmp.ne.s32.totalorder %s93, %s96
    %p105 = scmp.eq.s32.totalorder %s15, 1
    %p106 = por %p104, %p105
    %p107 = scmp.ne.s32.totalorder %s96, %s97
    %p108 = scmp.eq.s32.totalorder %s15, 0
    %p109 = por %p107, %p108
    %p110 = scmp.ne.s32.totalorder %s96, %s97
    %p111 = scmp.eq.s32.totalorder %s16, 1
    %p112 = por %p110, %p111
    %p114 = scmp.ne.s32.totalorder %s97, %s113
    %p115 = scmp.eq.s32.totalorder %s16, 0
    %p116 = por %p114, %p115
    %p117 = scmp.le.s32.totalorder 1, %s10
    %p118 = scmp.lt.s32.totalorder %s10, 3
    %p119 = pnand %p117, %p118
    %p120 = pneg %p119
    // Predicated region
    $region9: #{bottleneck_forward.4} parent=5 // pred_check
      _
    $region10: #{bottleneck_forward.4} parent=5 // pred_check_branch
      %122 = sbr.rel (%p119) target = $region12
    $region11: #{bottleneck_forward.4} parent=5 // pred_region
      %s123 = ssub.s32 %s10, 1
      // Predicated region
      $region13: #{bottleneck_forward.4} parent=11 // pred_check
        %p124 = pneg %p57
      $region14: #{bottleneck_forward.4} parent=11 // pred_check_branch
        %126 = sbr.rel (%p124) target = $region16
      $region15: #{bottleneck_forward.4} parent=11 // pred_region
        _
      $region16: #{bottleneck_forward.4} parent=11 // pred_fallthru
        _
    $region12: #{bottleneck_forward.4} parent=5 // pred_fallthru
      _
    %p127 = scmp.lt.s32.totalorder %s10, 2
    // Predicated region
    $region17: #{bottleneck_forward.4} parent=5 // pred_check
      %p128 = pneg %p127
    $region18: #{bottleneck_forward.4} parent=5 // pred_check_branch
      %130 = sbr.rel (%p128) target = $region20
    $region19: #{bottleneck_forward.4} parent=5 // pred_region
      // Predicated region
      $region21: #{bottleneck_forward.4} parent=19 // pred_check
        %p131 = pneg %p30
      $region22: #{bottleneck_forward.4} parent=19 // pred_check_branch
        %133 = sbr.rel (%p131) target = $region24
      $region23: #{bottleneck_forward.4} parent=19 // pred_region
        %s134 = smul.u32 32, %s10
        %p135 = scmp.lt.s32.totalorder %s134, 63
        %s136 = scalar_select %p135, %s134, 63
        %s137 = smul.addr %s136, 8
        %s138 = scalar_lea.vmem %s0, %s137
        %s139 = smul.u32 32, %s10
      $region24: #{bottleneck_forward.4} parent=19 // pred_fallthru
        _
    $region20: #{bottleneck_forward.4} parent=5 // pred_fallthru
      _
    %p140 = scmp.le.s32.totalorder 1, %s10
    %p141 = scmp.lt.s32.totalorder %s10, 3
    %p142 = pnand %p140, %p141
    %p143 = pneg %p142
    // Predicated region
    $region25: #{bottleneck_forward.4} parent=5 // pred_check
      _
    $region26: #{bottleneck_forward.4} parent=5 // pred_check_branch
      %145 = sbr.rel (%p142) target = $region28
    $region27: #{bottleneck_forward.4} parent=5 // pred_region
      %s146 = ssub.s32 %s10, 1
      %s147 = smul.u32 32, %s15
      %p148 = scmp.lt.s32.totalorder %s147, 63
      %s149 = scalar_select %p148, %s147, 63
      %s150 = smul.addr %s149, 8
      %s151 = scalar_lea.vmem %s0, %s150
      %p152 = pneg %p36
      %p153 = pneg %p33
      %p154 = pneg %p57
      %p155 = pneg %p54
      %p156 = pneg %p83
      %p157 = pneg %p80
      %s158 = smul.u32 32, %s15
      %p159 = scmp.lt.s32.totalorder %s158, 63
      %s160 = scalar_select %p159, %s158, 63
      %s161 = smul.addr %s160, 8
      %s162 = scalar_lea.vmem %s2, %s161
      %p163 = pneg %p109
      %p164 = pneg %p106
      %p165 = scmp.lt.s32.totalorder %s15, 1
      %s166 = scalar_select %p165, %s15, 1
      %s167 = smul.addr %s166, 2
      %s168 = scalar_lea.vmem %s3, %s167
      %s169 = smul.u32 32, %s15
      %p170 = scmp.lt.s32.totalorder %s169, 63
      %s171 = scalar_select %p170, %s169, 63
      %s172 = smul.addr %s171, 8
      %s173 = scalar_lea.vmem %s0, %s172
      %s174 = smul.u32 32, %s15
      %s175 = smul.u32 32, %s15
      %p176 = scmp.lt.s32.totalorder %s175, 63
      %s177 = scalar_select %p176, %s175, 63
      %s178 = smul.addr %s177, 8
      %s179 = scalar_lea.vmem %s2, %s178
      %s180 = smul.u32 32, %s15
      %p181 = scmp.lt.s32.totalorder %s15, 1
      %s182 = scalar_select %p181, %s15, 1
      %s183 = smul.addr %s182, 2
      %s184 = scalar_lea.vmem %s3, %s183
      %v185 = vld [vmem:[%s173] sm:$0xff]
      %v186 = vld [vmem:[%s173 + $0x8] sm:$0xff]
      %v187 = vld [vmem:[%s173 + $0x10] sm:$0xff]
      %v188 = vld [vmem:[%s173 + $0x18] sm:$0xff]
      %v189 = vld [vmem:[%s173 + $0x20] sm:$0xff]
      %v190 = vld [vmem:[%s173 + $0x28] sm:$0xff]
      %v191 = vld [vmem:[%s173 + $0x30] sm:$0xff]
      %v192 = vld [vmem:[%s173 + $0x38] sm:$0xff]
      %v193 = vld [vmem:[%s173 + $0x40] sm:$0xff]
      %v194 = vld [vmem:[%s173 + $0x48] sm:$0xff]
      %v195 = vld [vmem:[%s173 + $0x50] sm:$0xff]
      %v196 = vld [vmem:[%s173 + $0x58] sm:$0xff]
      %v197 = vld [vmem:[%s173 + $0x60] sm:$0xff]
      %v198 = vld [vmem:[%s173 + $0x68] sm:$0xff]
      %v199 = vld [vmem:[%s173 + $0x70] sm:$0xff]
      %v200 = vld [vmem:[%s173 + $0x78] sm:$0xff]
      %v201 = vld [vmem:[%s173 + $0x80] sm:$0xff]
      %v202 = vld [vmem:[%s173 + $0x88] sm:$0xff]
      %v203 = vld [vmem:[%s173 + $0x90] sm:$0xff]
      %v204 = vld [vmem:[%s173 + $0x98] sm:$0xff]
      %v205 = vld [vmem:[%s173 + $0xa0] sm:$0xff]
      %v206 = vld [vmem:[%s173 + $0xa8] sm:$0xff]
      %v207 = vld [vmem:[%s173 + $0xb0] sm:$0xff]
      %v208 = vld [vmem:[%s173 + $0xb8] sm:$0xff]
      %v209 = vld [vmem:[%s173 + $0xc0] sm:$0xff]
      %v210 = vld [vmem:[%s173 + $0xc8] sm:$0xff]
      %v211 = vld [vmem:[%s173 + $0xd0] sm:$0xff]
      %v212 = vld [vmem:[%s173 + $0xd8] sm:$0xff]
      %v213 = vld [vmem:[%s173 + $0xe0] sm:$0xff]
      %v214 = vld [vmem:[%s173 + $0xe8] sm:$0xff]
      %v215 = vld [vmem:[%s173 + $0xf0] sm:$0xff]
      %v216 = vld [vmem:[%s173 + $0xf8] sm:$0xff]
      %v217 = vpack.c.bf16 %v186, %v185
      %v218 = vpack.c.bf16 %v188, %v187
      %v219 = vpack.c.bf16 %v190, %v189
      %v220 = vpack.c.bf16 %v192, %v191
      %v221 = vpack.c.bf16 %v194, %v193
      %v222 = vpack.c.bf16 %v196, %v195
      %v223 = vpack.c.bf16 %v198, %v197
      %v224 = vpack.c.bf16 %v200, %v199
      %v225 = vpack.c.bf16 %v202, %v201
      %v226 = vpack.c.bf16 %v204, %v203
      %v227 = vpack.c.bf16 %v206, %v205
      %v228 = vpack.c.bf16 %v208, %v207
      %v229 = vpack.c.bf16 %v210, %v209
      %v230 = vpack.c.bf16 %v212, %v211
      %v231 = vpack.c.bf16 %v214, %v213
      %v232 = vpack.c.bf16 %v216, %v215
      %v233 = vld [vmem:[%s1] sm:$0xf]
      %v234 = vld [vmem:[%s1 + $0x4] sm:$0xf]
      %v235 = vld [vmem:[%s1 + $0x8] sm:$0xf]
      %v236 = vld [vmem:[%s1 + $0xc] sm:$0xf]
      %v237 = vld [vmem:[%s1 + $0x10] sm:$0xf]
      %v238 = vld [vmem:[%s1 + $0x14] sm:$0xf]
      %v239 = vld [vmem:[%s1 + $0x18] sm:$0xf]
      %v240 = vld [vmem:[%s1 + $0x1c] sm:$0xf]
      %v241 = vld [vmem:[%s1 + $0x20] sm:$0xf]
      %v242 = vld [vmem:[%s1 + $0x24] sm:$0xf]
      %v243 = vld [vmem:[%s1 + $0x28] sm:$0xf]
      %v244 = vld [vmem:[%s1 + $0x2c] sm:$0xf]
      %v245 = vld [vmem:[%s1 + $0x30] sm:$0xf]
      %v246 = vld [vmem:[%s1 + $0x34] sm:$0xf]
      %v247 = vld [vmem:[%s1 + $0x38] sm:$0xf]
      %v248 = vld [vmem:[%s1 + $0x3c] sm:$0xf]
      %v265 = vunpack.c.l.b16 %v233
      %v266 = vunpack.c.l.b16 %v234
      %v267 = vunpack.c.l.b16 %v235
      %v268 = vunpack.c.l.b16 %v236
      %v269 = vunpack.c.l.b16 %v237
      %v270 = vunpack.c.l.b16 %v238
      %v271 = vunpack.c.l.b16 %v239
      %v272 = vunpack.c.l.b16 %v240
      %v273 = vunpack.c.l.b16 %v241
      %v274 = vunpack.c.l.b16 %v242
      %v275 = vunpack.c.l.b16 %v243
      %v276 = vunpack.c.l.b16 %v244
      %v277 = vunpack.c.l.b16 %v245
      %v278 = vunpack.c.l.b16 %v246
      %v279 = vunpack.c.l.b16 %v247
      %v280 = vunpack.c.l.b16 %v248
      %v281 = vpack.c.b16 %v266, %v265
      %v282 = vpack.c.b16 %v268, %v267
      %v283 = vpack.c.b16 %v270, %v269
      %v284 = vpack.c.b16 %v272, %v271
      %v285 = vpack.c.b16 %v274, %v273
      %v286 = vpack.c.b16 %v276, %v275
      %v287 = vpack.c.b16 %v278, %v277
      %v288 = vpack.c.b16 %v280, %v279
      %297 = vmatpush.bf16.msra.mxu0 %v288
      %298 = vmatpush.bf16.msra.mxu0 %v287
      %299 = vmatpush.bf16.msra.mxu0 %v286
      %300 = vmatpush.bf16.msra.mxu0 %v285
      %301 = vmatpush.bf16.msra.mxu0 %v284
      %302 = vmatpush.bf16.msra.mxu0 %v283
      %303 = vmatpush.bf16.msra.mxu0 %v282
      %304 = vmatpush.bf16.msra.mxu0 %v281
      %305 = vmatmul.bf16.gmra.mxu0 %v217
      %v306 = vpop.f32.mrf.mxu0
      %v307 = vadd.f32 0.0, %v306
      %v308 = vpop.f32.mrf.mxu0
      %v309 = vadd.f32 0.0, %v308
      %310 = vmatmul.bf16.gmra.mxu0 %v218
      %v311 = vpop.f32.mrf.mxu0
      %v312 = vadd.f32 0.0, %v311
      %v313 = vpop.f32.mrf.mxu0
      %v314 = vadd.f32 0.0, %v313
      %315 = vmatmul.bf16.gmra.mxu0 %v219
      %v316 = vpop.f32.mrf.mxu0
      %v317 = vadd.f32 0.0, %v316
      %v318 = vpop.f32.mrf.mxu0
      %v319 = vadd.f32 0.0, %v318
      %320 = vmatmul.bf16.gmra.mxu0 %v220
      %v321 = vpop.f32.mrf.mxu0
      %v322 = vadd.f32 0.0, %v321
      %v323 = vpop.f32.mrf.mxu0
      %v324 = vadd.f32 0.0, %v323
      %325 = vmatmul.bf16.gmra.mxu0 %v221
      %v326 = vpop.f32.mrf.mxu0
      %v327 = vadd.f32 0.0, %v326
      %v328 = vpop.f32.mrf.mxu0
      %v329 = vadd.f32 0.0, %v328
      %330 = vmatmul.bf16.gmra.mxu0 %v222
      %v331 = vpop.f32.mrf.mxu0
      %v332 = vadd.f32 0.0, %v331
      %v333 = vpop.f32.mrf.mxu0
      %v334 = vadd.f32 0.0, %v333
      %335 = vmatmul.bf16.gmra.mxu0 %v223
      %v336 = vpop.f32.mrf.mxu0
      %v337 = vadd.f32 0.0, %v336
      %v338 = vpop.f32.mrf.mxu0
      %v339 = vadd.f32 0.0, %v338
      %340 = vmatmul.bf16.gmra.mxu0 %v224
      %v341 = vpop.f32.mrf.mxu0
      %v342 = vadd.f32 0.0, %v341
      %v343 = vpop.f32.mrf.mxu0
      %v344 = vadd.f32 0.0, %v343
      %345 = vmatmul.bf16.gmra.mxu0 %v225
      %v346 = vpop.f32.mrf.mxu0
      %v347 = vadd.f32 0.0, %v346
      %v348 = vpop.f32.mrf.mxu0
      %v349 = vadd.f32 0.0, %v348
      %350 = vmatmul.bf16.gmra.mxu0 %v226
      %v351 = vpop.f32.mrf.mxu0
      %v352 = vadd.f32 0.0, %v351
      %v353 = vpop.f32.mrf.mxu0
      %v354 = vadd.f32 0.0, %v353
      %355 = vmatmul.bf16.gmra.mxu0 %v227
      %v356 = vpop.f32.mrf.mxu0
      %v357 = vadd.f32 0.0, %v356
      %v358 = vpop.f32.mrf.mxu0
      %v359 = vadd.f32 0.0, %v358
      %360 = vmatmul.bf16.gmra.mxu0 %v228
      %v361 = vpop.f32.mrf.mxu0
      %v362 = vadd.f32 0.0, %v361
      %v363 = vpop.f32.mrf.mxu0
      %v364 = vadd.f32 0.0, %v363
      %365 = vmatmul.bf16.gmra.mxu0 %v229
      %v366 = vpop.f32.mrf.mxu0
      %v367 = vadd.f32 0.0, %v366
      %v368 = vpop.f32.mrf.mxu0
      %v369 = vadd.f32 0.0, %v368
      %370 = vmatmul.bf16.gmra.mxu0 %v230
      %v371 = vpop.f32.mrf.mxu0
      %v372 = vadd.f32 0.0, %v371
      %v373 = vpop.f32.mrf.mxu0
      %v374 = vadd.f32 0.0, %v373
      %375 = vmatmul.bf16.gmra.mxu0 %v231
      %v376 = vpop.f32.mrf.mxu0
      %v377 = vadd.f32 0.0, %v376
      %v378 = vpop.f32.mrf.mxu0
      %v379 = vadd.f32 0.0, %v378
      %380 = vmatmul.bf16.gmra.mxu0 %v232
      %v381 = vpop.f32.mrf.mxu0
      %v382 = vadd.f32 0.0, %v381
      %v383 = vpop.f32.mrf.mxu0
      %v384 = vadd.f32 0.0, %v383
      %385 = vdwg.mxu0
      %386 = vst [vmem:[%s179] sm:$0xff] %v307
      %387 = vst [vmem:[%s179 + $0x8] sm:$0xff] %v309
      %388 = vst [vmem:[%s179 + $0x10] sm:$0xff] %v312
      %389 = vst [vmem:[%s179 + $0x18] sm:$0xff] %v314
      %390 = vst [vmem:[%s179 + $0x20] sm:$0xff] %v317
      %391 = vst [vmem:[%s179 + $0x28] sm:$0xff] %v319
      %392 = vst [vmem:[%s179 + $0x30] sm:$0xff] %v322
      %393 = vst [vmem:[%s179 + $0x38] sm:$0xff] %v324
      %394 = vst [vmem:[%s179 + $0x40] sm:$0xff] %v327
      %395 = vst [vmem:[%s179 + $0x48] sm:$0xff] %v329
      %396 = vst [vmem:[%s179 + $0x50] sm:$0xff] %v332
      %397 = vst [vmem:[%s179 + $0x58] sm:$0xff] %v334
      %398 = vst [vmem:[%s179 + $0x60] sm:$0xff] %v337
      %399 = vst [vmem:[%s179 + $0x68] sm:$0xff] %v339
      %400 = vst [vmem:[%s179 + $0x70] sm:$0xff] %v342
      %401 = vst [vmem:[%s179 + $0x78] sm:$0xff] %v344
      %402 = vst [vmem:[%s179 + $0x80] sm:$0xff] %v347
      %403 = vst [vmem:[%s179 + $0x88] sm:$0xff] %v349
      %404 = vst [vmem:[%s179 + $0x90] sm:$0xff] %v352
      %405 = vst [vmem:[%s179 + $0x98] sm:$0xff] %v354
      %406 = vst [vmem:[%s179 + $0xa0] sm:$0xff] %v357
      %407 = vst [vmem:[%s179 + $0xa8] sm:$0xff] %v359
      %408 = vst [vmem:[%s179 + $0xb0] sm:$0xff] %v362
      %409 = vst [vmem:[%s179 + $0xb8] sm:$0xff] %v364
      %410 = vst [vmem:[%s179 + $0xc0] sm:$0xff] %v367
      %411 = vst [vmem:[%s179 + $0xc8] sm:$0xff] %v369
      %412 = vst [vmem:[%s179 + $0xd0] sm:$0xff] %v372
      %413 = vst [vmem:[%s179 + $0xd8] sm:$0xff] %v374
      %414 = vst [vmem:[%s179 + $0xe0] sm:$0xff] %v377
      %415 = vst [vmem:[%s179 + $0xe8] sm:$0xff] %v379
      %416 = vst [vmem:[%s179 + $0xf0] sm:$0xff] %v382
      %417 = vst [vmem:[%s179 + $0xf8] sm:$0xff] %v384
      %v418 = vadd.f32 %v307, %v309
      %v419 = vadd.f32 %v418, %v312
      %v420 = vadd.f32 %v419, %v314
      %v421 = vadd.f32 %v420, %v317
      %v422 = vadd.f32 %v421, %v319
      %v423 = vadd.f32 %v422, %v322
      %v424 = vadd.f32 %v423, %v324
      %v425 = vadd.f32 %v424, %v327
      %v426 = vadd.f32 %v425, %v329
      %v427 = vadd.f32 %v426, %v332
      %v428 = vadd.f32 %v427, %v334
      %v429 = vadd.f32 %v428, %v337
      %v430 = vadd.f32 %v429, %v339
      %v431 = vadd.f32 %v430, %v342
      %v432 = vadd.f32 %v431, %v344
      %v433 = vadd.f32 %v432, %v347
      %v434 = vadd.f32 %v433, %v349
      %v435 = vadd.f32 %v434, %v352
      %v436 = vadd.f32 %v435, %v354
      %v437 = vadd.f32 %v436, %v357
      %v438 = vadd.f32 %v437, %v359
      %v439 = vadd.f32 %v438, %v362
      %v440 = vadd.f32 %v439, %v364
      %v441 = vadd.f32 %v440, %v367
      %v442 = vadd.f32 %v441, %v369
      %v443 = vadd.f32 %v442, %v372
      %v444 = vadd.f32 %v443, %v374
      %v445 = vadd.f32 %v444, %v377
      %v446 = vadd.f32 %v445, %v379
      %v447 = vadd.f32 %v446, %v382
      %v448 = vadd.f32 %v447, %v384
      %v449 = vrot.slane %v448, 4
      %v450 = vadd.f32 %v448, %v449
      %v451 = vrot.slane %v450, 2
      %v452 = vadd.f32 %v450, %v451
      %v453 = vrot.slane %v452, 1
      %v454 = vadd.f32 %v452, %v453
      %v455 = vmul.f32 %v307, %v307
      %v456 = vmul.f32 %v309, %v309
      %v457 = vmul.f32 %v312, %v312
      %v458 = vmul.f32 %v314, %v314
      %v459 = vmul.f32 %v317, %v317
      %v460 = vmul.f32 %v319, %v319
      %v461 = vmul.f32 %v322, %v322
      %v462 = vmul.f32 %v324, %v324
      %v463 = vmul.f32 %v327, %v327
      %v464 = vmul.f32 %v329, %v329
      %v465 = vmul.f32 %v332, %v332
      %v466 = vmul.f32 %v334, %v334
      %v467 = vmul.f32 %v337, %v337
      %v468 = vmul.f32 %v339, %v339
      %v469 = vmul.f32 %v342, %v342
      %v470 = vmul.f32 %v344, %v344
      %v471 = vmul.f32 %v347, %v347
      %v472 = vmul.f32 %v349, %v349
      %v473 = vmul.f32 %v352, %v352
      %v474 = vmul.f32 %v354, %v354
      %v475 = vmul.f32 %v357, %v357
      %v476 = vmul.f32 %v359, %v359
      %v477 = vmul.f32 %v362, %v362
      %v478 = vmul.f32 %v364, %v364
      %v479 = vmul.f32 %v367, %v367
      %v480 = vmul.f32 %v369, %v369
      %v481 = vmul.f32 %v372, %v372
      %v482 = vmul.f32 %v374, %v374
      %v483 = vmul.f32 %v377, %v377
      %v484 = vmul.f32 %v379, %v379
      %v485 = vmul.f32 %v382, %v382
      %v486 = vmul.f32 %v384, %v384
      %v487 = vadd.f32 %v455, %v456
      %v488 = vadd.f32 %v487, %v457
      %v489 = vadd.f32 %v488, %v458
      %v490 = vadd.f32 %v489, %v459
      %v491 = vadd.f32 %v490, %v460
      %v492 = vadd.f32 %v491, %v461
      %v493 = vadd.f32 %v492, %v462
      %v494 = vadd.f32 %v493, %v463
      %v495 = vadd.f32 %v494, %v464
      %v496 = vadd.f32 %v495, %v465
      %v497 = vadd.f32 %v496, %v466
      %v498 = vadd.f32 %v497, %v467
      %v499 = vadd.f32 %v498, %v468
      %v500 = vadd.f32 %v499, %v469
      %v501 = vadd.f32 %v500, %v470
      %v502 = vadd.f32 %v501, %v471
      %v503 = vadd.f32 %v502, %v472
      %v504 = vadd.f32 %v503, %v473
      %v505 = vadd.f32 %v504, %v474
      %v506 = vadd.f32 %v505, %v475
      %v507 = vadd.f32 %v506, %v476
      %v508 = vadd.f32 %v507, %v477
      %v509 = vadd.f32 %v508, %v478
      %v510 = vadd.f32 %v509, %v479
      %v511 = vadd.f32 %v510, %v480
      %v512 = vadd.f32 %v511, %v481
      %v513 = vadd.f32 %v512, %v482
      %v514 = vadd.f32 %v513, %v483
      %v515 = vadd.f32 %v514, %v484
      %v516 = vadd.f32 %v515, %v485
      %v517 = vadd.f32 %v516, %v486
      %v518 = vrot.slane %v517, 4
      %v519 = vadd.f32 %v517, %v518
      %v520 = vrot.slane %v519, 2
      %v521 = vadd.f32 %v519, %v520
      %v522 = vrot.slane %v521, 1
      %v523 = vadd.f32 %v521, %v522
      %vm524 = vcmask 1040384
      %v525 = vsel %vm524, %v454, %v523
      %526 = vst [vmem:[%s184] sm:$0x3] %v525
      %s527 = smul.u32 32, %s15
      %p528 = scmp.lt.s32.totalorder %s527, 63
      %s529 = scalar_select %p528, %s527, 63
      %s530 = smul.addr %s529, 8
      %s531 = scalar_lea.vmem %s2, %s530
      %p532 = scmp.lt.s32.totalorder %s15, 1
      %s533 = scalar_select %p532, %s15, 1
      %s534 = smul.addr %s533, 2
      %s535 = scalar_lea.vmem %s3, %s534
      // Predicated region
      $region29: #{bottleneck_forward.4} parent=27 // pred_check
        %p536 = pneg %p80
      $region30: #{bottleneck_forward.4} parent=27 // pred_check_branch
        %538 = sbr.rel (%p536) target = $region32
      $region31: #{bottleneck_forward.4} parent=27 // pred_region
        %s539 = smul.u32 32, %s15
      $region32: #{bottleneck_forward.4} parent=27 // pred_fallthru
        _
      // Predicated region
      $region33: #{bottleneck_forward.4} parent=27 // pred_check
        %p540 = pneg %p106
      $region34: #{bottleneck_forward.4} parent=27 // pred_check_branch
        %542 = sbr.rel (%p540) target = $region36
      $region35: #{bottleneck_forward.4} parent=27 // pred_region
        _
      $region36: #{bottleneck_forward.4} parent=27 // pred_fallthru
        _
    $region28: #{bottleneck_forward.4} parent=5 // pred_fallthru
      _
    %p543 = scmp.le.s32.totalorder 2, %s10
    // Predicated region
    $region37: #{bottleneck_forward.4} parent=5 // pred_check
      %p544 = pneg %p543
    $region38: #{bottleneck_forward.4} parent=5 // pred_check_branch
      %546 = sbr.rel (%p544) target = $region40
    $region39: #{bottleneck_forward.4} parent=5 // pred_region
      %s547 = ssub.s32 %s10, 2
      // Predicated region
      $region41: #{bottleneck_forward.4} parent=39 // pred_check
        %p548 = pneg %p86
      $region42: #{bottleneck_forward.4} parent=39 // pred_check_branch
        %550 = sbr.rel (%p548) target = $region44
      $region43: #{bottleneck_forward.4} parent=39 // pred_region
        %s551 = smul.u32 32, %s16
        %p552 = scmp.lt.s32.totalorder %s551, 63
        %s553 = scalar_select %p552, %s551, 63
        %s554 = smul.addr %s553, 8
        %s555 = scalar_lea.vmem %s2, %s554
      $region44: #{bottleneck_forward.4} parent=39 // pred_fallthru
        _
      // Predicated region
      $region45: #{bottleneck_forward.4} parent=39 // pred_check
        %p556 = pneg %p112
      $region46: #{bottleneck_forward.4} parent=39 // pred_check_branch
        %558 = sbr.rel (%p556) target = $region48
      $region47: #{bottleneck_forward.4} parent=39 // pred_region
        %p559 = scmp.lt.s32.totalorder %s16, 1
        %s560 = scalar_select %p559, %s16, 1
        %s561 = smul.addr %s560, 2
        %s562 = scalar_lea.vmem %s3, %s561
      $region48: #{bottleneck_forward.4} parent=39 // pred_fallthru
        _
    $region40: #{bottleneck_forward.4} parent=5 // pred_fallthru
      _
  $region6: #{bottleneck_forward.4} parent=0 // loop_footer
    %s14 = sadd.s32 1, %s10
  $region7: #{bottleneck_forward.4} parent=0 // loop_footer_branch
    %9 = sbr.rel target = $region3
  $region8: #{bottleneck_forward.4} parent=0 // loop_exit
    _

// kernel: bottleneck_forward.7
$region0: #{bottleneck_forward.7}
  #allocation0 [shape = 'u32[]', space=smem, size = 0x4, offset = 0x4, fixed_abs, tag = 'smem constant byte address 0x4 - core index']
  #allocation1 [shape = 'u32[72,128]{1,0:T(1,128)}', space=vmem, size = 0x9000, scoped, tag = 'internal scratch']
  %s0 = inlined_call_operand.vmem [shape: f32[512,128], index: 0, kind: input, shape index: {}]
  %s1 = inlined_call_operand.vmem [shape: f32[1,128], index: 1, kind: input, shape index: {}]
  %s2 = inlined_call_operand.vmem [shape: f32[1,128], index: 2, kind: input, shape index: {}]
  %s3 = inlined_call_operand.vmem [shape: f32[512,128], index: 3, kind: input, shape index: {}]
  %s4 = inlined_call_operand.vmem [shape: f32[512,128], index: 4, kind: output, shape index: {}]
  %s5 = sld [smem:[#allocation0]]
  $region49: #{bottleneck_forward.7} parent=0
    _
  %s7 = ssub.s32 1, %s5
  %s8 = scalar_select 0, %s7, %s5
  loop: start=0, step=1, limit=4
  $region2: #{bottleneck_forward.7} parent=0 // loop_pre_header
    _
  $region3: #{bottleneck_forward.7} parent=0 // loop_header
    %s10 = sphi 0, %s14
    %p11 = scmp.ge.s32.totalorder %s10, 4
    %s20 = sphi 0, %s22
    %s23 = sphi 0, %s20
    %s24 = sphi 0, %s23
    %s40 = sphi 0, %s24
    %s44 = sphi 0, %s44
    %s46 = sphi 0, %s44
    %s47 = sphi 0, %s46
    %s61 = sphi 0, %s47
    %s65 = sphi 0, %s65
    %s67 = sphi 0, %s65
    %s68 = sphi 0, %s67
    %s82 = sphi 0, %s68
    %s88 = sphi 0, %s90
    %s91 = sphi 0, %s88
    %s92 = sphi 0, %s91
    %s108 = sphi 0, %s92
    %s114 = sphi 0, %s116
    %s117 = sphi 0, %s114
    %s118 = sphi 0, %s117
    %s134 = sphi 0, %s118
  $region4: #{bottleneck_forward.7} parent=0 // loop_header_branch
    %13 = sbr.rel (%p11) target = $region8
  $region5: #{bottleneck_forward.7} parent=0 // loop_body
    %s15 = ssub.s32 %s10, 1
    %s16 = ssub.s32 %s10, 2
    %s17 = sadd.s32 %s10, 1
    %s18 = ssub.s32 %s10, %s17
    %p19 = scmp.eq.s32.totalorder %s18, 0
    %s21 = sadd.s32 %s20, 1
    %s22 = scalar_select %p19, %s20, %s21
    %p25 = pneg %p19
    %p26 = scmp.eq.s32.totalorder %s10, 1
    %p27 = por %p25, %p26
    %p28 = scmp.ne.s32.totalorder %s20, %s23
    %p29 = scmp.eq.s32.totalorder %s10, 0
    %p30 = por %p28, %p29
    %p31 = scmp.ne.s32.totalorder %s20, %s23
    %p32 = scmp.eq.s32.totalorder %s15, 1
    %p33 = por %p31, %p32
    %p34 = scmp.ne.s32.totalorder %s23, %s24
    %p35 = scmp.eq.s32.totalorder %s15, 0
    %p36 = por %p34, %p35
    %p37 = scmp.ne.s32.totalorder %s23, %s24
    %p38 = scmp.eq.s32.totalorder %s16, 1
    %p39 = por %p37, %p38
    %p41 = scmp.ne.s32.totalorder %s24, %s40
    %p42 = scmp.eq.s32.totalorder %s16, 0
    %p43 = por %p41, %p42
    %s45 = sadd.s32 %s44, 1
    %p48 = scmp.eq.s32.totalorder %s10, 1
    %p49 = scmp.ne.s32.totalorder %s44, %s46
    %p50 = scmp.eq.s32.totalorder %s10, 0
    %p51 = por %p49, %p50
    %p52 = scmp.ne.s32.totalorder %s44, %s46
    %p53 = scmp.eq.s32.totalorder %s15, 1
    %p54 = por %p52, %p53
    %p55 = scmp.ne.s32.totalorder %s46, %s47
    %p56 = scmp.eq.s32.totalorder %s15, 0
    %p57 = por %p55, %p56
    %p58 = scmp.ne.s32.totalorder %s46, %s47
    %p59 = scmp.eq.s32.totalorder %s16, 1
    %p60 = por %p58, %p59
    %p62 = scmp.ne.s32.totalorder %s47, %s61
    %p63 = scmp.eq.s32.totalorder %s16, 0
    %p64 = por %p62, %p63
    %s66 = sadd.s32 %s65, 1
    %p69 = scmp.eq.s32.totalorder %s10, 1
    %p70 = scmp.ne.s32.totalorder %s65, %s67
    %p71 = scmp.eq.s32.totalorder %s10, 0
    %p72 = por %p70, %p71
    %p73 = scmp.ne.s32.totalorder %s65, %s67
    %p74 = scmp.eq.s32.totalorder %s15, 1
    %p75 = por %p73, %p74
    %p76 = scmp.ne.s32.totalorder %s67, %s68
    %p77 = scmp.eq.s32.totalorder %s15, 0
    %p78 = por %p76, %p77
    %p79 = scmp.ne.s32.totalorder %s67, %s68
    %p80 = scmp.eq.s32.totalorder %s16, 1
    %p81 = por %p79, %p80
    %p83 = scmp.ne.s32.totalorder %s68, %s82
    %p84 = scmp.eq.s32.totalorder %s16, 0
    %p85 = por %p83, %p84
    %s86 = ssub.s32 %s10, %s17
    %p87 = scmp.eq.s32.totalorder %s86, 0
    %s89 = sadd.s32 %s88, 1
    %s90 = scalar_select %p87, %s88, %s89
    %p93 = pneg %p87
    %p94 = scmp.eq.s32.totalorder %s10, 1
    %p95 = por %p93, %p94
    %p96 = scmp.ne.s32.totalorder %s88, %s91
    %p97 = scmp.eq.s32.totalorder %s10, 0
    %p98 = por %p96, %p97
    %p99 = scmp.ne.s32.totalorder %s88, %s91
    %p100 = scmp.eq.s32.totalorder %s15, 1
    %p101 = por %p99, %p100
    %p102 = scmp.ne.s32.totalorder %s91, %s92
    %p103 = scmp.eq.s32.totalorder %s15, 0
    %p104 = por %p102, %p103
    %p105 = scmp.ne.s32.totalorder %s91, %s92
    %p106 = scmp.eq.s32.totalorder %s16, 1
    %p107 = por %p105, %p106
    %p109 = scmp.ne.s32.totalorder %s92, %s108
    %p110 = scmp.eq.s32.totalorder %s16, 0
    %p111 = por %p109, %p110
    %s112 = ssub.s32 %s10, %s17
    %p113 = scmp.eq.s32.totalorder %s112, 0
    %s115 = sadd.s32 %s114, 1
    %s116 = scalar_select %p113, %s114, %s115
    %p119 = pneg %p113
    %p120 = scmp.eq.s32.totalorder %s10, 1
    %p121 = por %p119, %p120
    %p122 = scmp.ne.s32.totalorder %s114, %s117
    %p123 = scmp.eq.s32.totalorder %s10, 0
    %p124 = por %p122, %p123
    %p125 = scmp.ne.s32.totalorder %s114, %s117
    %p126 = scmp.eq.s32.totalorder %s15, 1
    %p127 = por %p125, %p126
    %p128 = scmp.ne.s32.totalorder %s117, %s118
    %p129 = scmp.eq.s32.totalorder %s15, 0
    %p130 = por %p128, %p129
    %p131 = scmp.ne.s32.totalorder %s117, %s118
    %p132 = scmp.eq.s32.totalorder %s16, 1
    %p133 = por %p131, %p132
    %p135 = scmp.ne.s32.totalorder %s118, %s134
    %p136 = scmp.eq.s32.totalorder %s16, 0
    %p137 = por %p135, %p136
    %p138 = scmp.le.s32.totalorder 1, %s10
    %p139 = scmp.lt.s32.totalorder %s10, 3
    %p140 = pnand %p138, %p139
    %p141 = pneg %p140
    // Predicated region
    $region9: #{bottleneck_forward.7} parent=5 // pred_check
      _
    $region10: #{bottleneck_forward.7} parent=5 // pred_check_branch
      %143 = sbr.rel (%p140) target = $region12
    $region11: #{bottleneck_forward.7} parent=5 // pred_region
      %s144 = ssub.s32 %s10, 1
      // Predicated region
      $region13: #{bottleneck_forward.7} parent=11 // pred_check
        %p145 = pneg %p57
      $region14: #{bottleneck_forward.7} parent=11 // pred_check_branch
        %147 = sbr.rel (%p145) target = $region16
      $region15: #{bottleneck_forward.7} parent=11 // pred_region
        _
      $region16: #{bottleneck_forward.7} parent=11 // pred_fallthru
        _
      // Predicated region
      $region17: #{bottleneck_forward.7} parent=11 // pred_check
        %p148 = pneg %p78
      $region18: #{bottleneck_forward.7} parent=11 // pred_check_branch
        %150 = sbr.rel (%p148) target = $region20
      $region19: #{bottleneck_forward.7} parent=11 // pred_region
        _
      $region20: #{bottleneck_forward.7} parent=11 // pred_fallthru
        _
    $region12: #{bottleneck_forward.7} parent=5 // pred_fallthru
      _
    %p151 = scmp.lt.s32.totalorder %s10, 2
    // Predicated region
    $region21: #{bottleneck_forward.7} parent=5 // pred_check
      %p152 = pneg %p151
    $region22: #{bottleneck_forward.7} parent=5 // pred_check_branch
      %154 = sbr.rel (%p152) target = $region24
    $region23: #{bottleneck_forward.7} parent=5 // pred_region
      // Predicated region
      $region25: #{bottleneck_forward.7} parent=23 // pred_check
        %p155 = pneg %p30
      $region26: #{bottleneck_forward.7} parent=23 // pred_check_branch
        %157 = sbr.rel (%p155) target = $region28
      $region27: #{bottleneck_forward.7} parent=23 // pred_region
        %s158 = smul.u32 32, %s10
        %p159 = scmp.lt.s32.totalorder %s158, 63
        %s160 = scalar_select %p159, %s158, 63
        %s161 = smul.addr %s160, 8
        %s162 = scalar_lea.vmem %s0, %s161
        %s163 = smul.u32 32, %s10
      $region28: #{bottleneck_forward.7} parent=23 // pred_fallthru
        _
      // Predicated region
      $region29: #{bottleneck_forward.7} parent=23 // pred_check
        %p164 = pneg %p98
      $region30: #{bottleneck_forward.7} parent=23 // pred_check_branch
        %166 = sbr.rel (%p164) target = $region32
      $region31: #{bottleneck_forward.7} parent=23 // pred_region
        %s167 = smul.u32 32, %s10
        %p168 = scmp.lt.s32.totalorder %s167, 63
        %s169 = scalar_select %p168, %s167, 63
        %s170 = smul.addr %s169, 8
        %s171 = scalar_lea.vmem %s3, %s170
        %s172 = smul.u32 32, %s10
      $region32: #{bottleneck_forward.7} parent=23 // pred_fallthru
        _
    $region24: #{bottleneck_forward.7} parent=5 // pred_fallthru
      _
    %p173 = scmp.le.s32.totalorder 1, %s10
    %p174 = scmp.lt.s32.totalorder %s10, 3
    %p175 = pnand %p173, %p174
    %p176 = pneg %p175
    // Predicated region
    $region33: #{bottleneck_forward.7} parent=5 // pred_check
      _
    $region34: #{bottleneck_forward.7} parent=5 // pred_check_branch
      %178 = sbr.rel (%p175) target = $region36
    $region35: #{bottleneck_forward.7} parent=5 // pred_region
      %s179 = ssub.s32 %s10, 1
      %s180 = smul.u32 32, %s15
      %p181 = scmp.lt.s32.totalorder %s180, 63
      %s182 = scalar_select %p181, %s180, 63
      %s183 = smul.addr %s182, 8
      %s184 = scalar_lea.vmem %s0, %s183
      %p185 = pneg %p36
      %p186 = pneg %p33
      %p187 = pneg %p57
      %p188 = pneg %p54
      %p189 = pneg %p78
      %p190 = pneg %p75
      %s191 = smul.u32 32, %s15
      %p192 = scmp.lt.s32.totalorder %s191, 63
      %s193 = scalar_select %p192, %s191, 63
      %s194 = smul.addr %s193, 8
      %s195 = scalar_lea.vmem %s3, %s194
      %p196 = pneg %p104
      %p197 = pneg %p101
      %p198 = pneg %p130
      %p199 = pneg %p127
      %s200 = smul.u32 32, %s15
      %p201 = scmp.lt.s32.totalorder %s200, 63
      %s202 = scalar_select %p201, %s200, 63
      %s203 = smul.addr %s202, 8
      %s204 = scalar_lea.vmem %s4, %s203
      %s205 = smul.u32 32, %s15
      %p206 = scmp.lt.s32.totalorder %s205, 63
      %s207 = scalar_select %p206, %s205, 63
      %s208 = smul.addr %s207, 8
      %s209 = scalar_lea.vmem %s0, %s208
      %s210 = smul.u32 32, %s15
      %s211 = smul.u32 32, %s15
      %p212 = scmp.lt.s32.totalorder %s211, 63
      %s213 = scalar_select %p212, %s211, 63
      %s214 = smul.addr %s213, 8
      %s215 = scalar_lea.vmem %s3, %s214
      %s216 = smul.u32 32, %s15
      %s217 = smul.u32 32, %s15
      %p218 = scmp.lt.s32.totalorder %s217, 63
      %s219 = scalar_select %p218, %s217, 63
      %s220 = smul.addr %s219, 8
      %s221 = scalar_lea.vmem %s4, %s220
      %s222 = smul.u32 32, %s15
      %v223 = vld [vmem:[%s209] sm:$0xff]
      %v224 = vld [vmem:[%s209 + $0x8] sm:$0xff]
      %v225 = vld [vmem:[%s209 + $0x10] sm:$0xff]
      %v226 = vld [vmem:[%s209 + $0x18] sm:$0xff]
      %v227 = vld [vmem:[%s209 + $0x20] sm:$0xff]
      %v228 = vld [vmem:[%s209 + $0x28] sm:$0xff]
      %v229 = vld [vmem:[%s209 + $0x30] sm:$0xff]
      %v230 = vld [vmem:[%s209 + $0x38] sm:$0xff]
      %v231 = vld [vmem:[%s209 + $0x40] sm:$0xff]
      %v232 = vld [vmem:[%s209 + $0x48] sm:$0xff]
      %v233 = vld [vmem:[%s209 + $0x50] sm:$0xff]
      %v234 = vld [vmem:[%s209 + $0x58] sm:$0xff]
      %v235 = vld [vmem:[%s209 + $0x60] sm:$0xff]
      %v236 = vld [vmem:[%s209 + $0x68] sm:$0xff]
      %v237 = vld [vmem:[%s209 + $0x70] sm:$0xff]
      %v238 = vld [vmem:[%s209 + $0x78] sm:$0xff]
      %v239 = vld [vmem:[%s209 + $0x80] sm:$0xff]
      %v240 = vld [vmem:[%s209 + $0x88] sm:$0xff]
      %v241 = vld [vmem:[%s209 + $0x90] sm:$0xff]
      %v242 = vld [vmem:[%s209 + $0x98] sm:$0xff]
      %v243 = vld [vmem:[%s209 + $0xa0] sm:$0xff]
      %v244 = vld [vmem:[%s209 + $0xa8] sm:$0xff]
      %v245 = vld [vmem:[%s209 + $0xb0] sm:$0xff]
      %v246 = vld [vmem:[%s209 + $0xb8] sm:$0xff]
      %v247 = vld [vmem:[%s209 + $0xc0] sm:$0xff]
      %v248 = vld [vmem:[%s209 + $0xc8] sm:$0xff]
      %v249 = vld [vmem:[%s209 + $0xd0] sm:$0xff]
      %v250 = vld [vmem:[%s209 + $0xd8] sm:$0xff]
      %v251 = vld [vmem:[%s209 + $0xe0] sm:$0xff]
      %v252 = vld [vmem:[%s209 + $0xe8] sm:$0xff]
      %v253 = vld [vmem:[%s209 + $0xf0] sm:$0xff]
      %v254 = vld [vmem:[%s209 + $0xf8] sm:$0xff]
      %v255 = vld [vmem:[%s1] sm:$0x1]
      %v257 = vperm.slane %v255, 0
      %v259 = vmul.f32 %v223, %v257
      %v260 = vmul.f32 %v224, %v257
      %v261 = vmul.f32 %v225, %v257
      %v262 = vmul.f32 %v226, %v257
      %v263 = vmul.f32 %v227, %v257
      %v264 = vmul.f32 %v228, %v257
      %v265 = vmul.f32 %v229, %v257
      %v266 = vmul.f32 %v230, %v257
      %v267 = vmul.f32 %v231, %v257
      %v268 = vmul.f32 %v232, %v257
      %v269 = vmul.f32 %v233, %v257
      %v270 = vmul.f32 %v234, %v257
      %v271 = vmul.f32 %v235, %v257
      %v272 = vmul.f32 %v236, %v257
      %v273 = vmul.f32 %v237, %v257
      %v274 = vmul.f32 %v238, %v257
      %v275 = vmul.f32 %v239, %v257
      %v276 = vmul.f32 %v240, %v257
      %v277 = vmul.f32 %v241, %v257
      %v278 = vmul.f32 %v242, %v257
      %v279 = vmul.f32 %v243, %v257
      %v280 = vmul.f32 %v244, %v257
      %v281 = vmul.f32 %v245, %v257
      %v282 = vmul.f32 %v246, %v257
      %v283 = vmul.f32 %v247, %v257
      %v284 = vmul.f32 %v248, %v257
      %v285 = vmul.f32 %v249, %v257
      %v286 = vmul.f32 %v250, %v257
      %v287 = vmul.f32 %v251, %v257
      %v288 = vmul.f32 %v252, %v257
      %v289 = vmul.f32 %v253, %v257
      %v290 = vmul.f32 %v254, %v257
      %v291 = vld [vmem:[%s2] sm:$0x1]
      %v293 = vperm.slane %v291, 0
      %v295 = vadd.f32 %v259, %v293
      %v296 = vadd.f32 %v260, %v293
      %v297 = vadd.f32 %v261, %v293
      %v298 = vadd.f32 %v262, %v293
      %v299 = vadd.f32 %v263, %v293
      %v300 = vadd.f32 %v264, %v293
      %v301 = vadd.f32 %v265, %v293
      %v302 = vadd.f32 %v266, %v293
      %v303 = vadd.f32 %v267, %v293
      %v304 = vadd.f32 %v268, %v293
      %v305 = vadd.f32 %v269, %v293
      %v306 = vadd.f32 %v270, %v293
      %v307 = vadd.f32 %v271, %v293
      %v308 = vadd.f32 %v272, %v293
      %v309 = vadd.f32 %v273, %v293
      %v310 = vadd.f32 %v274, %v293
      %v311 = vadd.f32 %v275, %v293
      %v312 = vadd.f32 %v276, %v293
      %v313 = vadd.f32 %v277, %v293
      %v314 = vadd.f32 %v278, %v293
      %v315 = vadd.f32 %v279, %v293
      %v316 = vadd.f32 %v280, %v293
      %v317 = vadd.f32 %v281, %v293
      %v318 = vadd.f32 %v282, %v293
      %v319 = vadd.f32 %v283, %v293
      %v320 = vadd.f32 %v284, %v293
      %v321 = vadd.f32 %v285, %v293
      %v322 = vadd.f32 %v286, %v293
      %v323 = vadd.f32 %v287, %v293
      %v324 = vadd.f32 %v288, %v293
      %v325 = vadd.f32 %v289, %v293
      %v326 = vadd.f32 %v290, %v293
      %v327 = vld [vmem:[%s215] sm:$0xff]
      %v328 = vld [vmem:[%s215 + $0x8] sm:$0xff]
      %v329 = vld [vmem:[%s215 + $0x10] sm:$0xff]
      %v330 = vld [vmem:[%s215 + $0x18] sm:$0xff]
      %v331 = vld [vmem:[%s215 + $0x20] sm:$0xff]
      %v332 = vld [vmem:[%s215 + $0x28] sm:$0xff]
      %v333 = vld [vmem:[%s215 + $0x30] sm:$0xff]
      %v334 = vld [vmem:[%s215 + $0x38] sm:$0xff]
      %v335 = vld [vmem:[%s215 + $0x40] sm:$0xff]
      %v336 = vld [vmem:[%s215 + $0x48] sm:$0xff]
      %v337 = vld [vmem:[%s215 + $0x50] sm:$0xff]
      %v338 = vld [vmem:[%s215 + $0x58] sm:$0xff]
      %v339 = vld [vmem:[%s215 + $0x60] sm:$0xff]
      %v340 = vld [vmem:[%s215 + $0x68] sm:$0xff]
      %v341 = vld [vmem:[%s215 + $0x70] sm:$0xff]
      %v342 = vld [vmem:[%s215 + $0x78] sm:$0xff]
      %v343 = vld [vmem:[%s215 + $0x80] sm:$0xff]
      %v344 = vld [vmem:[%s215 + $0x88] sm:$0xff]
      %v345 = vld [vmem:[%s215 + $0x90] sm:$0xff]
      %v346 = vld [vmem:[%s215 + $0x98] sm:$0xff]
      %v347 = vld [vmem:[%s215 + $0xa0] sm:$0xff]
      %v348 = vld [vmem:[%s215 + $0xa8] sm:$0xff]
      %v349 = vld [vmem:[%s215 + $0xb0] sm:$0xff]
      %v350 = vld [vmem:[%s215 + $0xb8] sm:$0xff]
      %v351 = vld [vmem:[%s215 + $0xc0] sm:$0xff]
      %v352 = vld [vmem:[%s215 + $0xc8] sm:$0xff]
      %v353 = vld [vmem:[%s215 + $0xd0] sm:$0xff]
      %v354 = vld [vmem:[%s215 + $0xd8] sm:$0xff]
      %v355 = vld [vmem:[%s215 + $0xe0] sm:$0xff]
      %v356 = vld [vmem:[%s215 + $0xe8] sm:$0xff]
      %v357 = vld [vmem:[%s215 + $0xf0] sm:$0xff]
      %v358 = vld [vmem:[%s215 + $0xf8] sm:$0xff]
      %v359 = vadd.f32 %v295, %v327
      %v360 = vadd.f32 %v296, %v328
      %v361 = vadd.f32 %v297, %v329
      %v362 = vadd.f32 %v298, %v330
      %v363 = vadd.f32 %v299, %v331
      %v364 = vadd.f32 %v300, %v332
      %v365 = vadd.f32 %v301, %v333
      %v366 = vadd.f32 %v302, %v334
      %v367 = vadd.f32 %v303, %v335
      %v368 = vadd.f32 %v304, %v336
      %v369 = vadd.f32 %v305, %v337
      %v370 = vadd.f32 %v306, %v338
      %v371 = vadd.f32 %v307, %v339
      %v372 = vadd.f32 %v308, %v340
      %v373 = vadd.f32 %v309, %v341
      %v374 = vadd.f32 %v310, %v342
      %v375 = vadd.f32 %v311, %v343
      %v376 = vadd.f32 %v312, %v344
      %v377 = vadd.f32 %v313, %v345
      %v378 = vadd.f32 %v314, %v346
      %v379 = vadd.f32 %v315, %v347
      %v380 = vadd.f32 %v316, %v348
      %v381 = vadd.f32 %v317, %v349
      %v382 = vadd.f32 %v318, %v350
      %v383 = vadd.f32 %v319, %v351
      %v384 = vadd.f32 %v320, %v352
      %v385 = vadd.f32 %v321, %v353
      %v386 = vadd.f32 %v322, %v354
      %v387 = vadd.f32 %v323, %v355
      %v388 = vadd.f32 %v324, %v356
      %v389 = vadd.f32 %v325, %v357
      %v390 = vadd.f32 %v326, %v358
      %v391 = vmax.f32 %v359, 0.0
      %v392 = vmax.f32 %v360, 0.0
      %v393 = vmax.f32 %v361, 0.0
      %v394 = vmax.f32 %v362, 0.0
      %v395 = vmax.f32 %v363, 0.0
      %v396 = vmax.f32 %v364, 0.0
      %v397 = vmax.f32 %v365, 0.0
      %v398 = vmax.f32 %v366, 0.0
      %v399 = vmax.f32 %v367, 0.0
      %v400 = vmax.f32 %v368, 0.0
      %v401 = vmax.f32 %v369, 0.0
      %v402 = vmax.f32 %v370, 0.0
      %v403 = vmax.f32 %v371, 0.0
      %v404 = vmax.f32 %v372, 0.0
      %v405 = vmax.f32 %v373, 0.0
      %v406 = vmax.f32 %v374, 0.0
      %v407 = vmax.f32 %v375, 0.0
      %v408 = vmax.f32 %v376, 0.0
      %v409 = vmax.f32 %v377, 0.0
      %v410 = vmax.f32 %v378, 0.0
      %v411 = vmax.f32 %v379, 0.0
      %v412 = vmax.f32 %v380, 0.0
      %v413 = vmax.f32 %v381, 0.0
      %v414 = vmax.f32 %v382, 0.0
      %v415 = vmax.f32 %v383, 0.0
      %v416 = vmax.f32 %v384, 0.0
      %v417 = vmax.f32 %v385, 0.0
      %v418 = vmax.f32 %v386, 0.0
      %v419 = vmax.f32 %v387, 0.0
      %v420 = vmax.f32 %v388, 0.0
      %v421 = vmax.f32 %v389, 0.0
      %v422 = vmax.f32 %v390, 0.0
      %423 = vst [vmem:[%s221] sm:$0xff] %v391
      %424 = vst [vmem:[%s221 + $0x8] sm:$0xff] %v392
      %425 = vst [vmem:[%s221 + $0x10] sm:$0xff] %v393
      %426 = vst [vmem:[%s221 + $0x18] sm:$0xff] %v394
      %427 = vst [vmem:[%s221 + $0x20] sm:$0xff] %v395
      %428 = vst [vmem:[%s221 + $0x28] sm:$0xff] %v396
      %429 = vst [vmem:[%s221 + $0x30] sm:$0xff] %v397
      %430 = vst [vmem:[%s221 + $0x38] sm:$0xff] %v398
      %431 = vst [vmem:[%s221 + $0x40] sm:$0xff] %v399
      %432 = vst [vmem:[%s221 + $0x48] sm:$0xff] %v400
      %433 = vst [vmem:[%s221 + $0x50] sm:$0xff] %v401
      %434 = vst [vmem:[%s221 + $0x58] sm:$0xff] %v402
      %435 = vst [vmem:[%s221 + $0x60] sm:$0xff] %v403
      %436 = vst [vmem:[%s221 + $0x68] sm:$0xff] %v404
      %437 = vst [vmem:[%s221 + $0x70] sm:$0xff] %v405
      %438 = vst [vmem:[%s221 + $0x78] sm:$0xff] %v406
      %439 = vst [vmem:[%s221 + $0x80] sm:$0xff] %v407
      %440 = vst [vmem:[%s221 + $0x88] sm:$0xff] %v408
      %441 = vst [vmem:[%s221 + $0x90] sm:$0xff] %v409
      %442 = vst [vmem:[%s221 + $0x98] sm:$0xff] %v410
      %443 = vst [vmem:[%s221 + $0xa0] sm:$0xff] %v411
      %444 = vst [vmem:[%s221 + $0xa8] sm:$0xff] %v412
      %445 = vst [vmem:[%s221 + $0xb0] sm:$0xff] %v413
      %446 = vst [vmem:[%s221 + $0xb8] sm:$0xff] %v414
      %447 = vst [vmem:[%s221 + $0xc0] sm:$0xff] %v415
      %448 = vst [vmem:[%s221 + $0xc8] sm:$0xff] %v416
      %449 = vst [vmem:[%s221 + $0xd0] sm:$0xff] %v417
      %450 = vst [vmem:[%s221 + $0xd8] sm:$0xff] %v418
      %451 = vst [vmem:[%s221 + $0xe0] sm:$0xff] %v419
      %452 = vst [vmem:[%s221 + $0xe8] sm:$0xff] %v420
      %453 = vst [vmem:[%s221 + $0xf0] sm:$0xff] %v421
      %454 = vst [vmem:[%s221 + $0xf8] sm:$0xff] %v422
      %s455 = smul.u32 32, %s15
      %p456 = scmp.lt.s32.totalorder %s455, 63
      %s457 = scalar_select %p456, %s455, 63
      %s458 = smul.addr %s457, 8
      %s459 = scalar_lea.vmem %s4, %s458
      // Predicated region
      $region37: #{bottleneck_forward.7} parent=35 // pred_check
        %p460 = pneg %p127
      $region38: #{bottleneck_forward.7} parent=35 // pred_check_branch
        %462 = sbr.rel (%p460) target = $region40
      $region39: #{bottleneck_forward.7} parent=35 // pred_region
        %s463 = smul.u32 32, %s15
      $region40: #{bottleneck_forward.7} parent=35 // pred_fallthru
        _
    $region36: #{bottleneck_forward.7} parent=5 // pred_fallthru
      _
    %p464 = scmp.le.s32.totalorder 2, %s10
    // Predicated region
    $region41: #{bottleneck_forward.7} parent=5 // pred_check
      %p465 = pneg %p464
    $region42: #{bottleneck_forward.7} parent=5 // pred_check_branch
      %467 = sbr.rel (%p465) target = $region44
    $region43: #{bottleneck_forward.7} parent=5 // pred_region
      %s468 = ssub.s32 %s10, 2
      // Predicated region
      $region45: #{bottleneck_forward.7} parent=43 // pred_check
        %p469 = pneg %p133
      $region46: #{bottleneck_forward.7} parent=43 // pred_check_branch
        %471 = sbr.rel (%p469) target = $region48
      $region47: #{bottleneck_forward.7} parent=43 // pred_region
        %s472 = smul.u32 32, %s16
        %p473 = scmp.lt.s32.totalorder %s472, 63
        %s474 = scalar_select %p473, %s472, 63
        %s475 = smul.addr %s474, 8
        %s476 = scalar_lea.vmem %s4, %s475
      $region48: #{bottleneck_forward.7} parent=43 // pred_fallthru
        _
    $region44: #{bottleneck_forward.7} parent=5 // pred_fallthru
      _
  $region6: #{bottleneck_forward.7} parent=0 // loop_footer
    %s14 = sadd.s32 1, %s10
  $region7: #{bottleneck_forward.7} parent=0 // loop_footer_branch
    %9 = sbr.rel target = $region3
  $region8: #{bottleneck_forward.7} parent=0 // loop_exit
    _

// kernel: bottleneck_forward.6
$region0: #{bottleneck_forward.6}
  #allocation0 [shape = 'u32[]', space=smem, size = 0x4, offset = 0x4, fixed_abs, tag = 'smem constant byte address 0x4 - core index']
  #allocation1 [shape = 'u32[72,128]{1,0:T(1,128)}', space=vmem, size = 0x9000, scoped, tag = 'internal scratch']
  %s0 = inlined_call_operand.vmem [shape: f32[512,128], index: 0, kind: input, shape index: {}]
  %s1 = inlined_call_operand.vmem [shape: f32[1,128], index: 1, kind: input, shape index: {}]
  %s2 = inlined_call_operand.vmem [shape: f32[1,128], index: 2, kind: input, shape index: {}]
  %s3 = inlined_call_operand.vmem [shape: bf16[128,128], index: 3, kind: input, shape index: {}]
  %s4 = inlined_call_operand.vmem [shape: f32[512,128], index: 4, kind: output, shape index: {0}]
  %s5 = inlined_call_operand.vmem [shape: f32[2,2,128], index: 5, kind: output, shape index: {1}]
  %6 = xla_tuple %s4, %s5
  %s7 = sld [smem:[#allocation0]]
  $region57: #{bottleneck_forward.6} parent=0
    _
  %s9 = ssub.s32 1, %s7
  %s10 = scalar_select 0, %s9, %s7
  loop: start=0, step=1, limit=4
  $region2: #{bottleneck_forward.6} parent=0 // loop_pre_header
    _
  $region3: #{bottleneck_forward.6} parent=0 // loop_header
    %s12 = sphi 0, %s16
    %p13 = scmp.ge.s32.totalorder %s12, 4
    %s22 = sphi 0, %s24
    %s25 = sphi 0, %s22
    %s26 = sphi 0, %s25
    %s42 = sphi 0, %s26
    %s46 = sphi 0, %s46
    %s48 = sphi 0, %s46
    %s49 = sphi 0, %s48
    %s63 = sphi 0, %s49
    %s67 = sphi 0, %s67
    %s69 = sphi 0, %s67
    %s70 = sphi 0, %s69
    %s84 = sphi 0, %s70
    %s88 = sphi 0, %s88
    %s90 = sphi 0, %s88
    %s91 = sphi 0, %s90
    %s105 = sphi 0, %s91
    %s111 = sphi 0, %s113
    %s114 = sphi 0, %s111
    %s115 = sphi 0, %s114
    %s131 = sphi 0, %s115
    %s137 = sphi 0, %s139
    %s140 = sphi 0, %s137
    %s141 = sphi 0, %s140
    %s157 = sphi 0, %s141
  $region4: #{bottleneck_forward.6} parent=0 // loop_header_branch
    %15 = sbr.rel (%p13) target = $region8
  $region5: #{bottleneck_forward.6} parent=0 // loop_body
    %s17 = ssub.s32 %s12, 1
    %s18 = ssub.s32 %s12, 2
    %s19 = sadd.s32 %s12, 1
    %s20 = ssub.s32 %s12, %s19
    %p21 = scmp.eq.s32.totalorder %s20, 0
    %s23 = sadd.s32 %s22, 1
    %s24 = scalar_select %p21, %s22, %s23
    %p27 = pneg %p21
    %p28 = scmp.eq.s32.totalorder %s12, 1
    %p29 = por %p27, %p28
    %p30 = scmp.ne.s32.totalorder %s22, %s25
    %p31 = scmp.eq.s32.totalorder %s12, 0
    %p32 = por %p30, %p31
    %p33 = scmp.ne.s32.totalorder %s22, %s25
    %p34 = scmp.eq.s32.totalorder %s17, 1
    %p35 = por %p33, %p34
    %p36 = scmp.ne.s32.totalorder %s25, %s26
    %p37 = scmp.eq.s32.totalorder %s17, 0
    %p38 = por %p36, %p37
    %p39 = scmp.ne.s32.totalorder %s25, %s26
    %p40 = scmp.eq.s32.totalorder %s18, 1
    %p41 = por %p39, %p40
    %p43 = scmp.ne.s32.totalorder %s26, %s42
    %p44 = scmp.eq.s32.totalorder %s18, 0
    %p45 = por %p43, %p44
    %s47 = sadd.s32 %s46, 1
    %p50 = scmp.eq.s32.totalorder %s12, 1
    %p51 = scmp.ne.s32.totalorder %s46, %s48
    %p52 = scmp.eq.s32.totalorder %s12, 0
    %p53 = por %p51, %p52
    %p54 = scmp.ne.s32.totalorder %s46, %s48
    %p55 = scmp.eq.s32.totalorder %s17, 1
    %p56 = por %p54, %p55
    %p57 = scmp.ne.s32.totalorder %s48, %s49
    %p58 = scmp.eq.s32.totalorder %s17, 0
    %p59 = por %p57, %p58
    %p60 = scmp.ne.s32.totalorder %s48, %s49
    %p61 = scmp.eq.s32.totalorder %s18, 1
    %p62 = por %p60, %p61
    %p64 = scmp.ne.s32.totalorder %s49, %s63
    %p65 = scmp.eq.s32.totalorder %s18, 0
    %p66 = por %p64, %p65
    %s68 = sadd.s32 %s67, 1
    %p71 = scmp.eq.s32.totalorder %s12, 1
    %p72 = scmp.ne.s32.totalorder %s67, %s69
    %p73 = scmp.eq.s32.totalorder %s12, 0
    %p74 = por %p72, %p73
    %p75 = scmp.ne.s32.totalorder %s67, %s69
    %p76 = scmp.eq.s32.totalorder %s17, 1
    %p77 = por %p75, %p76
    %p78 = scmp.ne.s32.totalorder %s69, %s70
    %p79 = scmp.eq.s32.totalorder %s17, 0
    %p80 = por %p78, %p79
    %p81 = scmp.ne.s32.totalorder %s69, %s70
    %p82 = scmp.eq.s32.totalorder %s18, 1
    %p83 = por %p81, %p82
    %p85 = scmp.ne.s32.totalorder %s70, %s84
    %p86 = scmp.eq.s32.totalorder %s18, 0
    %p87 = por %p85, %p86
    %s89 = sadd.s32 %s88, 1
    %p92 = scmp.eq.s32.totalorder %s12, 1
    %p93 = scmp.ne.s32.totalorder %s88, %s90
    %p94 = scmp.eq.s32.totalorder %s12, 0
    %p95 = por %p93, %p94
    %p96 = scmp.ne.s32.totalorder %s88, %s90
    %p97 = scmp.eq.s32.totalorder %s17, 1
    %p98 = por %p96, %p97
    %p99 = scmp.ne.s32.totalorder %s90, %s91
    %p100 = scmp.eq.s32.totalorder %s17, 0
    %p101 = por %p99, %p100
    %p102 = scmp.ne.s32.totalorder %s90, %s91
    %p103 = scmp.eq.s32.totalorder %s18, 1
    %p104 = por %p102, %p103
    %p106 = scmp.ne.s32.totalorder %s91, %s105
    %p107 = scmp.eq.s32.totalorder %s18, 0
    %p108 = por %p106, %p107
    %s109 = ssub.s32 %s12, %s19
    %p110 = scmp.eq.s32.totalorder %s109, 0
    %s112 = sadd.s32 %s111, 1
    %s113 = scalar_select %p110, %s111, %s112
    %p116 = pneg %p110
    %p117 = scmp.eq.s32.totalorder %s12, 1
    %p118 = por %p116, %p117
    %p119 = scmp.ne.s32.totalorder %s111, %s114
    %p120 = scmp.eq.s32.totalorder %s12, 0
    %p121 = por %p119, %p120
    %p122 = scmp.ne.s32.totalorder %s111, %s114
    %p123 = scmp.eq.s32.totalorder %s17, 1
    %p124 = por %p122, %p123
    %p125 = scmp.ne.s32.totalorder %s114, %s115
    %p126 = scmp.eq.s32.totalorder %s17, 0
    %p127 = por %p125, %p126
    %p128 = scmp.ne.s32.totalorder %s114, %s115
    %p129 = scmp.eq.s32.totalorder %s18, 1
    %p130 = por %p128, %p129
    %p132 = scmp.ne.s32.totalorder %s115, %s131
    %p133 = scmp.eq.s32.totalorder %s18, 0
    %p134 = por %p132, %p133
    %s135 = ssub.s32 %s12, %s19
    %p136 = scmp.eq.s32.totalorder %s135, 0
    %s138 = sadd.s32 %s137, 1
    %s139 = scalar_select %p136, %s137, %s138
    %p142 = pneg %p136
    %p143 = scmp.eq.s32.totalorder %s12, 1
    %p144 = por %p142, %p143
    %p145 = scmp.ne.s32.totalorder %s137, %s140
    %p146 = scmp.eq.s32.totalorder %s12, 0
    %p147 = por %p145, %p146
    %p148 = scmp.ne.s32.totalorder %s137, %s140
    %p149 = scmp.eq.s32.totalorder %s17, 1
    %p150 = por %p148, %p149
    %p151 = scmp.ne.s32.totalorder %s140, %s141
    %p152 = scmp.eq.s32.totalorder %s17, 0
    %p153 = por %p151, %p152
    %p154 = scmp.ne.s32.totalorder %s140, %s141
    %p155 = scmp.eq.s32.totalorder %s18, 1
    %p156 = por %p154, %p155
    %p158 = scmp.ne.s32.totalorder %s141, %s157
    %p159 = scmp.eq.s32.totalorder %s18, 0
    %p160 = por %p158, %p159
    %p161 = scmp.le.s32.totalorder 1, %s12
    %p162 = scmp.lt.s32.totalorder %s12, 3
    %p163 = pnand %p161, %p162
    %p164 = pneg %p163
    // Predicated region
    $region9: #{bottleneck_forward.6} parent=5 // pred_check
      _
    $region10: #{bottleneck_forward.6} parent=5 // pred_check_branch
      %166 = sbr.rel (%p163) target = $region12
    $region11: #{bottleneck_forward.6} parent=5 // pred_region
      %s167 = ssub.s32 %s12, 1
      // Predicated region
      $region13: #{bottleneck_forward.6} parent=11 // pred_check
        %p168 = pneg %p59
      $region14: #{bottleneck_forward.6} parent=11 // pred_check_branch
        %170 = sbr.rel (%p168) target = $region16
      $region15: #{bottleneck_forward.6} parent=11 // pred_region
        _
      $region16: #{bottleneck_forward.6} parent=11 // pred_fallthru
        _
      // Predicated region
      $region17: #{bottleneck_forward.6} parent=11 // pred_check
        %p171 = pneg %p80
      $region18: #{bottleneck_forward.6} parent=11 // pred_check_branch
        %173 = sbr.rel (%p171) target = $region20
      $region19: #{bottleneck_forward.6} parent=11 // pred_region
        _
      $region20: #{bottleneck_forward.6} parent=11 // pred_fallthru
        _
      // Predicated region
      $region21: #{bottleneck_forward.6} parent=11 // pred_check
        %p174 = pneg %p101
      $region22: #{bottleneck_forward.6} parent=11 // pred_check_branch
        %176 = sbr.rel (%p174) target = $region24
      $region23: #{bottleneck_forward.6} parent=11 // pred_region
        _
      $region24: #{bottleneck_forward.6} parent=11 // pred_fallthru
        _
    $region12: #{bottleneck_forward.6} parent=5 // pred_fallthru
      _
    %p177 = scmp.lt.s32.totalorder %s12, 2
    // Predicated region
    $region25: #{bottleneck_forward.6} parent=5 // pred_check
      %p178 = pneg %p177
    $region26: #{bottleneck_forward.6} parent=5 // pred_check_branch
      %180 = sbr.rel (%p178) target = $region28
    $region27: #{bottleneck_forward.6} parent=5 // pred_region
      // Predicated region
      $region29: #{bottleneck_forward.6} parent=27 // pred_check
        %p181 = pneg %p32
      $region30: #{bottleneck_forward.6} parent=27 // pred_check_branch
        %183 = sbr.rel (%p181) target = $region32
      $region31: #{bottleneck_forward.6} parent=27 // pred_region
        %s184 = smul.u32 32, %s12
        %p185 = scmp.lt.s32.totalorder %s184, 63
        %s186 = scalar_select %p185, %s184, 63
        %s187 = smul.addr %s186, 8
        %s188 = scalar_lea.vmem %s0, %s187
        %s189 = smul.u32 32, %s12
      $region32: #{bottleneck_forward.6} parent=27 // pred_fallthru
        _
    $region28: #{bottleneck_forward.6} parent=5 // pred_fallthru
      _
    %p190 = scmp.le.s32.totalorder 1, %s12
    %p191 = scmp.lt.s32.totalorder %s12, 3
    %p192 = pnand %p190, %p191
    %p193 = pneg %p192
    // Predicated region
    $region33: #{bottleneck_forward.6} parent=5 // pred_check
      _
    $region34: #{bottleneck_forward.6} parent=5 // pred_check_branch
      %195 = sbr.rel (%p192) target = $region36
    $region35: #{bottleneck_forward.6} parent=5 // pred_region
      %s196 = ssub.s32 %s12, 1
      %s197 = smul.u32 32, %s17
      %p198 = scmp.lt.s32.totalorder %s197, 63
      %s199 = scalar_select %p198, %s197, 63
      %s200 = smul.addr %s199, 8
      %s201 = scalar_lea.vmem %s0, %s200
      %p202 = pneg %p38
      %p203 = pneg %p35
      %p204 = pneg %p59
      %p205 = pneg %p56
      %p206 = pneg %p80
      %p207 = pneg %p77
      %p208 = pneg %p101
      %p209 = pneg %p98
      %p210 = pneg %p127
      %p211 = pneg %p124
      %s212 = smul.u32 32, %s17
      %p213 = scmp.lt.s32.totalorder %s212, 63
      %s214 = scalar_select %p213, %s212, 63
      %s215 = smul.addr %s214, 8
      %s216 = scalar_lea.vmem %s4, %s215
      %p217 = pneg %p153
      %p218 = pneg %p150
      %p219 = scmp.lt.s32.totalorder %s17, 1
      %s220 = scalar_select %p219, %s17, 1
      %s221 = smul.addr %s220, 2
      %s222 = scalar_lea.vmem %s5, %s221
      %s223 = smul.u32 32, %s17
      %p224 = scmp.lt.s32.totalorder %s223, 63
      %s225 = scalar_select %p224, %s223, 63
      %s226 = smul.addr %s225, 8
      %s227 = scalar_lea.vmem %s0, %s226
      %s228 = smul.u32 32, %s17
      %s229 = smul.u32 32, %s17
      %p230 = scmp.lt.s32.totalorder %s229, 63
      %s231 = scalar_select %p230, %s229, 63
      %s232 = smul.addr %s231, 8
      %s233 = scalar_lea.vmem %s4, %s232
      %s234 = smul.u32 32, %s17
      %p235 = scmp.lt.s32.totalorder %s17, 1
      %s236 = scalar_select %p235, %s17, 1
      %s237 = smul.addr %s236, 2
      %s238 = scalar_lea.vmem %s5, %s237
      %v239 = vld [vmem:[%s227] sm:$0xff]
      %v240 = vld [vmem:[%s227 + $0x8] sm:$0xff]
      %v241 = vld [vmem:[%s227 + $0x10] sm:$0xff]
      %v242 = vld [vmem:[%s227 + $0x18] sm:$0xff]
      %v243 = vld [vmem:[%s227 + $0x20] sm:$0xff]
      %v244 = vld [vmem:[%s227 + $0x28] sm:$0xff]
      %v245 = vld [vmem:[%s227 + $0x30] sm:$0xff]
      %v246 = vld [vmem:[%s227 + $0x38] sm:$0xff]
      %v247 = vld [vmem:[%s227 + $0x40] sm:$0xff]
      %v248 = vld [vmem:[%s227 + $0x48] sm:$0xff]
      %v249 = vld [vmem:[%s227 + $0x50] sm:$0xff]
      %v250 = vld [vmem:[%s227 + $0x58] sm:$0xff]
      %v251 = vld [vmem:[%s227 + $0x60] sm:$0xff]
      %v252 = vld [vmem:[%s227 + $0x68] sm:$0xff]
      %v253 = vld [vmem:[%s227 + $0x70] sm:$0xff]
      %v254 = vld [vmem:[%s227 + $0x78] sm:$0xff]
      %v255 = vld [vmem:[%s227 + $0x80] sm:$0xff]
      %v256 = vld [vmem:[%s227 + $0x88] sm:$0xff]
      %v257 = vld [vmem:[%s227 + $0x90] sm:$0xff]
      %v258 = vld [vmem:[%s227 + $0x98] sm:$0xff]
      %v259 = vld [vmem:[%s227 + $0xa0] sm:$0xff]
      %v260 = vld [vmem:[%s227 + $0xa8] sm:$0xff]
      %v261 = vld [vmem:[%s227 + $0xb0] sm:$0xff]
      %v262 = vld [vmem:[%s227 + $0xb8] sm:$0xff]
      %v263 = vld [vmem:[%s227 + $0xc0] sm:$0xff]
      %v264 = vld [vmem:[%s227 + $0xc8] sm:$0xff]
      %v265 = vld [vmem:[%s227 + $0xd0] sm:$0xff]
      %v266 = vld [vmem:[%s227 + $0xd8] sm:$0xff]
      %v267 = vld [vmem:[%s227 + $0xe0] sm:$0xff]
      %v268 = vld [vmem:[%s227 + $0xe8] sm:$0xff]
      %v269 = vld [vmem:[%s227 + $0xf0] sm:$0xff]
      %v270 = vld [vmem:[%s227 + $0xf8] sm:$0xff]
      %v271 = vld [vmem:[%s1] sm:$0x1]
      %v273 = vperm.slane %v271, 0
      %v275 = vmul.f32 %v239, %v273
      %v276 = vmul.f32 %v240, %v273
      %v277 = vmul.f32 %v241, %v273
      %v278 = vmul.f32 %v242, %v273
      %v279 = vmul.f32 %v243, %v273
      %v280 = vmul.f32 %v244, %v273
      %v281 = vmul.f32 %v245, %v273
      %v282 = vmul.f32 %v246, %v273
      %v283 = vmul.f32 %v247, %v273
      %v284 = vmul.f32 %v248, %v273
      %v285 = vmul.f32 %v249, %v273
      %v286 = vmul.f32 %v250, %v273
      %v287 = vmul.f32 %v251, %v273
      %v288 = vmul.f32 %v252, %v273
      %v289 = vmul.f32 %v253, %v273
      %v290 = vmul.f32 %v254, %v273
      %v291 = vmul.f32 %v255, %v273
      %v292 = vmul.f32 %v256, %v273
      %v293 = vmul.f32 %v257, %v273
      %v294 = vmul.f32 %v258, %v273
      %v295 = vmul.f32 %v259, %v273
      %v296 = vmul.f32 %v260, %v273
      %v297 = vmul.f32 %v261, %v273
      %v298 = vmul.f32 %v262, %v273
      %v299 = vmul.f32 %v263, %v273
      %v300 = vmul.f32 %v264, %v273
      %v301 = vmul.f32 %v265, %v273
      %v302 = vmul.f32 %v266, %v273
      %v303 = vmul.f32 %v267, %v273
      %v304 = vmul.f32 %v268, %v273
      %v305 = vmul.f32 %v269, %v273
      %v306 = vmul.f32 %v270, %v273
      %v307 = vld [vmem:[%s2] sm:$0x1]
      %v309 = vperm.slane %v307, 0
      %v311 = vadd.f32 %v275, %v309
      %v312 = vadd.f32 %v276, %v309
      %v313 = vadd.f32 %v277, %v309
      %v314 = vadd.f32 %v278, %v309
      %v315 = vadd.f32 %v279, %v309
      %v316 = vadd.f32 %v280, %v309
      %v317 = vadd.f32 %v281, %v309
      %v318 = vadd.f32 %v282, %v309
      %v319 = vadd.f32 %v283, %v309
      %v320 = vadd.f32 %v284, %v309
      %v321 = vadd.f32 %v285, %v309
      %v322 = vadd.f32 %v286, %v309
      %v323 = vadd.f32 %v287, %v309
      %v324 = vadd.f32 %v288, %v309
      %v325 = vadd.f32 %v289, %v309
      %v326 = vadd.f32 %v290, %v309
      %v327 = vadd.f32 %v291, %v309
      %v328 = vadd.f32 %v292, %v309
      %v329 = vadd.f32 %v293, %v309
      %v330 = vadd.f32 %v294, %v309
      %v331 = vadd.f32 %v295, %v309
      %v332 = vadd.f32 %v296, %v309
      %v333 = vadd.f32 %v297, %v309
      %v334 = vadd.f32 %v298, %v309
      %v335 = vadd.f32 %v299, %v309
      %v336 = vadd.f32 %v300, %v309
      %v337 = vadd.f32 %v301, %v309
      %v338 = vadd.f32 %v302, %v309
      %v339 = vadd.f32 %v303, %v309
      %v340 = vadd.f32 %v304, %v309
      %v341 = vadd.f32 %v305, %v309
      %v342 = vadd.f32 %v306, %v309
      %v343 = vmax.f32 %v311, 0.0
      %v344 = vmax.f32 %v312, 0.0
      %v345 = vmax.f32 %v313, 0.0
      %v346 = vmax.f32 %v314, 0.0
      %v347 = vmax.f32 %v315, 0.0
      %v348 = vmax.f32 %v316, 0.0
      %v349 = vmax.f32 %v317, 0.0
      %v350 = vmax.f32 %v318, 0.0
      %v351 = vmax.f32 %v319, 0.0
      %v352 = vmax.f32 %v320, 0.0
      %v353 = vmax.f32 %v321, 0.0
      %v354 = vmax.f32 %v322, 0.0
      %v355 = vmax.f32 %v323, 0.0
      %v356 = vmax.f32 %v324, 0.0
      %v357 = vmax.f32 %v325, 0.0
      %v358 = vmax.f32 %v326, 0.0
      %v359 = vmax.f32 %v327, 0.0
      %v360 = vmax.f32 %v328, 0.0
      %v361 = vmax.f32 %v329, 0.0
      %v362 = vmax.f32 %v330, 0.0
      %v363 = vmax.f32 %v331, 0.0
      %v364 = vmax.f32 %v332, 0.0
      %v365 = vmax.f32 %v333, 0.0
      %v366 = vmax.f32 %v334, 0.0
      %v367 = vmax.f32 %v335, 0.0
      %v368 = vmax.f32 %v336, 0.0
      %v369 = vmax.f32 %v337, 0.0
      %v370 = vmax.f32 %v338, 0.0
      %v371 = vmax.f32 %v339, 0.0
      %v372 = vmax.f32 %v340, 0.0
      %v373 = vmax.f32 %v341, 0.0
      %v374 = vmax.f32 %v342, 0.0
      %v375 = vpack.c.bf16 %v344, %v343
      %v376 = vpack.c.bf16 %v346, %v345
      %v377 = vpack.c.bf16 %v348, %v347
      %v378 = vpack.c.bf16 %v350, %v349
      %v379 = vpack.c.bf16 %v352, %v351
      %v380 = vpack.c.bf16 %v354, %v353
      %v381 = vpack.c.bf16 %v356, %v355
      %v382 = vpack.c.bf16 %v358, %v357
      %v383 = vpack.c.bf16 %v360, %v359
      %v384 = vpack.c.bf16 %v362, %v361
      %v385 = vpack.c.bf16 %v364, %v363
      %v386 = vpack.c.bf16 %v366, %v365
      %v387 = vpack.c.bf16 %v368, %v367
      %v388 = vpack.c.bf16 %v370, %v369
      %v389 = vpack.c.bf16 %v372, %v371
      %v390 = vpack.c.bf16 %v374, %v373
      %v391 = vld [vmem:[%s3] sm:$0xf]
      %v392 = vld [vmem:[%s3 + $0x4] sm:$0xf]
      %v393 = vld [vmem:[%s3 + $0x8] sm:$0xf]
      %v394 = vld [vmem:[%s3 + $0xc] sm:$0xf]
      %v395 = vld [vmem:[%s3 + $0x10] sm:$0xf]
      %v396 = vld [vmem:[%s3 + $0x14] sm:$0xf]
      %v397 = vld [vmem:[%s3 + $0x18] sm:$0xf]
      %v398 = vld [vmem:[%s3 + $0x1c] sm:$0xf]
      %v399 = vld [vmem:[%s3 + $0x20] sm:$0xf]
      %v400 = vld [vmem:[%s3 + $0x24] sm:$0xf]
      %v401 = vld [vmem:[%s3 + $0x28] sm:$0xf]
      %v402 = vld [vmem:[%s3 + $0x2c] sm:$0xf]
      %v403 = vld [vmem:[%s3 + $0x30] sm:$0xf]
      %v404 = vld [vmem:[%s3 + $0x34] sm:$0xf]
      %v405 = vld [vmem:[%s3 + $0x38] sm:$0xf]
      %v406 = vld [vmem:[%s3 + $0x3c] sm:$0xf]
      %v423 = vunpack.c.l.b16 %v391
      %v424 = vunpack.c.l.b16 %v392
      %v425 = vunpack.c.l.b16 %v393
      %v426 = vunpack.c.l.b16 %v394
      %v427 = vunpack.c.l.b16 %v395
      %v428 = vunpack.c.l.b16 %v396
      %v429 = vunpack.c.l.b16 %v397
      %v430 = vunpack.c.l.b16 %v398
      %v431 = vunpack.c.l.b16 %v399
      %v432 = vunpack.c.l.b16 %v400
      %v433 = vunpack.c.l.b16 %v401
      %v434 = vunpack.c.l.b16 %v402
      %v435 = vunpack.c.l.b16 %v403
      %v436 = vunpack.c.l.b16 %v404
      %v437 = vunpack.c.l.b16 %v405
      %v438 = vunpack.c.l.b16 %v406
      %v439 = vpack.c.b16 %v424, %v423
      %v440 = vpack.c.b16 %v426, %v425
      %v441 = vpack.c.b16 %v428, %v427
      %v442 = vpack.c.b16 %v430, %v429
      %v443 = vpack.c.b16 %v432, %v431
      %v444 = vpack.c.b16 %v434, %v433
      %v445 = vpack.c.b16 %v436, %v435
      %v446 = vpack.c.b16 %v438, %v437
      %455 = vmatpush.bf16.msra.mxu0 %v446
      %456 = vmatpush.bf16.msra.mxu0 %v445
      %457 = vmatpush.bf16.msra.mxu0 %v444
      %458 = vmatpush.bf16.msra.mxu0 %v443
      %459 = vmatpush.bf16.msra.mxu0 %v442
      %460 = vmatpush.bf16.msra.mxu0 %v441
      %461 = vmatpush.bf16.msra.mxu0 %v440
      %462 = vmatpush.bf16.msra.mxu0 %v439
      %463 = vmatmul.bf16.gmra.mxu0 %v375
      %v464 = vpop.f32.mrf.mxu0
      %v465 = vadd.f32 0.0, %v464
      %v466 = vpop.f32.mrf.mxu0
      %v467 = vadd.f32 0.0, %v466
      %468 = vmatmul.bf16.gmra.mxu0 %v376
      %v469 = vpop.f32.mrf.mxu0
      %v470 = vadd.f32 0.0, %v469
      %v471 = vpop.f32.mrf.mxu0
      %v472 = vadd.f32 0.0, %v471
      %473 = vmatmul.bf16.gmra.mxu0 %v377
      %v474 = vpop.f32.mrf.mxu0
      %v475 = vadd.f32 0.0, %v474
      %v476 = vpop.f32.mrf.mxu0
      %v477 = vadd.f32 0.0, %v476
      %478 = vmatmul.bf16.gmra.mxu0 %v378
      %v479 = vpop.f32.mrf.mxu0
      %v480 = vadd.f32 0.0, %v479
      %v481 = vpop.f32.mrf.mxu0
      %v482 = vadd.f32 0.0, %v481
      %483 = vmatmul.bf16.gmra.mxu0 %v379
      %v484 = vpop.f32.mrf.mxu0
      %v485 = vadd.f32 0.0, %v484
      %v486 = vpop.f32.mrf.mxu0
      %v487 = vadd.f32 0.0, %v486
      %488 = vmatmul.bf16.gmra.mxu0 %v380
      %v489 = vpop.f32.mrf.mxu0
      %v490 = vadd.f32 0.0, %v489
      %v491 = vpop.f32.mrf.mxu0
      %v492 = vadd.f32 0.0, %v491
      %493 = vmatmul.bf16.gmra.mxu0 %v381
      %v494 = vpop.f32.mrf.mxu0
      %v495 = vadd.f32 0.0, %v494
      %v496 = vpop.f32.mrf.mxu0
      %v497 = vadd.f32 0.0, %v496
      %498 = vmatmul.bf16.gmra.mxu0 %v382
      %v499 = vpop.f32.mrf.mxu0
      %v500 = vadd.f32 0.0, %v499
      %v501 = vpop.f32.mrf.mxu0
      %v502 = vadd.f32 0.0, %v501
      %503 = vmatmul.bf16.gmra.mxu0 %v383
      %v504 = vpop.f32.mrf.mxu0
      %v505 = vadd.f32 0.0, %v504
      %v506 = vpop.f32.mrf.mxu0
      %v507 = vadd.f32 0.0, %v506
      %508 = vmatmul.bf16.gmra.mxu0 %v384
      %v509 = vpop.f32.mrf.mxu0
      %v510 = vadd.f32 0.0, %v509
      %v511 = vpop.f32.mrf.mxu0
      %v512 = vadd.f32 0.0, %v511
      %513 = vmatmul.bf16.gmra.mxu0 %v385
      %v514 = vpop.f32.mrf.mxu0
      %v515 = vadd.f32 0.0, %v514
      %v516 = vpop.f32.mrf.mxu0
      %v517 = vadd.f32 0.0, %v516
      %518 = vmatmul.bf16.gmra.mxu0 %v386
      %v519 = vpop.f32.mrf.mxu0
      %v520 = vadd.f32 0.0, %v519
      %v521 = vpop.f32.mrf.mxu0
      %v522 = vadd.f32 0.0, %v521
      %523 = vmatmul.bf16.gmra.mxu0 %v387
      %v524 = vpop.f32.mrf.mxu0
      %v525 = vadd.f32 0.0, %v524
      %v526 = vpop.f32.mrf.mxu0
      %v527 = vadd.f32 0.0, %v526
      %528 = vmatmul.bf16.gmra.mxu0 %v388
      %v529 = vpop.f32.mrf.mxu0
      %v530 = vadd.f32 0.0, %v529
      %v531 = vpop.f32.mrf.mxu0
      %v532 = vadd.f32 0.0, %v531
      %533 = vmatmul.bf16.gmra.mxu0 %v389
      %v534 = vpop.f32.mrf.mxu0
      %v535 = vadd.f32 0.0, %v534
      %v536 = vpop.f32.mrf.mxu0
      %v537 = vadd.f32 0.0, %v536
      %538 = vmatmul.bf16.gmra.mxu0 %v390
      %v539 = vpop.f32.mrf.mxu0
      %v540 = vadd.f32 0.0, %v539
      %v541 = vpop.f32.mrf.mxu0
      %v542 = vadd.f32 0.0, %v541
      %543 = vdwg.mxu0
      %544 = vst [vmem:[%s233] sm:$0xff] %v465
      %545 = vst [vmem:[%s233 + $0x8] sm:$0xff] %v467
      %546 = vst [vmem:[%s233 + $0x10] sm:$0xff] %v470
      %547 = vst [vmem:[%s233 + $0x18] sm:$0xff] %v472
      %548 = vst [vmem:[%s233 + $0x20] sm:$0xff] %v475
      %549 = vst [vmem:[%s233 + $0x28] sm:$0xff] %v477
      %550 = vst [vmem:[%s233 + $0x30] sm:$0xff] %v480
      %551 = vst [vmem:[%s233 + $0x38] sm:$0xff] %v482
      %552 = vst [vmem:[%s233 + $0x40] sm:$0xff] %v485
      %553 = vst [vmem:[%s233 + $0x48] sm:$0xff] %v487
      %554 = vst [vmem:[%s233 + $0x50] sm:$0xff] %v490
      %555 = vst [vmem:[%s233 + $0x58] sm:$0xff] %v492
      %556 = vst [vmem:[%s233 + $0x60] sm:$0xff] %v495
      %557 = vst [vmem:[%s233 + $0x68] sm:$0xff] %v497
      %558 = vst [vmem:[%s233 + $0x70] sm:$0xff] %v500
      %559 = vst [vmem:[%s233 + $0x78] sm:$0xff] %v502
      %560 = vst [vmem:[%s233 + $0x80] sm:$0xff] %v505
      %561 = vst [vmem:[%s233 + $0x88] sm:$0xff] %v507
      %562 = vst [vmem:[%s233 + $0x90] sm:$0xff] %v510
      %563 = vst [vmem:[%s233 + $0x98] sm:$0xff] %v512
      %564 = vst [vmem:[%s233 + $0xa0] sm:$0xff] %v515
      %565 = vst [vmem:[%s233 + $0xa8] sm:$0xff] %v517
      %566 = vst [vmem:[%s233 + $0xb0] sm:$0xff] %v520
      %567 = vst [vmem:[%s233 + $0xb8] sm:$0xff] %v522
      %568 = vst [vmem:[%s233 + $0xc0] sm:$0xff] %v525
      %569 = vst [vmem:[%s233 + $0xc8] sm:$0xff] %v527
      %570 = vst [vmem:[%s233 + $0xd0] sm:$0xff] %v530
      %571 = vst [vmem:[%s233 + $0xd8] sm:$0xff] %v532
      %572 = vst [vmem:[%s233 + $0xe0] sm:$0xff] %v535
      %573 = vst [vmem:[%s233 + $0xe8] sm:$0xff] %v537
      %574 = vst [vmem:[%s233 + $0xf0] sm:$0xff] %v540
      %575 = vst [vmem:[%s233 + $0xf8] sm:$0xff] %v542
      %v576 = vadd.f32 %v465, %v467
      %v577 = vadd.f32 %v576, %v470
      %v578 = vadd.f32 %v577, %v472
      %v579 = vadd.f32 %v578, %v475
      %v580 = vadd.f32 %v579, %v477
      %v581 = vadd.f32 %v580, %v480
      %v582 = vadd.f32 %v581, %v482
      %v583 = vadd.f32 %v582, %v485
      %v584 = vadd.f32 %v583, %v487
      %v585 = vadd.f32 %v584, %v490
      %v586 = vadd.f32 %v585, %v492
      %v587 = vadd.f32 %v586, %v495
      %v588 = vadd.f32 %v587, %v497
      %v589 = vadd.f32 %v588, %v500
      %v590 = vadd.f32 %v589, %v502
      %v591 = vadd.f32 %v590, %v505
      %v592 = vadd.f32 %v591, %v507
      %v593 = vadd.f32 %v592, %v510
      %v594 = vadd.f32 %v593, %v512
      %v595 = vadd.f32 %v594, %v515
      %v596 = vadd.f32 %v595, %v517
      %v597 = vadd.f32 %v596, %v520
      %v598 = vadd.f32 %v597, %v522
      %v599 = vadd.f32 %v598, %v525
      %v600 = vadd.f32 %v599, %v527
      %v601 = vadd.f32 %v600, %v530
      %v602 = vadd.f32 %v601, %v532
      %v603 = vadd.f32 %v602, %v535
      %v604 = vadd.f32 %v603, %v537
      %v605 = vadd.f32 %v604, %v540
      %v606 = vadd.f32 %v605, %v542
      %v607 = vrot.slane %v606, 4
      %v608 = vadd.f32 %v606, %v607
      %v609 = vrot.slane %v608, 2
      %v610 = vadd.f32 %v608, %v609
      %v611 = vrot.slane %v610, 1
      %v612 = vadd.f32 %v610, %v611
      %v613 = vmul.f32 %v465, %v465
      %v614 = vmul.f32 %v467, %v467
      %v615 = vmul.f32 %v470, %v470
      %v616 = vmul.f32 %v472, %v472
      %v617 = vmul.f32 %v475, %v475
      %v618 = vmul.f32 %v477, %v477
      %v619 = vmul.f32 %v480, %v480
      %v620 = vmul.f32 %v482, %v482
      %v621 = vmul.f32 %v485, %v485
      %v622 = vmul.f32 %v487, %v487
      %v623 = vmul.f32 %v490, %v490
      %v624 = vmul.f32 %v492, %v492
      %v625 = vmul.f32 %v495, %v495
      %v626 = vmul.f32 %v497, %v497
      %v627 = vmul.f32 %v500, %v500
      %v628 = vmul.f32 %v502, %v502
      %v629 = vmul.f32 %v505, %v505
      %v630 = vmul.f32 %v507, %v507
      %v631 = vmul.f32 %v510, %v510
      %v632 = vmul.f32 %v512, %v512
      %v633 = vmul.f32 %v515, %v515
      %v634 = vmul.f32 %v517, %v517
      %v635 = vmul.f32 %v520, %v520
      %v636 = vmul.f32 %v522, %v522
      %v637 = vmul.f32 %v525, %v525
      %v638 = vmul.f32 %v527, %v527
      %v639 = vmul.f32 %v530, %v530
      %v640 = vmul.f32 %v532, %v532
      %v641 = vmul.f32 %v535, %v535
      %v642 = vmul.f32 %v537, %v537
      %v643 = vmul.f32 %v540, %v540
      %v644 = vmul.f32 %v542, %v542
      %v645 = vadd.f32 %v613, %v614
      %v646 = vadd.f32 %v645, %v615
      %v647 = vadd.f32 %v646, %v616
      %v648 = vadd.f32 %v647, %v617
      %v649 = vadd.f32 %v648, %v618
      %v650 = vadd.f32 %v649, %v619
      %v651 = vadd.f32 %v650, %v620
      %v652 = vadd.f32 %v651, %v621
      %v653 = vadd.f32 %v652, %v622
      %v654 = vadd.f32 %v653, %v623
      %v655 = vadd.f32 %v654, %v624
      %v656 = vadd.f32 %v655, %v625
      %v657 = vadd.f32 %v656, %v626
      %v658 = vadd.f32 %v657, %v627
      %v659 = vadd.f32 %v658, %v628
      %v660 = vadd.f32 %v659, %v629
      %v661 = vadd.f32 %v660, %v630
      %v662 = vadd.f32 %v661, %v631
      %v663 = vadd.f32 %v662, %v632
      %v664 = vadd.f32 %v663, %v633
      %v665 = vadd.f32 %v664, %v634
      %v666 = vadd.f32 %v665, %v635
      %v667 = vadd.f32 %v666, %v636
      %v668 = vadd.f32 %v667, %v637
      %v669 = vadd.f32 %v668, %v638
      %v670 = vadd.f32 %v669, %v639
      %v671 = vadd.f32 %v670, %v640
      %v672 = vadd.f32 %v671, %v641
      %v673 = vadd.f32 %v672, %v642
      %v674 = vadd.f32 %v673, %v643
      %v675 = vadd.f32 %v674, %v644
      %v676 = vrot.slane %v675, 4
      %v677 = vadd.f32 %v675, %v676
      %v678 = vrot.slane %v677, 2
      %v679 = vadd.f32 %v677, %v678
      %v680 = vrot.slane %v679, 1
      %v681 = vadd.f32 %v679, %v680
      %vm682 = vcmask 1040384
      %v683 = vsel %vm682, %v612, %v681
      %684 = vst [vmem:[%s238] sm:$0x3] %v683
      %s685 = smul.u32 32, %s17
      %p686 = scmp.lt.s32.totalorder %s685, 63
      %s687 = scalar_select %p686, %s685, 63
      %s688 = smul.addr %s687, 8
      %s689 = scalar_lea.vmem %s4, %s688
      %p690 = scmp.lt.s32.totalorder %s17, 1
      %s691 = scalar_select %p690, %s17, 1
      %s692 = smul.addr %s691, 2
      %s693 = scalar_lea.vmem %s5, %s692
      // Predicated region
      $region37: #{bottleneck_forward.6} parent=35 // pred_check
        %p694 = pneg %p124
      $region38: #{bottleneck_forward.6} parent=35 // pred_check_branch
        %696 = sbr.rel (%p694) target = $region40
      $region39: #{bottleneck_forward.6} parent=35 // pred_region
        %s697 = smul.u32 32, %s17
      $region40: #{bottleneck_forward.6} parent=35 // pred_fallthru
        _
      // Predicated region
      $region41: #{bottleneck_forward.6} parent=35 // pred_check
        %p698 = pneg %p150
      $region42: #{bottleneck_forward.6} parent=35 // pred_check_branch
        %700 = sbr.rel (%p698) target = $region44
      $region43: #{bottleneck_forward.6} parent=35 // pred_region
        _
      $region44: #{bottleneck_forward.6} parent=35 // pred_fallthru
        _
    $region36: #{bottleneck_forward.6} parent=5 // pred_fallthru
      _
    %p701 = scmp.le.s32.totalorder 2, %s12
    // Predicated region
    $region45: #{bottleneck_forward.6} parent=5 // pred_check
      %p702 = pneg %p701
    $region46: #{bottleneck_forward.6} parent=5 // pred_check_branch
      %704 = sbr.rel (%p702) target = $region48
    $region47: #{bottleneck_forward.6} parent=5 // pred_region
      %s705 = ssub.s32 %s12, 2
      // Predicated region
      $region49: #{bottleneck_forward.6} parent=47 // pred_check
        %p706 = pneg %p130
      $region50: #{bottleneck_forward.6} parent=47 // pred_check_branch
        %708 = sbr.rel (%p706) target = $region52
      $region51: #{bottleneck_forward.6} parent=47 // pred_region
        %s709 = smul.u32 32, %s18
        %p710 = scmp.lt.s32.totalorder %s709, 63
        %s711 = scalar_select %p710, %s709, 63
        %s712 = smul.addr %s711, 8
        %s713 = scalar_lea.vmem %s4, %s712
      $region52: #{bottleneck_forward.6} parent=47 // pred_fallthru
        _
      // Predicated region
      $region53: #{bottleneck_forward.6} parent=47 // pred_check
        %p714 = pneg %p156
      $region54: #{bottleneck_forward.6} parent=47 // pred_check_branch
        %716 = sbr.rel (%p714) target = $region56
      $region55: #{bottleneck_forward.6} parent=47 // pred_region
        %p717 = scmp.lt.s32.totalorder %s18, 1
        %s718 = scalar_select %p717, %s18, 1
        %s719 = smul.addr %s718, 2
        %s720 = scalar_lea.vmem %s5, %s719
      $region56: #{bottleneck_forward.6} parent=47 // pred_fallthru
        _
    $region48: #{bottleneck_forward.6} parent=5 // pred_fallthru
      _
  $region6: #{bottleneck_forward.6} parent=0 // loop_footer
    %s16 = sadd.s32 1, %s12
  $region7: #{bottleneck_forward.6} parent=0 // loop_footer_branch
    %11 = sbr.rel target = $region3
  $region8: #{bottleneck_forward.6} parent=0 // loop_exit
    _

// kernel: bottleneck_forward.5
$region0: #{bottleneck_forward.5}
  #allocation0 [shape = 'u32[]', space=smem, size = 0x4, offset = 0x4, fixed_abs, tag = 'smem constant byte address 0x4 - core index']
  #allocation1 [shape = 'u32[72,128]{1,0:T(1,128)}', space=vmem, size = 0x9000, scoped, tag = 'internal scratch']
  #allocation2 [shape = 'f32[18,18,128]{2,1,0:T(8,128)}', space=vmem, size = 0x36000, scoped, tag = 'scratch operand']
  #allocation3 [shape = 'f32[256,128]{1,0:T(8,128)}', space=vmem, size = 0x20000, scoped, tag = 'scratch operand']
  %s0 = inlined_call_operand.vmem [shape: f32[2,16,16,128], index: 0, kind: input, shape index: {}]
  %s1 = inlined_call_operand.vmem [shape: f32[1,128], index: 1, kind: input, shape index: {}]
  %s2 = inlined_call_operand.vmem [shape: f32[1,128], index: 2, kind: input, shape index: {}]
  %s3 = inlined_call_operand.vmem [shape: bf16[9,128,128], index: 3, kind: input, shape index: {}]
  %s4 = inlined_call_operand.vmem [shape: f32[2,16,16,128], index: 4, kind: output, shape index: {0}]
  %s5 = inlined_call_operand.vmem [shape: f32[2,2,128], index: 5, kind: output, shape index: {1}]
  %6 = xla_tuple %s4, %s5
  %s7 = sld [smem:[#allocation0]]
  $region57: #{bottleneck_forward.5} parent=0
    _
  %s9 = ssub.s32 1, %s7
  %s10 = scalar_select 0, %s9, %s7
  loop: start=0, step=1, limit=4
  $region2: #{bottleneck_forward.5} parent=0 // loop_pre_header
    _
  $region3: #{bottleneck_forward.5} parent=0 // loop_header
    %s12 = sphi 0, %s16
    %p13 = scmp.ge.s32.totalorder %s12, 4
    %s22 = sphi 0, %s24
    %s25 = sphi 0, %s22
    %s26 = sphi 0, %s25
    %s42 = sphi 0, %s26
    %s46 = sphi 0, %s46
    %s48 = sphi 0, %s46
    %s49 = sphi 0, %s48
    %s63 = sphi 0, %s49
    %s67 = sphi 0, %s67
    %s69 = sphi 0, %s67
    %s70 = sphi 0, %s69
    %s84 = sphi 0, %s70
    %s88 = sphi 0, %s88
    %s90 = sphi 0, %s88
    %s91 = sphi 0, %s90
    %s105 = sphi 0, %s91
    %s111 = sphi 0, %s113
    %s114 = sphi 0, %s111
    %s115 = sphi 0, %s114
    %s131 = sphi 0, %s115
    %s137 = sphi 0, %s139
    %s140 = sphi 0, %s137
    %s141 = sphi 0, %s140
    %s157 = sphi 0, %s141
  $region4: #{bottleneck_forward.5} parent=0 // loop_header_branch
    %15 = sbr.rel (%p13) target = $region8
  $region5: #{bottleneck_forward.5} parent=0 // loop_body
    %s17 = ssub.s32 %s12, 1
    %s18 = ssub.s32 %s12, 2
    %s19 = sadd.s32 %s12, 1
    %s20 = ssub.s32 %s12, %s19
    %p21 = scmp.eq.s32.totalorder %s20, 0
    %s23 = sadd.s32 %s22, 1
    %s24 = scalar_select %p21, %s22, %s23
    %p27 = pneg %p21
    %p28 = scmp.eq.s32.totalorder %s12, 1
    %p29 = por %p27, %p28
    %p30 = scmp.ne.s32.totalorder %s22, %s25
    %p31 = scmp.eq.s32.totalorder %s12, 0
    %p32 = por %p30, %p31
    %p33 = scmp.ne.s32.totalorder %s22, %s25
    %p34 = scmp.eq.s32.totalorder %s17, 1
    %p35 = por %p33, %p34
    %p36 = scmp.ne.s32.totalorder %s25, %s26
    %p37 = scmp.eq.s32.totalorder %s17, 0
    %p38 = por %p36, %p37
    %p39 = scmp.ne.s32.totalorder %s25, %s26
    %p40 = scmp.eq.s32.totalorder %s18, 1
    %p41 = por %p39, %p40
    %p43 = scmp.ne.s32.totalorder %s26, %s42
    %p44 = scmp.eq.s32.totalorder %s18, 0
    %p45 = por %p43, %p44
    %s47 = sadd.s32 %s46, 1
    %p50 = scmp.eq.s32.totalorder %s12, 1
    %p51 = scmp.ne.s32.totalorder %s46, %s48
    %p52 = scmp.eq.s32.totalorder %s12, 0
    %p53 = por %p51, %p52
    %p54 = scmp.ne.s32.totalorder %s46, %s48
    %p55 = scmp.eq.s32.totalorder %s17, 1
    %p56 = por %p54, %p55
    %p57 = scmp.ne.s32.totalorder %s48, %s49
    %p58 = scmp.eq.s32.totalorder %s17, 0
    %p59 = por %p57, %p58
    %p60 = scmp.ne.s32.totalorder %s48, %s49
    %p61 = scmp.eq.s32.totalorder %s18, 1
    %p62 = por %p60, %p61
    %p64 = scmp.ne.s32.totalorder %s49, %s63
    %p65 = scmp.eq.s32.totalorder %s18, 0
    %p66 = por %p64, %p65
    %s68 = sadd.s32 %s67, 1
    %p71 = scmp.eq.s32.totalorder %s12, 1
    %p72 = scmp.ne.s32.totalorder %s67, %s69
    %p73 = scmp.eq.s32.totalorder %s12, 0
    %p74 = por %p72, %p73
    %p75 = scmp.ne.s32.totalorder %s67, %s69
    %p76 = scmp.eq.s32.totalorder %s17, 1
    %p77 = por %p75, %p76
    %p78 = scmp.ne.s32.totalorder %s69, %s70
    %p79 = scmp.eq.s32.totalorder %s17, 0
    %p80 = por %p78, %p79
    %p81 = scmp.ne.s32.totalorder %s69, %s70
    %p82 = scmp.eq.s32.totalorder %s18, 1
    %p83 = por %p81, %p82
    %p85 = scmp.ne.s32.totalorder %s70, %s84
    %p86 = scmp.eq.s32.totalorder %s18, 0
    %p87 = por %p85, %p86
    %s89 = sadd.s32 %s88, 1
    %p92 = scmp.eq.s32.totalorder %s12, 1
    %p93 = scmp.ne.s32.totalorder %s88, %s90
    %p94 = scmp.eq.s32.totalorder %s12, 0
    %p95 = por %p93, %p94
    %p96 = scmp.ne.s32.totalorder %s88, %s90
    %p97 = scmp.eq.s32.totalorder %s17, 1
    %p98 = por %p96, %p97
    %p99 = scmp.ne.s32.totalorder %s90, %s91
    %p100 = scmp.eq.s32.totalorder %s17, 0
    %p101 = por %p99, %p100
    %p102 = scmp.ne.s32.totalorder %s90, %s91
    %p103 = scmp.eq.s32.totalorder %s18, 1
    %p104 = por %p102, %p103
    %p106 = scmp.ne.s32.totalorder %s91, %s105
    %p107 = scmp.eq.s32.totalorder %s18, 0
    %p108 = por %p106, %p107
    %s109 = ssub.s32 %s12, %s19
    %p110 = scmp.eq.s32.totalorder %s109, 0
    %s112 = sadd.s32 %s111, 1
    %s113 = scalar_select %p110, %s111, %s112
    %p116 = pneg %p110
    %p117 = scmp.eq.s32.totalorder %s12, 1
    %p118 = por %p116, %p117
    %p119 = scmp.ne.s32.totalorder %s111, %s114
    %p120 = scmp.eq.s32.totalorder %s12, 0
    %p121 = por %p119, %p120
    %p122 = scmp.ne.s32.totalorder %s111, %s114
    %p123 = scmp.eq.s32.totalorder %s17, 1
    %p124 = por %p122, %p123
    %p125 = scmp.ne.s32.totalorder %s114, %s115
    %p126 = scmp.eq.s32.totalorder %s17, 0
    %p127 = por %p125, %p126
    %p128 = scmp.ne.s32.totalorder %s114, %s115
    %p129 = scmp.eq.s32.totalorder %s18, 1
    %p130 = por %p128, %p129
    %p132 = scmp.ne.s32.totalorder %s115, %s131
    %p133 = scmp.eq.s32.totalorder %s18, 0
    %p134 = por %p132, %p133
    %s135 = ssub.s32 %s12, %s19
    %p136 = scmp.eq.s32.totalorder %s135, 0
    %s138 = sadd.s32 %s137, 1
    %s139 = scalar_select %p136, %s137, %s138
    %p142 = pneg %p136
    %p143 = scmp.eq.s32.totalorder %s12, 1
    %p144 = por %p142, %p143
    %p145 = scmp.ne.s32.totalorder %s137, %s140
    %p146 = scmp.eq.s32.totalorder %s12, 0
    %p147 = por %p145, %p146
    %p148 = scmp.ne.s32.totalorder %s137, %s140
    %p149 = scmp.eq.s32.totalorder %s17, 1
    %p150 = por %p148, %p149
    %p151 = scmp.ne.s32.totalorder %s140, %s141
    %p152 = scmp.eq.s32.totalorder %s17, 0
    %p153 = por %p151, %p152
    %p154 = scmp.ne.s32.totalorder %s140, %s141
    %p155 = scmp.eq.s32.totalorder %s18, 1
    %p156 = por %p154, %p155
    %p158 = scmp.ne.s32.totalorder %s141, %s157
    %p159 = scmp.eq.s32.totalorder %s18, 0
    %p160 = por %p158, %p159
    %p161 = scmp.le.s32.totalorder 1, %s12
    %p162 = scmp.lt.s32.totalorder %s12, 3
    %p163 = pnand %p161, %p162
    %p164 = pneg %p163
    // Predicated region
    $region9: #{bottleneck_forward.5} parent=5 // pred_check
      _
    $region10: #{bottleneck_forward.5} parent=5 // pred_check_branch
      %166 = sbr.rel (%p163) target = $region12
    $region11: #{bottleneck_forward.5} parent=5 // pred_region
      %s167 = ssub.s32 %s12, 1
      // Predicated region
      $region13: #{bottleneck_forward.5} parent=11 // pred_check
        %p168 = pneg %p59
      $region14: #{bottleneck_forward.5} parent=11 // pred_check_branch
        %170 = sbr.rel (%p168) target = $region16
      $region15: #{bottleneck_forward.5} parent=11 // pred_region
        _
      $region16: #{bottleneck_forward.5} parent=11 // pred_fallthru
        _
      // Predicated region
      $region17: #{bottleneck_forward.5} parent=11 // pred_check
        %p171 = pneg %p80
      $region18: #{bottleneck_forward.5} parent=11 // pred_check_branch
        %173 = sbr.rel (%p171) target = $region20
      $region19: #{bottleneck_forward.5} parent=11 // pred_region
        _
      $region20: #{bottleneck_forward.5} parent=11 // pred_fallthru
        _
      // Predicated region
      $region21: #{bottleneck_forward.5} parent=11 // pred_check
        %p174 = pneg %p101
      $region22: #{bottleneck_forward.5} parent=11 // pred_check_branch
        %176 = sbr.rel (%p174) target = $region24
      $region23: #{bottleneck_forward.5} parent=11 // pred_region
        _
      $region24: #{bottleneck_forward.5} parent=11 // pred_fallthru
        _
    $region12: #{bottleneck_forward.5} parent=5 // pred_fallthru
      _
    %p177 = scmp.lt.s32.totalorder %s12, 2
    // Predicated region
    $region25: #{bottleneck_forward.5} parent=5 // pred_check
      %p178 = pneg %p177
    $region26: #{bottleneck_forward.5} parent=5 // pred_check_branch
      %180 = sbr.rel (%p178) target = $region28
    $region27: #{bottleneck_forward.5} parent=5 // pred_region
      // Predicated region
      $region29: #{bottleneck_forward.5} parent=27 // pred_check
        %p181 = pneg %p32
      $region30: #{bottleneck_forward.5} parent=27 // pred_check_branch
        %183 = sbr.rel (%p181) target = $region32
      $region31: #{bottleneck_forward.5} parent=27 // pred_region
        %p184 = scmp.lt.s32.totalorder %s12, 1
        %s185 = scalar_select %p184, %s12, 1
        %s186 = smul.addr %s185, 32
        %s187 = smul.addr %s186, 8
        %s188 = scalar_lea.vmem %s0, %s187
      $region32: #{bottleneck_forward.5} parent=27 // pred_fallthru
        _
    $region28: #{bottleneck_forward.5} parent=5 // pred_fallthru
      _
    %p189 = scmp.le.s32.totalorder 1, %s12
    %p190 = scmp.lt.s32.totalorder %s12, 3
    %p191 = pnand %p189, %p190
    %p192 = pneg %p191
    // Predicated region
    $region33: #{bottleneck_forward.5} parent=5 // pred_check
      _
    $region34: #{bottleneck_forward.5} parent=5 // pred_check_branch
      %194 = sbr.rel (%p191) target = $region36
    $region35: #{bottleneck_forward.5} parent=5 // pred_region
      %s195 = ssub.s32 %s12, 1
      %p196 = scmp.lt.s32.totalorder %s17, 1
      %s197 = scalar_select %p196, %s17, 1
      %s198 = smul.addr %s197, 32
      %s199 = smul.addr %s198, 8
      %s200 = scalar_lea.vmem %s0, %s199
      %p201 = pneg %p38
      %p202 = pneg %p35
      %p203 = pneg %p59
      %p204 = pneg %p56
      %p205 = pneg %p80
      %p206 = pneg %p77
      %p207 = pneg %p101
      %p208 = pneg %p98
      %p209 = pneg %p127
      %p210 = pneg %p124
      %p211 = scmp.lt.s32.totalorder %s17, 1
      %s212 = scalar_select %p211, %s17, 1
      %s213 = smul.addr %s212, 32
      %s214 = smul.addr %s213, 8
      %s215 = scalar_lea.vmem %s4, %s214
      %p216 = pneg %p153
      %p217 = pneg %p150
      %p218 = scmp.lt.s32.totalorder %s17, 1
      %s219 = scalar_select %p218, %s17, 1
      %s220 = smul.addr %s219, 2
      %s221 = scalar_lea.vmem %s5, %s220
      %p222 = scmp.lt.s32.totalorder %s17, 1
      %s223 = scalar_select %p222, %s17, 1
      %s224 = smul.addr %s223, 32
      %s225 = smul.addr %s224, 8
      %s226 = scalar_lea.vmem %s0, %s225
      %p227 = scmp.lt.s32.totalorder %s17, 1
      %s228 = scalar_select %p227, %s17, 1
      %s229 = smul.addr %s228, 32
      %s230 = smul.addr %s229, 8
      %s231 = scalar_lea.vmem %s4, %s230
      %p232 = scmp.lt.s32.totalorder %s17, 1
      %s233 = scalar_select %p232, %s17, 1
      %s234 = smul.addr %s233, 2
      %s235 = scalar_lea.vmem %s5, %s234
      %236 = vst [vmem:[#allocation2] sm:$0xff] 0.0
      %237 = vst [vmem:[#allocation2 + $0x8] sm:$0xff] 0.0
      %238 = vst [vmem:[#allocation2 + $0x10] sm:$0x3] 0.0
      %239 = vst [vmem:[#allocation2 + $0x18] sm:$0xff] 0.0
      %240 = vst [vmem:[#allocation2 + $0x20] sm:$0xff] 0.0
      %241 = vst [vmem:[#allocation2 + $0x28] sm:$0x3] 0.0
      %242 = vst [vmem:[#allocation2 + $0x30] sm:$0xff] 0.0
      %243 = vst [vmem:[#allocation2 + $0x38] sm:$0xff] 0.0
      %244 = vst [vmem:[#allocation2 + $0x40] sm:$0x3] 0.0
      %245 = vst [vmem:[#allocation2 + $0x48] sm:$0xff] 0.0
      %246 = vst [vmem:[#allocation2 + $0x50] sm:$0xff] 0.0
      %247 = vst [vmem:[#allocation2 + $0x58] sm:$0x3] 0.0
      %248 = vst [vmem:[#allocation2 + $0x60] sm:$0xff] 0.0
      %249 = vst [vmem:[#allocation2 + $0x68] sm:$0xff] 0.0
      %250 = vst [vmem:[#allocation2 + $0x70] sm:$0x3] 0.0
      %251 = vst [vmem:[#allocation2 + $0x78] sm:$0xff] 0.0
      %252 = vst [vmem:[#allocation2 + $0x80] sm:$0xff] 0.0
      %253 = vst [vmem:[#allocation2 + $0x88] sm:$0x3] 0.0
      %254 = vst [vmem:[#allocation2 + $0x90] sm:$0xff] 0.0
      %255 = vst [vmem:[#allocation2 + $0x98] sm:$0xff] 0.0
      %256 = vst [vmem:[#allocation2 + $0xa0] sm:$0x3] 0.0
      %257 = vst [vmem:[#allocation2 + $0xa8] sm:$0xff] 0.0
      %258 = vst [vmem:[#allocation2 + $0xb0] sm:$0xff] 0.0
      %259 = vst [vmem:[#allocation2 + $0xb8] sm:$0x3] 0.0
      %260 = vst [vmem:[#allocation2 + $0xc0] sm:$0xff] 0.0
      %261 = vst [vmem:[#allocation2 + $0xc8] sm:$0xff] 0.0
      %262 = vst [vmem:[#allocation2 + $0xd0] sm:$0x3] 0.0
      %263 = vst [vmem:[#allocation2 + $0xd8] sm:$0xff] 0.0
      %264 = vst [vmem:[#allocation2 + $0xe0] sm:$0xff] 0.0
      %265 = vst [vmem:[#allocation2 + $0xe8] sm:$0x3] 0.0
      %266 = vst [vmem:[#allocation2 + $0xf0] sm:$0xff] 0.0
      %267 = vst [vmem:[#allocation2 + $0xf8] sm:$0xff] 0.0
      %268 = vst [vmem:[#allocation2 + $0x100] sm:$0x3] 0.0
      %269 = vst [vmem:[#allocation2 + $0x108] sm:$0xff] 0.0
      %270 = vst [vmem:[#allocation2 + $0x110] sm:$0xff] 0.0
      %271 = vst [vmem:[#allocation2 + $0x118] sm:$0x3] 0.0
      %272 = vst [vmem:[#allocation2 + $0x120] sm:$0xff] 0.0
      %273 = vst [vmem:[#allocation2 + $0x128] sm:$0xff] 0.0
      %274 = vst [vmem:[#allocation2 + $0x130] sm:$0x3] 0.0
      %275 = vst [vmem:[#allocation2 + $0x138] sm:$0xff] 0.0
      %276 = vst [vmem:[#allocation2 + $0x140] sm:$0xff] 0.0
      %277 = vst [vmem:[#allocation2 + $0x148] sm:$0x3] 0.0
      %278 = vst [vmem:[#allocation2 + $0x150] sm:$0xff] 0.0
      %279 = vst [vmem:[#allocation2 + $0x158] sm:$0xff] 0.0
      %280 = vst [vmem:[#allocation2 + $0x160] sm:$0x3] 0.0
      %281 = vst [vmem:[#allocation2 + $0x168] sm:$0xff] 0.0
      %282 = vst [vmem:[#allocation2 + $0x170] sm:$0xff] 0.0
      %283 = vst [vmem:[#allocation2 + $0x178] sm:$0x3] 0.0
      %284 = vst [vmem:[#allocation2 + $0x180] sm:$0xff] 0.0
      %285 = vst [vmem:[#allocation2 + $0x188] sm:$0xff] 0.0
      %286 = vst [vmem:[#allocation2 + $0x190] sm:$0x3] 0.0
      %287 = vst [vmem:[#allocation2 + $0x198] sm:$0xff] 0.0
      %288 = vst [vmem:[#allocation2 + $0x1a0] sm:$0xff] 0.0
      %289 = vst [vmem:[#allocation2 + $0x1a8] sm:$0x3] 0.0
      %v290 = vld [vmem:[%s226] sm:$0xff]
      %v291 = vld [vmem:[%s226 + $0x8] sm:$0xff]
      %v292 = vld [vmem:[%s226 + $0x10] sm:$0xff]
      %v293 = vld [vmem:[%s226 + $0x18] sm:$0xff]
      %v294 = vld [vmem:[%s226 + $0x20] sm:$0xff]
      %v295 = vld [vmem:[%s226 + $0x28] sm:$0xff]
      %v296 = vld [vmem:[%s226 + $0x30] sm:$0xff]
      %v297 = vld [vmem:[%s226 + $0x38] sm:$0xff]
      %v298 = vld [vmem:[%s226 + $0x40] sm:$0xff]
      %v299 = vld [vmem:[%s226 + $0x48] sm:$0xff]
      %v300 = vld [vmem:[%s226 + $0x50] sm:$0xff]
      %v301 = vld [vmem:[%s226 + $0x58] sm:$0xff]
      %v302 = vld [vmem:[%s226 + $0x60] sm:$0xff]
      %v303 = vld [vmem:[%s226 + $0x68] sm:$0xff]
      %v304 = vld [vmem:[%s226 + $0x70] sm:$0xff]
      %v305 = vld [vmem:[%s226 + $0x78] sm:$0xff]
      %v306 = vld [vmem:[%s226 + $0x80] sm:$0xff]
      %v307 = vld [vmem:[%s226 + $0x88] sm:$0xff]
      %v308 = vld [vmem:[%s226 + $0x90] sm:$0xff]
      %v309 = vld [vmem:[%s226 + $0x98] sm:$0xff]
      %v310 = vld [vmem:[%s226 + $0xa0] sm:$0xff]
      %v311 = vld [vmem:[%s226 + $0xa8] sm:$0xff]
      %v312 = vld [vmem:[%s226 + $0xb0] sm:$0xff]
      %v313 = vld [vmem:[%s226 + $0xb8] sm:$0xff]
      %v314 = vld [vmem:[%s226 + $0xc0] sm:$0xff]
      %v315 = vld [vmem:[%s226 + $0xc8] sm:$0xff]
      %v316 = vld [vmem:[%s226 + $0xd0] sm:$0xff]
      %v317 = vld [vmem:[%s226 + $0xd8] sm:$0xff]
      %v318 = vld [vmem:[%s226 + $0xe0] sm:$0xff]
      %v319 = vld [vmem:[%s226 + $0xe8] sm:$0xff]
      %v320 = vld [vmem:[%s226 + $0xf0] sm:$0xff]
      %v321 = vld [vmem:[%s226 + $0xf8] sm:$0xff]
      %v322 = vld [vmem:[%s1] sm:$0x1]
      %v324 = vperm.slane %v322, 0
      %v326 = vmul.f32 %v290, %v324
      %v327 = vmul.f32 %v291, %v324
      %v328 = vmul.f32 %v292, %v324
      %v329 = vmul.f32 %v293, %v324
      %v330 = vmul.f32 %v294, %v324
      %v331 = vmul.f32 %v295, %v324
      %v332 = vmul.f32 %v296, %v324
      %v333 = vmul.f32 %v297, %v324
      %v334 = vmul.f32 %v298, %v324
      %v335 = vmul.f32 %v299, %v324
      %v336 = vmul.f32 %v300, %v324
      %v337 = vmul.f32 %v301, %v324
      %v338 = vmul.f32 %v302, %v324
      %v339 = vmul.f32 %v303, %v324
      %v340 = vmul.f32 %v304, %v324
      %v341 = vmul.f32 %v305, %v324
      %v342 = vmul.f32 %v306, %v324
      %v343 = vmul.f32 %v307, %v324
      %v344 = vmul.f32 %v308, %v324
      %v345 = vmul.f32 %v309, %v324
      %v346 = vmul.f32 %v310, %v324
      %v347 = vmul.f32 %v311, %v324
      %v348 = vmul.f32 %v312, %v324
      %v349 = vmul.f32 %v313, %v324
      %v350 = vmul.f32 %v314, %v324
      %v351 = vmul.f32 %v315, %v324
      %v352 = vmul.f32 %v316, %v324
      %v353 = vmul.f32 %v317, %v324
      %v354 = vmul.f32 %v318, %v324
      %v355 = vmul.f32 %v319, %v324
      %v356 = vmul.f32 %v320, %v324
      %v357 = vmul.f32 %v321, %v324
      %v358 = vld [vmem:[%s2] sm:$0x1]
      %v360 = vperm.slane %v358, 0
      %v362 = vadd.f32 %v326, %v360
      %v363 = vadd.f32 %v327, %v360
      %v364 = vadd.f32 %v328, %v360
      %v365 = vadd.f32 %v329, %v360
      %v366 = vadd.f32 %v330, %v360
      %v367 = vadd.f32 %v331, %v360
      %v368 = vadd.f32 %v332, %v360
      %v369 = vadd.f32 %v333, %v360
      %v370 = vadd.f32 %v334, %v360
      %v371 = vadd.f32 %v335, %v360
      %v372 = vadd.f32 %v336, %v360
      %v373 = vadd.f32 %v337, %v360
      %v374 = vadd.f32 %v338, %v360
      %v375 = vadd.f32 %v339, %v360
      %v376 = vadd.f32 %v340, %v360
      %v377 = vadd.f32 %v341, %v360
      %v378 = vadd.f32 %v342, %v360
      %v379 = vadd.f32 %v343, %v360
      %v380 = vadd.f32 %v344, %v360
      %v381 = vadd.f32 %v345, %v360
      %v382 = vadd.f32 %v346, %v360
      %v383 = vadd.f32 %v347, %v360
      %v384 = vadd.f32 %v348, %v360
      %v385 = vadd.f32 %v349, %v360
      %v386 = vadd.f32 %v350, %v360
      %v387 = vadd.f32 %v351, %v360
      %v388 = vadd.f32 %v352, %v360
      %v389 = vadd.f32 %v353, %v360
      %v390 = vadd.f32 %v354, %v360
      %v391 = vadd.f32 %v355, %v360
      %v392 = vadd.f32 %v356, %v360
      %v393 = vadd.f32 %v357, %v360
      %v394 = vmax.f32 %v362, 0.0
      %v395 = vmax.f32 %v363, 0.0
      %v396 = vmax.f32 %v364, 0.0
      %v397 = vmax.f32 %v365, 0.0
      %v398 = vmax.f32 %v366, 0.0
      %v399 = vmax.f32 %v367, 0.0
      %v400 = vmax.f32 %v368, 0.0
      %v401 = vmax.f32 %v369, 0.0
      %v402 = vmax.f32 %v370, 0.0
      %v403 = vmax.f32 %v371, 0.0
      %v404 = vmax.f32 %v372, 0.0
      %v405 = vmax.f32 %v373, 0.0
      %v406 = vmax.f32 %v374, 0.0
      %v407 = vmax.f32 %v375, 0.0
      %v408 = vmax.f32 %v376, 0.0
      %v409 = vmax.f32 %v377, 0.0
      %v410 = vmax.f32 %v378, 0.0
      %v411 = vmax.f32 %v379, 0.0
      %v412 = vmax.f32 %v380, 0.0
      %v413 = vmax.f32 %v381, 0.0
      %v414 = vmax.f32 %v382, 0.0
      %v415 = vmax.f32 %v383, 0.0
      %v416 = vmax.f32 %v384, 0.0
      %v417 = vmax.f32 %v385, 0.0
      %v418 = vmax.f32 %v386, 0.0
      %v419 = vmax.f32 %v387, 0.0
      %v420 = vmax.f32 %v388, 0.0
      %v421 = vmax.f32 %v389, 0.0
      %v422 = vmax.f32 %v390, 0.0
      %v423 = vmax.f32 %v391, 0.0
      %v424 = vmax.f32 %v392, 0.0
      %v425 = vmax.f32 %v393, 0.0
      %s426 = scalar_lea.vmem [#allocation2], 24
      %427 = vst [vmem:[%s426 + $0x1] sm:$0xff] %v394
      %428 = vst [vmem:[%s426 + $0x9] sm:$0xff] %v395
      %429 = vst [vmem:[%s426 + $0x19] sm:$0xff] %v396
      %430 = vst [vmem:[%s426 + $0x21] sm:$0xff] %v397
      %431 = vst [vmem:[%s426 + $0x31] sm:$0xff] %v398
      %432 = vst [vmem:[%s426 + $0x39] sm:$0xff] %v399
      %433 = vst [vmem:[%s426 + $0x49] sm:$0xff] %v400
      %434 = vst [vmem:[%s426 + $0x51] sm:$0xff] %v401
      %435 = vst [vmem:[%s426 + $0x61] sm:$0xff] %v402
      %436 = vst [vmem:[%s426 + $0x69] sm:$0xff] %v403
      %437 = vst [vmem:[%s426 + $0x79] sm:$0xff] %v404
      %438 = vst [vmem:[%s426 + $0x81] sm:$0xff] %v405
      %439 = vst [vmem:[%s426 + $0x91] sm:$0xff] %v406
      %440 = vst [vmem:[%s426 + $0x99] sm:$0xff] %v407
      %441 = vst [vmem:[%s426 + $0xa9] sm:$0xff] %v408
      %442 = vst [vmem:[%s426 + $0xb1] sm:$0xff] %v409
      %443 = vst [vmem:[%s426 + $0xc1] sm:$0xff] %v410
      %444 = vst [vmem:[%s426 + $0xc9] sm:$0xff] %v411
      %445 = vst [vmem:[%s426 + $0xd9] sm:$0xff] %v412
      %446 = vst [vmem:[%s426 + $0xe1] sm:$0xff] %v413
      %447 = vst [vmem:[%s426 + $0xf1] sm:$0xff] %v414
      %448 = vst [vmem:[%s426 + $0xf9] sm:$0xff] %v415
      %449 = vst [vmem:[%s426 + $0x109] sm:$0xff] %v416
      %450 = vst [vmem:[%s426 + $0x111] sm:$0xff] %v417
      %451 = vst [vmem:[%s426 + $0x121] sm:$0xff] %v418
      %452 = vst [vmem:[%s426 + $0x129] sm:$0xff] %v419
      %453 = vst [vmem:[%s426 + $0x139] sm:$0xff] %v420
      %454 = vst [vmem:[%s426 + $0x141] sm:$0xff] %v421
      %455 = vst [vmem:[%s426 + $0x151] sm:$0xff] %v422
      %456 = vst [vmem:[%s426 + $0x159] sm:$0xff] %v423
      %457 = vst [vmem:[%s426 + $0x169] sm:$0xff] %v424
      %458 = vst [vmem:[%s426 + $0x171] sm:$0xff] %v425
      %459 = vst [vmem:[#allocation3] sm:$0xff] 0.0
      %460 = vst [vmem:[#allocation3 + $0x8] sm:$0xff] 0.0
      %461 = vst [vmem:[#allocation3 + $0x10] sm:$0xff] 0.0
      %462 = vst [vmem:[#allocation3 + $0x18] sm:$0xff] 0.0
      %463 = vst [vmem:[#allocation3 + $0x20] sm:$0xff] 0.0
      %464 = vst [vmem:[#allocation3 + $0x28] sm:$0xff] 0.0
      %465 = vst [vmem:[#allocation3 + $0x30] sm:$0xff] 0.0
      %466 = vst [vmem:[#allocation3 + $0x38] sm:$0xff] 0.0
      %467 = vst [vmem:[#allocation3 + $0x40] sm:$0xff] 0.0
      %468 = vst [vmem:[#allocation3 + $0x48] sm:$0xff] 0.0
      %469 = vst [vmem:[#allocation3 + $0x50] sm:$0xff] 0.0
      %470 = vst [vmem:[#allocation3 + $0x58] sm:$0xff] 0.0
      %471 = vst [vmem:[#allocation3 + $0x60] sm:$0xff] 0.0
      %472 = vst [vmem:[#allocation3 + $0x68] sm:$0xff] 0.0
      %473 = vst [vmem:[#allocation3 + $0x70] sm:$0xff] 0.0
      %474 = vst [vmem:[#allocation3 + $0x78] sm:$0xff] 0.0
      %475 = vst [vmem:[#allocation3 + $0x80] sm:$0xff] 0.0
      %476 = vst [vmem:[#allocation3 + $0x88] sm:$0xff] 0.0
      %477 = vst [vmem:[#allocation3 + $0x90] sm:$0xff] 0.0
      %478 = vst [vmem:[#allocation3 + $0x98] sm:$0xff] 0.0
      %479 = vst [vmem:[#allocation3 + $0xa0] sm:$0xff] 0.0
      %480 = vst [vmem:[#allocation3 + $0xa8] sm:$0xff] 0.0
      %481 = vst [vmem:[#allocation3 + $0xb0] sm:$0xff] 0.0
      %482 = vst [vmem:[#allocation3 + $0xb8] sm:$0xff] 0.0
      %483 = vst [vmem:[#allocation3 + $0xc0] sm:$0xff] 0.0
      %484 = vst [vmem:[#allocation3 + $0xc8] sm:$0xff] 0.0
      %485 = vst [vmem:[#allocation3 + $0xd0] sm:$0xff] 0.0
      %486 = vst [vmem:[#allocation3 + $0xd8] sm:$0xff] 0.0
      %487 = vst [vmem:[#allocation3 + $0xe0] sm:$0xff] 0.0
      %488 = vst [vmem:[#allocation3 + $0xe8] sm:$0xff] 0.0
      %489 = vst [vmem:[#allocation3 + $0xf0] sm:$0xff] 0.0
      %490 = vst [vmem:[#allocation3 + $0xf8] sm:$0xff] 0.0
      %v491 = vld [vmem:[#allocation2] sm:$0xff]
      %v492 = vld [vmem:[#allocation2 + $0x8] sm:$0xff]
      %v493 = vld [vmem:[#allocation2 + $0x18] sm:$0xff]
      %v494 = vld [vmem:[#allocation2 + $0x20] sm:$0xff]
      %v495 = vld [vmem:[#allocation2 + $0x30] sm:$0xff]
      %v496 = vld [vmem:[#allocation2 + $0x38] sm:$0xff]
      %v497 = vld [vmem:[#allocation2 + $0x48] sm:$0xff]
      %v498 = vld [vmem:[#allocation2 + $0x50] sm:$0xff]
      %v499 = vld [vmem:[#allocation2 + $0x60] sm:$0xff]
      %v500 = vld [vmem:[#allocation2 + $0x68] sm:$0xff]
      %v501 = vld [vmem:[#allocation2 + $0x78] sm:$0xff]
      %v502 = vld [vmem:[#allocation2 + $0x80] sm:$0xff]
      %v503 = vld [vmem:[#allocation2 + $0x90] sm:$0xff]
      %v504 = vld [vmem:[#allocation2 + $0x98] sm:$0xff]
      %v505 = vld [vmem:[#allocation2 + $0xa8] sm:$0xff]
      %v506 = vld [vmem:[#allocation2 + $0xb0] sm:$0xff]
      %v507 = vld [vmem:[#allocation2 + $0xc0] sm:$0xff]
      %v508 = vld [vmem:[#allocation2 + $0xc8] sm:$0xff]
      %v509 = vld [vmem:[#allocation2 + $0xd8] sm:$0xff]
      %v510 = vld [vmem:[#allocation2 + $0xe0] sm:$0xff]
      %v511 = vld [vmem:[#allocation2 + $0xf0] sm:$0xff]
      %v512 = vld [vmem:[#allocation2 + $0xf8] sm:$0xff]
      %v513 = vld [vmem:[#allocation2 + $0x108] sm:$0xff]
      %v514 = vld [vmem:[#allocation2 + $0x110] sm:$0xff]
      %v515 = vld [vmem:[#allocation2 + $0x120] sm:$0xff]
      %v516 = vld [vmem:[#allocation2 + $0x128] sm:$0xff]
      %v517 = vld [vmem:[#allocation2 + $0x138] sm:$0xff]
      %v518 = vld [vmem:[#allocation2 + $0x140] sm:$0xff]
      %v519 = vld [vmem:[#allocation2 + $0x150] sm:$0xff]
      %v520 = vld [vmem:[#allocation2 + $0x158] sm:$0xff]
      %v521 = vld [vmem:[#allocation2 + $0x168] sm:$0xff]
      %v522 = vld [vmem:[#allocation2 + $0x170] sm:$0xff]
      %v523 = vld [vmem:[#allocation3] sm:$0xff]
      %v524 = vld [vmem:[#allocation3 + $0x8] sm:$0xff]
      %v525 = vld [vmem:[#allocation3 + $0x10] sm:$0xff]
      %v526 = vld [vmem:[#allocation3 + $0x18] sm:$0xff]
      %v527 = vld [vmem:[#allocation3 + $0x20] sm:$0xff]
      %v528 = vld [vmem:[#allocation3 + $0x28] sm:$0xff]
      %v529 = vld [vmem:[#allocation3 + $0x30] sm:$0xff]
      %v530 = vld [vmem:[#allocation3 + $0x38] sm:$0xff]
      %v531 = vld [vmem:[#allocation3 + $0x40] sm:$0xff]
      %v532 = vld [vmem:[#allocation3 + $0x48] sm:$0xff]
      %v533 = vld [vmem:[#allocation3 + $0x50] sm:$0xff]
      %v534 = vld [vmem:[#allocation3 + $0x58] sm:$0xff]
      %v535 = vld [vmem:[#allocation3 + $0x60] sm:$0xff]
      %v536 = vld [vmem:[#allocation3 + $0x68] sm:$0xff]
      %v537 = vld [vmem:[#allocation3 + $0x70] sm:$0xff]
      %v538 = vld [vmem:[#allocation3 + $0x78] sm:$0xff]
      %v539 = vld [vmem:[#allocation3 + $0x80] sm:$0xff]
      %v540 = vld [vmem:[#allocation3 + $0x88] sm:$0xff]
      %v541 = vld [vmem:[#allocation3 + $0x90] sm:$0xff]
      %v542 = vld [vmem:[#allocation3 + $0x98] sm:$0xff]
      %v543 = vld [vmem:[#allocation3 + $0xa0] sm:$0xff]
      %v544 = vld [vmem:[#allocation3 + $0xa8] sm:$0xff]
      %v545 = vld [vmem:[#allocation3 + $0xb0] sm:$0xff]
      %v546 = vld [vmem:[#allocation3 + $0xb8] sm:$0xff]
      %v547 = vld [vmem:[#allocation3 + $0xc0] sm:$0xff]
      %v548 = vld [vmem:[#allocation3 + $0xc8] sm:$0xff]
      %v549 = vld [vmem:[#allocation3 + $0xd0] sm:$0xff]
      %v550 = vld [vmem:[#allocation3 + $0xd8] sm:$0xff]
      %v551 = vld [vmem:[#allocation3 + $0xe0] sm:$0xff]
      %v552 = vld [vmem:[#allocation3 + $0xe8] sm:$0xff]
      %v553 = vld [vmem:[#allocation3 + $0xf0] sm:$0xff]
      %v554 = vld [vmem:[#allocation3 + $0xf8] sm:$0xff]
      %v555 = vpack.c.bf16 %v492, %v491
      %v556 = vpack.c.bf16 %v494, %v493
      %v557 = vpack.c.bf16 %v496, %v495
      %v558 = vpack.c.bf16 %v498, %v497
      %v559 = vpack.c.bf16 %v500, %v499
      %v560 = vpack.c.bf16 %v502, %v501
      %v561 = vpack.c.bf16 %v504, %v503
      %v562 = vpack.c.bf16 %v506, %v505
      %v563 = vpack.c.bf16 %v508, %v507
      %v564 = vpack.c.bf16 %v510, %v509
      %v565 = vpack.c.bf16 %v512, %v511
      %v566 = vpack.c.bf16 %v514, %v513
      %v567 = vpack.c.bf16 %v516, %v515
      %v568 = vpack.c.bf16 %v518, %v517
      %v569 = vpack.c.bf16 %v520, %v519
      %v570 = vpack.c.bf16 %v522, %v521
      %v571 = vld [vmem:[%s3] sm:$0xf]
      %v572 = vld [vmem:[%s3 + $0x4] sm:$0xf]
      %v573 = vld [vmem:[%s3 + $0x8] sm:$0xf]
      %v574 = vld [vmem:[%s3 + $0xc] sm:$0xf]
      %v575 = vld [vmem:[%s3 + $0x10] sm:$0xf]
      %v576 = vld [vmem:[%s3 + $0x14] sm:$0xf]
      %v577 = vld [vmem:[%s3 + $0x18] sm:$0xf]
      %v578 = vld [vmem:[%s3 + $0x1c] sm:$0xf]
      %v579 = vld [vmem:[%s3 + $0x20] sm:$0xf]
      %v580 = vld [vmem:[%s3 + $0x24] sm:$0xf]
      %v581 = vld [vmem:[%s3 + $0x28] sm:$0xf]
      %v582 = vld [vmem:[%s3 + $0x2c] sm:$0xf]
      %v583 = vld [vmem:[%s3 + $0x30] sm:$0xf]
      %v584 = vld [vmem:[%s3 + $0x34] sm:$0xf]
      %v585 = vld [vmem:[%s3 + $0x38] sm:$0xf]
      %v586 = vld [vmem:[%s3 + $0x3c] sm:$0xf]
      %v603 = vunpack.c.l.b16 %v571
      %v604 = vunpack.c.l.b16 %v572
      %v605 = vunpack.c.l.b16 %v573
      %v606 = vunpack.c.l.b16 %v574
      %v607 = vunpack.c.l.b16 %v575
      %v608 = vunpack.c.l.b16 %v576
      %v609 = vunpack.c.l.b16 %v577
      %v610 = vunpack.c.l.b16 %v578
      %v611 = vunpack.c.l.b16 %v579
      %v612 = vunpack.c.l.b16 %v580
      %v613 = vunpack.c.l.b16 %v581
      %v614 = vunpack.c.l.b16 %v582
      %v615 = vunpack.c.l.b16 %v583
      %v616 = vunpack.c.l.b16 %v584
      %v617 = vunpack.c.l.b16 %v585
      %v618 = vunpack.c.l.b16 %v586
      %v619 = vpack.c.b16 %v604, %v603
      %v620 = vpack.c.b16 %v606, %v605
      %v621 = vpack.c.b16 %v608, %v607
      %v622 = vpack.c.b16 %v610, %v609
      %v623 = vpack.c.b16 %v612, %v611
      %v624 = vpack.c.b16 %v614, %v613
      %v625 = vpack.c.b16 %v616, %v615
      %v626 = vpack.c.b16 %v618, %v617
      %635 = vmatpush.bf16.msra.mxu0 %v626
      %636 = vmatpush.bf16.msra.mxu0 %v625
      %637 = vmatpush.bf16.msra.mxu0 %v624
      %638 = vmatpush.bf16.msra.mxu0 %v623
      %639 = vmatpush.bf16.msra.mxu0 %v622
      %640 = vmatpush.bf16.msra.mxu0 %v621
      %641 = vmatpush.bf16.msra.mxu0 %v620
      %642 = vmatpush.bf16.msra.mxu0 %v619
      %643 = vmatmul.bf16.gmra.mxu0 %v555
      %v644 = vpop.f32.mrf.mxu0
      %v645 = vadd.f32 0.0, %v644
      %v646 = vpop.f32.mrf.mxu0
      %v647 = vadd.f32 0.0, %v646
      %648 = vmatmul.bf16.gmra.mxu0 %v556
      %v649 = vpop.f32.mrf.mxu0
      %v650 = vadd.f32 0.0, %v649
      %v651 = vpop.f32.mrf.mxu0
      %v652 = vadd.f32 0.0, %v651
      %653 = vmatmul.bf16.gmra.mxu0 %v557
      %v654 = vpop.f32.mrf.mxu0
      %v655 = vadd.f32 0.0, %v654
      %v656 = vpop.f32.mrf.mxu0
      %v657 = vadd.f32 0.0, %v656
      %658 = vmatmul.bf16.gmra.mxu0 %v558
      %v659 = vpop.f32.mrf.mxu0
      %v660 = vadd.f32 0.0, %v659
      %v661 = vpop.f32.mrf.mxu0
      %v662 = vadd.f32 0.0, %v661
      %663 = vmatmul.bf16.gmra.mxu0 %v559
      %v664 = vpop.f32.mrf.mxu0
      %v665 = vadd.f32 0.0, %v664
      %v666 = vpop.f32.mrf.mxu0
      %v667 = vadd.f32 0.0, %v666
      %668 = vmatmul.bf16.gmra.mxu0 %v560
      %v669 = vpop.f32.mrf.mxu0
      %v670 = vadd.f32 0.0, %v669
      %v671 = vpop.f32.mrf.mxu0
      %v672 = vadd.f32 0.0, %v671
      %673 = vmatmul.bf16.gmra.mxu0 %v561
      %v674 = vpop.f32.mrf.mxu0
      %v675 = vadd.f32 0.0, %v674
      %v676 = vpop.f32.mrf.mxu0
      %v677 = vadd.f32 0.0, %v676
      %678 = vmatmul.bf16.gmra.mxu0 %v562
      %v679 = vpop.f32.mrf.mxu0
      %v680 = vadd.f32 0.0, %v679
      %v681 = vpop.f32.mrf.mxu0
      %v682 = vadd.f32 0.0, %v681
      %683 = vmatmul.bf16.gmra.mxu0 %v563
      %v684 = vpop.f32.mrf.mxu0
      %v685 = vadd.f32 0.0, %v684
      %v686 = vpop.f32.mrf.mxu0
      %v687 = vadd.f32 0.0, %v686
      %688 = vmatmul.bf16.gmra.mxu0 %v564
      %v689 = vpop.f32.mrf.mxu0
      %v690 = vadd.f32 0.0, %v689
      %v691 = vpop.f32.mrf.mxu0
      %v692 = vadd.f32 0.0, %v691
      %693 = vmatmul.bf16.gmra.mxu0 %v565
      %v694 = vpop.f32.mrf.mxu0
      %v695 = vadd.f32 0.0, %v694
      %v696 = vpop.f32.mrf.mxu0
      %v697 = vadd.f32 0.0, %v696
      %698 = vmatmul.bf16.gmra.mxu0 %v566
      %v699 = vpop.f32.mrf.mxu0
      %v700 = vadd.f32 0.0, %v699
      %v701 = vpop.f32.mrf.mxu0
      %v702 = vadd.f32 0.0, %v701
      %703 = vmatmul.bf16.gmra.mxu0 %v567
      %v704 = vpop.f32.mrf.mxu0
      %v705 = vadd.f32 0.0, %v704
      %v706 = vpop.f32.mrf.mxu0
      %v707 = vadd.f32 0.0, %v706
      %708 = vmatmul.bf16.gmra.mxu0 %v568
      %v709 = vpop.f32.mrf.mxu0
      %v710 = vadd.f32 0.0, %v709
      %v711 = vpop.f32.mrf.mxu0
      %v712 = vadd.f32 0.0, %v711
      %713 = vmatmul.bf16.gmra.mxu0 %v569
      %v714 = vpop.f32.mrf.mxu0
      %v715 = vadd.f32 0.0, %v714
      %v716 = vpop.f32.mrf.mxu0
      %v717 = vadd.f32 0.0, %v716
      %718 = vmatmul.bf16.gmra.mxu0 %v570
      %v719 = vpop.f32.mrf.mxu0
      %v720 = vadd.f32 0.0, %v719
      %v721 = vpop.f32.mrf.mxu0
      %v722 = vadd.f32 0.0, %v721
      %723 = vdwg.mxu0
      %v724 = vadd.f32 %v523, %v645
      %v725 = vadd.f32 %v524, %v647
      %v726 = vadd.f32 %v525, %v650
      %v727 = vadd.f32 %v526, %v652
      %v728 = vadd.f32 %v527, %v655
      %v729 = vadd.f32 %v528, %v657
      %v730 = vadd.f32 %v529, %v660
      %v731 = vadd.f32 %v530, %v662
      %v732 = vadd.f32 %v531, %v665
      %v733 = vadd.f32 %v532, %v667
      %v734 = vadd.f32 %v533, %v670
      %v735 = vadd.f32 %v534, %v672
      %v736 = vadd.f32 %v535, %v675
      %v737 = vadd.f32 %v536, %v677
      %v738 = vadd.f32 %v537, %v680
      %v739 = vadd.f32 %v538, %v682
      %v740 = vadd.f32 %v539, %v685
      %v741 = vadd.f32 %v540, %v687
      %v742 = vadd.f32 %v541, %v690
      %v743 = vadd.f32 %v542, %v692
      %v744 = vadd.f32 %v543, %v695
      %v745 = vadd.f32 %v544, %v697
      %v746 = vadd.f32 %v545, %v700
      %v747 = vadd.f32 %v546, %v702
      %v748 = vadd.f32 %v547, %v705
      %v749 = vadd.f32 %v548, %v707
      %v750 = vadd.f32 %v549, %v710
      %v751 = vadd.f32 %v550, %v712
      %v752 = vadd.f32 %v551, %v715
      %v753 = vadd.f32 %v552, %v717
      %v754 = vadd.f32 %v553, %v720
      %v755 = vadd.f32 %v554, %v722
      %756 = vst [vmem:[#allocation3] sm:$0xff] %v724
      %757 = vst [vmem:[#allocation3 + $0x8] sm:$0xff] %v725
      %758 = vst [vmem:[#allocation3 + $0x10] sm:$0xff] %v726
      %759 = vst [vmem:[#allocation3 + $0x18] sm:$0xff] %v727
      %760 = vst [vmem:[#allocation3 + $0x20] sm:$0xff] %v728
      %761 = vst [vmem:[#allocation3 + $0x28] sm:$0xff] %v729
      %762 = vst [vmem:[#allocation3 + $0x30] sm:$0xff] %v730
      %763 = vst [vmem:[#allocation3 + $0x38] sm:$0xff] %v731
      %764 = vst [vmem:[#allocation3 + $0x40] sm:$0xff] %v732
      %765 = vst [vmem:[#allocation3 + $0x48] sm:$0xff] %v733
      %766 = vst [vmem:[#allocation3 + $0x50] sm:$0xff] %v734
      %767 = vst [vmem:[#allocation3 + $0x58] sm:$0xff] %v735
      %768 = vst [vmem:[#allocation3 + $0x60] sm:$0xff] %v736
      %769 = vst [vmem:[#allocation3 + $0x68] sm:$0xff] %v737
      %770 = vst [vmem:[#allocation3 + $0x70] sm:$0xff] %v738
      %771 = vst [vmem:[#allocation3 + $0x78] sm:$0xff] %v739
      %772 = vst [vmem:[#allocation3 + $0x80] sm:$0xff] %v740
      %773 = vst [vmem:[#allocation3 + $0x88] sm:$0xff] %v741
      %774 = vst [vmem:[#allocation3 + $0x90] sm:$0xff] %v742
      %775 = vst [vmem:[#allocation3 + $0x98] sm:$0xff] %v743
      %776 = vst [vmem:[#allocation3 + $0xa0] sm:$0xff] %v744
      %777 = vst [vmem:[#allocation3 + $0xa8] sm:$0xff] %v745
      %778 = vst [vmem:[#allocation3 + $0xb0] sm:$0xff] %v746
      %779 = vst [vmem:[#allocation3 + $0xb8] sm:$0xff] %v747
      %780 = vst [vmem:[#allocation3 + $0xc0] sm:$0xff] %v748
      %781 = vst [vmem:[#allocation3 + $0xc8] sm:$0xff] %v749
      %782 = vst [vmem:[#allocation3 + $0xd0] sm:$0xff] %v750
      %783 = vst [vmem:[#allocation3 + $0xd8] sm:$0xff] %v751
      %784 = vst [vmem:[#allocation3 + $0xe0] sm:$0xff] %v752
      %785 = vst [vmem:[#allocation3 + $0xe8] sm:$0xff] %v753
      %786 = vst [vmem:[#allocation3 + $0xf0] sm:$0xff] %v754
      %787 = vst [vmem:[#allocation3 + $0xf8] sm:$0xff] %v755
      %v788 = vld [vmem:[#allocation2 + $0x1] sm:$0xff]
      %v789 = vld [vmem:[#allocation2 + $0x9] sm:$0xff]
      %v790 = vld [vmem:[#allocation2 + $0x19] sm:$0xff]
      %v791 = vld [vmem:[#allocation2 + $0x21] sm:$0xff]
      %v792 = vld [vmem:[#allocation2 + $0x31] sm:$0xff]
      %v793 = vld [vmem:[#allocation2 + $0x39] sm:$0xff]
      %v794 = vld [vmem:[#allocation2 + $0x49] sm:$0xff]
      %v795 = vld [vmem:[#allocation2 + $0x51] sm:$0xff]
      %v796 = vld [vmem:[#allocation2 + $0x61] sm:$0xff]
      %v797 = vld [vmem:[#allocation2 + $0x69] sm:$0xff]
      %v798 = vld [vmem:[#allocation2 + $0x79] sm:$0xff]
      %v799 = vld [vmem:[#allocation2 + $0x81] sm:$0xff]
      %v800 = vld [vmem:[#allocation2 + $0x91] sm:$0xff]
      %v801 = vld [vmem:[#allocation2 + $0x99] sm:$0xff]
      %v802 = vld [vmem:[#allocation2 + $0xa9] sm:$0xff]
      %v803 = vld [vmem:[#allocation2 + $0xb1] sm:$0xff]
      %v804 = vld [vmem:[#allocation2 + $0xc1] sm:$0xff]
      %v805 = vld [vmem:[#allocation2 + $0xc9] sm:$0xff]
      %v806 = vld [vmem:[#allocation2 + $0xd9] sm:$0xff]
      %v807 = vld [vmem:[#allocation2 + $0xe1] sm:$0xff]
      %v808 = vld [vmem:[#allocation2 + $0xf1] sm:$0xff]
      %v809 = vld [vmem:[#allocation2 + $0xf9] sm:$0xff]
      %v810 = vld [vmem:[#allocation2 + $0x109] sm:$0xff]
      %v811 = vld [vmem:[#allocation2 + $0x111] sm:$0xff]
      %v812 = vld [vmem:[#allocation2 + $0x121] sm:$0xff]
      %v813 = vld [vmem:[#allocation2 + $0x129] sm:$0xff]
      %v814 = vld [vmem:[#allocation2 + $0x139] sm:$0xff]
      %v815 = vld [vmem:[#allocation2 + $0x141] sm:$0xff]
      %v816 = vld [vmem:[#allocation2 + $0x151] sm:$0xff]
      %v817 = vld [vmem:[#allocation2 + $0x159] sm:$0xff]
      %v818 = vld [vmem:[#allocation2 + $0x169] sm:$0xff]
      %v819 = vld [vmem:[#allocation2 + $0x171] sm:$0xff]
      %v820 = vld [vmem:[#allocation3] sm:$0xff]
      %v821 = vld [vmem:[#allocation3 + $0x8] sm:$0xff]
      %v822 = vld [vmem:[#allocation3 + $0x10] sm:$0xff]
      %v823 = vld [vmem:[#allocation3 + $0x18] sm:$0xff]
      %v824 = vld [vmem:[#allocation3 + $0x20] sm:$0xff]
      %v825 = vld [vmem:[#allocation3 + $0x28] sm:$0xff]
      %v826 = vld [vmem:[#allocation3 + $0x30] sm:$0xff]
      %v827 = vld [vmem:[#allocation3 + $0x38] sm:$0xff]
      %v828 = vld [vmem:[#allocation3 + $0x40] sm:$0xff]
      %v829 = vld [vmem:[#allocation3 + $0x48] sm:$0xff]
      %v830 = vld [vmem:[#allocation3 + $0x50] sm:$0xff]
      %v831 = vld [vmem:[#allocation3 + $0x58] sm:$0xff]
      %v832 = vld [vmem:[#allocation3 + $0x60] sm:$0xff]
      %v833 = vld [vmem:[#allocation3 + $0x68] sm:$0xff]
      %v834 = vld [vmem:[#allocation3 + $0x70] sm:$0xff]
      %v835 = vld [vmem:[#allocation3 + $0x78] sm:$0xff]
      %v836 = vld [vmem:[#allocation3 + $0x80] sm:$0xff]
      %v837 = vld [vmem:[#allocation3 + $0x88] sm:$0xff]
      %v838 = vld [vmem:[#allocation3 + $0x90] sm:$0xff]
      %v839 = vld [vmem:[#allocation3 + $0x98] sm:$0xff]
      %v840 = vld [vmem:[#allocation3 + $0xa0] sm:$0xff]
      %v841 = vld [vmem:[#allocation3 + $0xa8] sm:$0xff]
      %v842 = vld [vmem:[#allocation3 + $0xb0] sm:$0xff]
      %v843 = vld [vmem:[#allocation3 + $0xb8] sm:$0xff]
      %v844 = vld [vmem:[#allocation3 + $0xc0] sm:$0xff]
      %v845 = vld [vmem:[#allocation3 + $0xc8] sm:$0xff]
      %v846 = vld [vmem:[#allocation3 + $0xd0] sm:$0xff]
      %v847 = vld [vmem:[#allocation3 + $0xd8] sm:$0xff]
      %v848 = vld [vmem:[#allocation3 + $0xe0] sm:$0xff]
      %v849 = vld [vmem:[#allocation3 + $0xe8] sm:$0xff]
      %v850 = vld [vmem:[#allocation3 + $0xf0] sm:$0xff]
      %v851 = vld [vmem:[#allocation3 + $0xf8] sm:$0xff]
      %v852 = vpack.c.bf16 %v789, %v788
      %v853 = vpack.c.bf16 %v791, %v790
      %v854 = vpack.c.bf16 %v793, %v792
      %v855 = vpack.c.bf16 %v795, %v794
      %v856 = vpack.c.bf16 %v797, %v796
      %v857 = vpack.c.bf16 %v799, %v798
      %v858 = vpack.c.bf16 %v801, %v800
      %v859 = vpack.c.bf16 %v803, %v802
      %v860 = vpack.c.bf16 %v805, %v804
      %v861 = vpack.c.bf16 %v807, %v806
      %v862 = vpack.c.bf16 %v809, %v808
      %v863 = vpack.c.bf16 %v811, %v810
      %v864 = vpack.c.bf16 %v813, %v812
      %v865 = vpack.c.bf16 %v815, %v814
      %v866 = vpack.c.bf16 %v817, %v816
      %v867 = vpack.c.bf16 %v819, %v818
      %s868 = scalar_lea.vmem %s3, 64
      %v869 = vld [vmem:[%s868] sm:$0xf]
      %v870 = vld [vmem:[%s868 + $0x4] sm:$0xf]
      %v871 = vld [vmem:[%s868 + $0x8] sm:$0xf]
      %v872 = vld [vmem:[%s868 + $0xc] sm:$0xf]
      %v873 = vld [vmem:[%s868 + $0x10] sm:$0xf]
      %v874 = vld [vmem:[%s868 + $0x14] sm:$0xf]
      %v875 = vld [vmem:[%s868 + $0x18] sm:$0xf]
      %v876 = vld [vmem:[%s868 + $0x1c] sm:$0xf]
      %v877 = vld [vmem:[%s868 + $0x20] sm:$0xf]
      %v878 = vld [vmem:[%s868 + $0x24] sm:$0xf]
      %v879 = vld [vmem:[%s868 + $0x28] sm:$0xf]
      %v880 = vld [vmem:[%s868 + $0x2c] sm:$0xf]
      %v881 = vld [vmem:[%s868 + $0x30] sm:$0xf]
      %v882 = vld [vmem:[%s868 + $0x34] sm:$0xf]
      %v883 = vld [vmem:[%s868 + $0x38] sm:$0xf]
      %v884 = vld [vmem:[%s868 + $0x3c] sm:$0xf]
      %v901 = vunpack.c.l.b16 %v869
      %v902 = vunpack.c.l.b16 %v870
      %v903 = vunpack.c.l.b16 %v871
      %v904 = vunpack.c.l.b16 %v872
      %v905 = vunpack.c.l.b16 %v873
      %v906 = vunpack.c.l.b16 %v874
      %v907 = vunpack.c.l.b16 %v875
      %v908 = vunpack.c.l.b16 %v876
      %v909 = vunpack.c.l.b16 %v877
      %v910 = vunpack.c.l.b16 %v878
      %v911 = vunpack.c.l.b16 %v879
      %v912 = vunpack.c.l.b16 %v880
      %v913 = vunpack.c.l.b16 %v881
      %v914 = vunpack.c.l.b16 %v882
      %v915 = vunpack.c.l.b16 %v883
      %v916 = vunpack.c.l.b16 %v884
      %v917 = vpack.c.b16 %v902, %v901
      %v918 = vpack.c.b16 %v904, %v903
      %v919 = vpack.c.b16 %v906, %v905
      %v920 = vpack.c.b16 %v908, %v907
      %v921 = vpack.c.b16 %v910, %v909
      %v922 = vpack.c.b16 %v912, %v911
      %v923 = vpack.c.b16 %v914, %v913
      %v924 = vpack.c.b16 %v916, %v915
      %933 = vmatpush.bf16.msra.mxu0 %v924
      %934 = vmatpush.bf16.msra.mxu0 %v923
      %935 = vmatpush.bf16.msra.mxu0 %v922
      %936 = vmatpush.bf16.msra.mxu0 %v921
      %937 = vmatpush.bf16.msra.mxu0 %v920
      %938 = vmatpush.bf16.msra.mxu0 %v919
      %939 = vmatpush.bf16.msra.mxu0 %v918
      %940 = vmatpush.bf16.msra.mxu0 %v917
      %941 = vmatmul.bf16.gmra.mxu0 %v852
      %v942 = vpop.f32.mrf.mxu0
      %v943 = vadd.f32 0.0, %v942
      %v944 = vpop.f32.mrf.mxu0
      %v945 = vadd.f32 0.0, %v944
      %946 = vmatmul.bf16.gmra.mxu0 %v853
      %v947 = vpop.f32.mrf.mxu0
      %v948 = vadd.f32 0.0, %v947
      %v949 = vpop.f32.mrf.mxu0
      %v950 = vadd.f32 0.0, %v949
      %951 = vmatmul.bf16.gmra.mxu0 %v854
      %v952 = vpop.f32.mrf.mxu0
      %v953 = vadd.f32 0.0, %v952
      %v954 = vpop.f32.mrf.mxu0
      %v955 = vadd.f32 0.0, %v954
      %956 = vmatmul.bf16.gmra.mxu0 %v855
      %v957 = vpop.f32.mrf.mxu0
      %v958 = vadd.f32 0.0, %v957
      %v959 = vpop.f32.mrf.mxu0
      %v960 = vadd.f32 0.0, %v959
      %961 = vmatmul.bf16.gmra.mxu0 %v856
      %v962 = vpop.f32.mrf.mxu0
      %v963 = vadd.f32 0.0, %v962
      %v964 = vpop.f32.mrf.mxu0
      %v965 = vadd.f32 0.0, %v964
      %966 = vmatmul.bf16.gmra.mxu0 %v857
      %v967 = vpop.f32.mrf.mxu0
      %v968 = vadd.f32 0.0, %v967
      %v969 = vpop.f32.mrf.mxu0
      %v970 = vadd.f32 0.0, %v969
      %971 = vmatmul.bf16.gmra.mxu0 %v858
      %v972 = vpop.f32.mrf.mxu0
      %v973 = vadd.f32 0.0, %v972
      %v974 = vpop.f32.mrf.mxu0
      %v975 = vadd.f32 0.0, %v974
      %976 = vmatmul.bf16.gmra.mxu0 %v859
      %v977 = vpop.f32.mrf.mxu0
      %v978 = vadd.f32 0.0, %v977
      %v979 = vpop.f32.mrf.mxu0
      %v980 = vadd.f32 0.0, %v979
      %981 = vmatmul.bf16.gmra.mxu0 %v860
      %v982 = vpop.f32.mrf.mxu0
      %v983 = vadd.f32 0.0, %v982
      %v984 = vpop.f32.mrf.mxu0
      %v985 = vadd.f32 0.0, %v984
      %986 = vmatmul.bf16.gmra.mxu0 %v861
      %v987 = vpop.f32.mrf.mxu0
      %v988 = vadd.f32 0.0, %v987
      %v989 = vpop.f32.mrf.mxu0
      %v990 = vadd.f32 0.0, %v989
      %991 = vmatmul.bf16.gmra.mxu0 %v862
      %v992 = vpop.f32.mrf.mxu0
      %v993 = vadd.f32 0.0, %v992
      %v994 = vpop.f32.mrf.mxu0
      %v995 = vadd.f32 0.0, %v994
      %996 = vmatmul.bf16.gmra.mxu0 %v863
      %v997 = vpop.f32.mrf.mxu0
      %v998 = vadd.f32 0.0, %v997
      %v999 = vpop.f32.mrf.mxu0
      %v1000 = vadd.f32 0.0, %v999
      %1001 = vmatmul.bf16.gmra.mxu0 %v864
      %v1002 = vpop.f32.mrf.mxu0
      %v1003 = vadd.f32 0.0, %v1002
      %v1004 = vpop.f32.mrf.mxu0
      %v1005 = vadd.f32 0.0, %v1004
      %1006 = vmatmul.bf16.gmra.mxu0 %v865
      %v1007 = vpop.f32.mrf.mxu0
      %v1008 = vadd.f32 0.0, %v1007
      %v1009 = vpop.f32.mrf.mxu0
      %v1010 = vadd.f32 0.0, %v1009
      %1011 = vmatmul.bf16.gmra.mxu0 %v866
      %v1012 = vpop.f32.mrf.mxu0
      %v1013 = vadd.f32 0.0, %v1012
      %v1014 = vpop.f32.mrf.mxu0
      %v1015 = vadd.f32 0.0, %v1014
      %1016 = vmatmul.bf16.gmra.mxu0 %v867
      %v1017 = vpop.f32.mrf.mxu0
      %v1018 = vadd.f32 0.0, %v1017
      %v1019 = vpop.f32.mrf.mxu0
      %v1020 = vadd.f32 0.0, %v1019
      %1021 = vdwg.mxu0
      %v1022 = vadd.f32 %v820, %v943
      %v1023 = vadd.f32 %v821, %v945
      %v1024 = vadd.f32 %v822, %v948
      %v1025 = vadd.f32 %v823, %v950
      %v1026 = vadd.f32 %v824, %v953
      %v1027 = vadd.f32 %v825, %v955
      %v1028 = vadd.f32 %v826, %v958
      %v1029 = vadd.f32 %v827, %v960
      %v1030 = vadd.f32 %v828, %v963
      %v1031 = vadd.f32 %v829, %v965
      %v1032 = vadd.f32 %v830, %v968
      %v1033 = vadd.f32 %v831, %v970
      %v1034 = vadd.f32 %v832, %v973
      %v1035 = vadd.f32 %v833, %v975
      %v1036 = vadd.f32 %v834, %v978
      %v1037 = vadd.f32 %v835, %v980
      %v1038 = vadd.f32 %v836, %v983
      %v1039 = vadd.f32 %v837, %v985
      %v1040 = vadd.f32 %v838, %v988
      %v1041 = vadd.f32 %v839, %v990
      %v1042 = vadd.f32 %v840, %v993
      %v1043 = vadd.f32 %v841, %v995
      %v1044 = vadd.f32 %v842, %v998
      %v1045 = vadd.f32 %v843, %v1000
      %v1046 = vadd.f32 %v844, %v1003
      %v1047 = vadd.f32 %v845, %v1005
      %v1048 = vadd.f32 %v846, %v1008
      %v1049 = vadd.f32 %v847, %v1010
      %v1050 = vadd.f32 %v848, %v1013
      %v1051 = vadd.f32 %v849, %v1015
      %v1052 = vadd.f32 %v850, %v1018
      %v1053 = vadd.f32 %v851, %v1020
      %1054 = vst [vmem:[#allocation3] sm:$0xff] %v1022
      %1055 = vst [vmem:[#allocation3 + $0x8] sm:$0xff] %v1023
      %1056 = vst [vmem:[#allocation3 + $0x10] sm:$0xff] %v1024
      %1057 = vst [vmem:[#allocation3 + $0x18] sm:$0xff] %v1025
      %1058 = vst [vmem:[#allocation3 + $0x20] sm:$0xff] %v1026
      %1059 = vst [vmem:[#allocation3 + $0x28] sm:$0xff] %v1027
      %1060 = vst [vmem:[#allocation3 + $0x30] sm:$0xff] %v1028
      %1061 = vst [vmem:[#allocation3 + $0x38] sm:$0xff] %v1029
      %1062 = vst [vmem:[#allocation3 + $0x40] sm:$0xff] %v1030
      %1063 = vst [vmem:[#allocation3 + $0x48] sm:$0xff] %v1031
      %1064 = vst [vmem:[#allocation3 + $0x50] sm:$0xff] %v1032
      %1065 = vst [vmem:[#allocation3 + $0x58] sm:$0xff] %v1033
      %1066 = vst [vmem:[#allocation3 + $0x60] sm:$0xff] %v1034
      %1067 = vst [vmem:[#allocation3 + $0x68] sm:$0xff] %v1035
      %1068 = vst [vmem:[#allocation3 + $0x70] sm:$0xff] %v1036
      %1069 = vst [vmem:[#allocation3 + $0x78] sm:$0xff] %v1037
      %1070 = vst [vmem:[#allocation3 + $0x80] sm:$0xff] %v1038
      %1071 = vst [vmem:[#allocation3 + $0x88] sm:$0xff] %v1039
      %1072 = vst [vmem:[#allocation3 + $0x90] sm:$0xff] %v1040
      %1073 = vst [vmem:[#allocation3 + $0x98] sm:$0xff] %v1041
      %1074 = vst [vmem:[#allocation3 + $0xa0] sm:$0xff] %v1042
      %1075 = vst [vmem:[#allocation3 + $0xa8] sm:$0xff] %v1043
      %1076 = vst [vmem:[#allocation3 + $0xb0] sm:$0xff] %v1044
      %1077 = vst [vmem:[#allocation3 + $0xb8] sm:$0xff] %v1045
      %1078 = vst [vmem:[#allocation3 + $0xc0] sm:$0xff] %v1046
      %1079 = vst [vmem:[#allocation3 + $0xc8] sm:$0xff] %v1047
      %1080 = vst [vmem:[#allocation3 + $0xd0] sm:$0xff] %v1048
      %1081 = vst [vmem:[#allocation3 + $0xd8] sm:$0xff] %v1049
      %1082 = vst [vmem:[#allocation3 + $0xe0] sm:$0xff] %v1050
      %1083 = vst [vmem:[#allocation3 + $0xe8] sm:$0xff] %v1051
      %1084 = vst [vmem:[#allocation3 + $0xf0] sm:$0xff] %v1052
      %1085 = vst [vmem:[#allocation3 + $0xf8] sm:$0xff] %v1053
      %v1086 = vld [vmem:[#allocation2 + $0x2] sm:$0xff]
      %v1087 = vld [vmem:[#allocation2 + $0xa] sm:$0xff]
      %v1088 = vld [vmem:[#allocation2 + $0x1a] sm:$0xff]
      %v1089 = vld [vmem:[#allocation2 + $0x22] sm:$0xff]
      %v1090 = vld [vmem:[#allocation2 + $0x32] sm:$0xff]
      %v1091 = vld [vmem:[#allocation2 + $0x3a] sm:$0xff]
      %v1092 = vld [vmem:[#allocation2 + $0x4a] sm:$0xff]
      %v1093 = vld [vmem:[#allocation2 + $0x52] sm:$0xff]
      %v1094 = vld [vmem:[#allocation2 + $0x62] sm:$0xff]
      %v1095 = vld [vmem:[#allocation2 + $0x6a] sm:$0xff]
      %v1096 = vld [vmem:[#allocation2 + $0x7a] sm:$0xff]
      %v1097 = vld [vmem:[#allocation2 + $0x82] sm:$0xff]
      %v1098 = vld [vmem:[#allocation2 + $0x92] sm:$0xff]
      %v1099 = vld [vmem:[#allocation2 + $0x9a] sm:$0xff]
      %v1100 = vld [vmem:[#allocation2 + $0xaa] sm:$0xff]
      %v1101 = vld [vmem:[#allocation2 + $0xb2] sm:$0xff]
      %v1102 = vld [vmem:[#allocation2 + $0xc2] sm:$0xff]
      %v1103 = vld [vmem:[#allocation2 + $0xca] sm:$0xff]
      %v1104 = vld [vmem:[#allocation2 + $0xda] sm:$0xff]
      %v1105 = vld [vmem:[#allocation2 + $0xe2] sm:$0xff]
      %v1106 = vld [vmem:[#allocation2 + $0xf2] sm:$0xff]
      %v1107 = vld [vmem:[#allocation2 + $0xfa] sm:$0xff]
      %v1108 = vld [vmem:[#allocation2 + $0x10a] sm:$0xff]
      %v1109 = vld [vmem:[#allocation2 + $0x112] sm:$0xff]
      %v1110 = vld [vmem:[#allocation2 + $0x122] sm:$0xff]
      %v1111 = vld [vmem:[#allocation2 + $0x12a] sm:$0xff]
      %v1112 = vld [vmem:[#allocation2 + $0x13a] sm:$0xff]
      %v1113 = vld [vmem:[#allocation2 + $0x142] sm:$0xff]
      %v1114 = vld [vmem:[#allocation2 + $0x152] sm:$0xff]
      %v1115 = vld [vmem:[#allocation2 + $0x15a] sm:$0xff]
      %v1116 = vld [vmem:[#allocation2 + $0x16a] sm:$0xff]
      %v1117 = vld [vmem:[#allocation2 + $0x172] sm:$0xff]
      %v1118 = vld [vmem:[#allocation3] sm:$0xff]
      %v1119 = vld [vmem:[#allocation3 + $0x8] sm:$0xff]
      %v1120 = vld [vmem:[#allocation3 + $0x10] sm:$0xff]
      %v1121 = vld [vmem:[#allocation3 + $0x18] sm:$0xff]
      %v1122 = vld [vmem:[#allocation3 + $0x20] sm:$0xff]
      %v1123 = vld [vmem:[#allocation3 + $0x28] sm:$0xff]
      %v1124 = vld [vmem:[#allocation3 + $0x30] sm:$0xff]
      %v1125 = vld [vmem:[#allocation3 + $0x38] sm:$0xff]
      %v1126 = vld [vmem:[#allocation3 + $0x40] sm:$0xff]
      %v1127 = vld [vmem:[#allocation3 + $0x48] sm:$0xff]
      %v1128 = vld [vmem:[#allocation3 + $0x50] sm:$0xff]
      %v1129 = vld [vmem:[#allocation3 + $0x58] sm:$0xff]
      %v1130 = vld [vmem:[#allocation3 + $0x60] sm:$0xff]
      %v1131 = vld [vmem:[#allocation3 + $0x68] sm:$0xff]
      %v1132 = vld [vmem:[#allocation3 + $0x70] sm:$0xff]
      %v1133 = vld [vmem:[#allocation3 + $0x78] sm:$0xff]
      %v1134 = vld [vmem:[#allocation3 + $0x80] sm:$0xff]
      %v1135 = vld [vmem:[#allocation3 + $0x88] sm:$0xff]
      %v1136 = vld [vmem:[#allocation3 + $0x90] sm:$0xff]
      %v1137 = vld [vmem:[#allocation3 + $0x98] sm:$0xff]
      %v1138 = vld [vmem:[#allocation3 + $0xa0] sm:$0xff]
      %v1139 = vld [vmem:[#allocation3 + $0xa8] sm:$0xff]
      %v1140 = vld [vmem:[#allocation3 + $0xb0] sm:$0xff]
      %v1141 = vld [vmem:[#allocation3 + $0xb8] sm:$0xff]
      %v1142 = vld [vmem:[#allocation3 + $0xc0] sm:$0xff]
      %v1143 = vld [vmem:[#allocation3 + $0xc8] sm:$0xff]
      %v1144 = vld [vmem:[#allocation3 + $0xd0] sm:$0xff]
      %v1145 = vld [vmem:[#allocation3 + $0xd8] sm:$0xff]
      %v1146 = vld [vmem:[#allocation3 + $0xe0] sm:$0xff]
      %v1147 = vld [vmem:[#allocation3 + $0xe8] sm:$0xff]
      %v1148 = vld [vmem:[#allocation3 + $0xf0] sm:$0xff]
      %v1149 = vld [vmem:[#allocation3 + $0xf8] sm:$0xff]
      %v1150 = vpack.c.bf16 %v1087, %v1086
      %v1151 = vpack.c.bf16 %v1089, %v1088
      %v1152 = vpack.c.bf16 %v1091, %v1090
      %v1153 = vpack.c.bf16 %v1093, %v1092
      %v1154 = vpack.c.bf16 %v1095, %v1094
      %v1155 = vpack.c.bf16 %v1097, %v1096
      %v1156 = vpack.c.bf16 %v1099, %v1098
      %v1157 = vpack.c.bf16 %v1101, %v1100
      %v1158 = vpack.c.bf16 %v1103, %v1102
      %v1159 = vpack.c.bf16 %v1105, %v1104
      %v1160 = vpack.c.bf16 %v1107, %v1106
      %v1161 = vpack.c.bf16 %v1109, %v1108
      %v1162 = vpack.c.bf16 %v1111, %v1110
      %v1163 = vpack.c.bf16 %v1113, %v1112
      %v1164 = vpack.c.bf16 %v1115, %v1114
      %v1165 = vpack.c.bf16 %v1117, %v1116
      %s1166 = scalar_lea.vmem %s3, 128
      %v1167 = vld [vmem:[%s1166] sm:$0xf]
      %v1168 = vld [vmem:[%s1166 + $0x4] sm:$0xf]
      %v1169 = vld [vmem:[%s1166 + $0x8] sm:$0xf]
      %v1170 = vld [vmem:[%s1166 + $0xc] sm:$0xf]
      %v1171 = vld [vmem:[%s1166 + $0x10] sm:$0xf]
      %v1172 = vld [vmem:[%s1166 + $0x14] sm:$0xf]
      %v1173 = vld [vmem:[%s1166 + $0x18] sm:$0xf]
      %v1174 = vld [vmem:[%s1166 + $0x1c] sm:$0xf]
      %v1175 = vld [vmem:[%s1166 + $0x20] sm:$0xf]
      %v1176 = vld [vmem:[%s1166 + $0x24] sm:$0xf]
      %v1177 = vld [vmem:[%s1166 + $0x28] sm:$0xf]
      %v1178 = vld [vmem:[%s1166 + $0x2c] sm:$0xf]
      %v1179 = vld [vmem:[%s1166 + $0x30] sm:$0xf]
      %v1180 = vld [vmem:[%s1166 + $0x34] sm:$0xf]
      %v1181 = vld [vmem:[%s1166 + $0x38] sm:$0xf]
      %v1182 = vld [vmem:[%s1166 + $0x3c] sm:$0xf]
      %v1199 = vunpack.c.l.b16 %v1167
      %v1200 = vunpack.c.l.b16 %v1168
      %v1201 = vunpack.c.l.b16 %v1169
      %v1202 = vunpack.c.l.b16 %v1170
      %v1203 = vunpack.c.l.b16 %v1171
      %v1204 = vunpack.c.l.b16 %v1172
      %v1205 = vunpack.c.l.b16 %v1173
      %v1206 = vunpack.c.l.b16 %v1174
      %v1207 = vunpack.c.l.b16 %v1175
      %v1208 = vunpack.c.l.b16 %v1176
      %v1209 = vunpack.c.l.b16 %v1177
      %v1210 = vunpack.c.l.b16 %v1178
      %v1211 = vunpack.c.l.b16 %v1179
      %v1212 = vunpack.c.l.b16 %v1180
      %v1213 = vunpack.c.l.b16 %v1181
      %v1214 = vunpack.c.l.b16 %v1182
      %v1215 = vpack.c.b16 %v1200, %v1199
      %v1216 = vpack.c.b16 %v1202, %v1201
      %v1217 = vpack.c.b16 %v1204, %v1203
      %v1218 = vpack.c.b16 %v1206, %v1205
      %v1219 = vpack.c.b16 %v1208, %v1207
      %v1220 = vpack.c.b16 %v1210, %v1209
      %v1221 = vpack.c.b16 %v1212, %v1211
      %v1222 = vpack.c.b16 %v1214, %v1213
      %1231 = vmatpush.bf16.msra.mxu0 %v1222
      %1232 = vmatpush.bf16.msra.mxu0 %v1221
      %1233 = vmatpush.bf16.msra.mxu0 %v1220
      %1234 = vmatpush.bf16.msra.mxu0 %v1219
      %1235 = vmatpush.bf16.msra.mxu0 %v1218
      %1236 = vmatpush.bf16.msra.mxu0 %v1217
      %1237 = vmatpush.bf16.msra.mxu0 %v1216
      %1238 = vmatpush.bf16.msra.mxu0 %v1215
      %1239 = vmatmul.bf16.gmra.mxu0 %v1150
      %v1240 = vpop.f32.mrf.mxu0
      %v1241 = vadd.f32 0.0, %v1240
      %v1242 = vpop.f32.mrf.mxu0
      %v1243 = vadd.f32 0.0, %v1242
      %1244 = vmatmul.bf16.gmra.mxu0 %v1151
      %v1245 = vpop.f32.mrf.mxu0
      %v1246 = vadd.f32 0.0, %v1245
      %v1247 = vpop.f32.mrf.mxu0
      %v1248 = vadd.f32 0.0, %v1247
      %1249 = vmatmul.bf16.gmra.mxu0 %v1152
      %v1250 = vpop.f32.mrf.mxu0
      %v1251 = vadd.f32 0.0, %v1250
      %v1252 = vpop.f32.mrf.mxu0
      %v1253 = vadd.f32 0.0, %v1252
      %1254 = vmatmul.bf16.gmra.mxu0 %v1153
      %v1255 = vpop.f32.mrf.mxu0
      %v1256 = vadd.f32 0.0, %v1255
      %v1257 = vpop.f32.mrf.mxu0
      %v1258 = vadd.f32 0.0, %v1257
      %1259 = vmatmul.bf16.gmra.mxu0 %v1154
      %v1260 = vpop.f32.mrf.mxu0
      %v1261 = vadd.f32 0.0, %v1260
      %v1262 = vpop.f32.mrf.mxu0
      %v1263 = vadd.f32 0.0, %v1262
      %1264 = vmatmul.bf16.gmra.mxu0 %v1155
      %v1265 = vpop.f32.mrf.mxu0
      %v1266 = vadd.f32 0.0, %v1265
      %v1267 = vpop.f32.mrf.mxu0
      %v1268 = vadd.f32 0.0, %v1267
      %1269 = vmatmul.bf16.gmra.mxu0 %v1156
      %v1270 = vpop.f32.mrf.mxu0
      %v1271 = vadd.f32 0.0, %v1270
      %v1272 = vpop.f32.mrf.mxu0
      %v1273 = vadd.f32 0.0, %v1272
      %1274 = vmatmul.bf16.gmra.mxu0 %v1157
      %v1275 = vpop.f32.mrf.mxu0
      %v1276 = vadd.f32 0.0, %v1275
      %v1277 = vpop.f32.mrf.mxu0
      %v1278 = vadd.f32 0.0, %v1277
      %1279 = vmatmul.bf16.gmra.mxu0 %v1158
      %v1280 = vpop.f32.mrf.mxu0
      %v1281 = vadd.f32 0.0, %v1280
      %v1282 = vpop.f32.mrf.mxu0
      %v1283 = vadd.f32 0.0, %v1282
      %1284 = vmatmul.bf16.gmra.mxu0 %v1159
      %v1285 = vpop.f32.mrf.mxu0
      %v1286 = vadd.f32 0.0, %v1285
      %v1287 = vpop.f32.mrf.mxu0
      %v1288 = vadd.f32 0.0, %v1287
      %1289 = vmatmul.bf16.gmra.mxu0 %v1160
      %v1290 = vpop.f32.mrf.mxu0
      %v1291 = vadd.f32 0.0, %v1290
      %v1292 = vpop.f32.mrf.mxu0
      %v1293 = vadd.f32 0.0, %v1292
      %1294 = vmatmul.bf16.gmra.mxu0 %v1161
      %v1295 = vpop.f32.mrf.mxu0
      %v1296 = vadd.f32 0.0, %v1295
      %v1297 = vpop.f32.mrf.mxu0
      %v1298 = vadd.f32 0.0, %v1297
      %1299 = vmatmul.bf16.gmra.mxu0 %v1162
      %v1300 = vpop.f32.mrf.mxu0
      %v1301 = vadd.f32 0.0, %v1300
      %v1302 = vpop.f32.mrf.mxu0
      %v1303 = vadd.f32 0.0, %v1302
      %1304 = vmatmul.bf16.gmra.mxu0 %v1163
      %v1305 = vpop.f32.mrf.mxu0
      %v1306 = vadd.f32 0.0, %v1305
      %v1307 = vpop.f32.mrf.mxu0
      %v1308 = vadd.f32 0.0, %v1307
      %1309 = vmatmul.bf16.gmra.mxu0 %v1164
      %v1310 = vpop.f32.mrf.mxu0
      %v1311 = vadd.f32 0.0, %v1310
      %v1312 = vpop.f32.mrf.mxu0
      %v1313 = vadd.f32 0.0, %v1312
      %1314 = vmatmul.bf16.gmra.mxu0 %v1165
      %v1315 = vpop.f32.mrf.mxu0
      %v1316 = vadd.f32 0.0, %v1315
      %v1317 = vpop.f32.mrf.mxu0
      %v1318 = vadd.f32 0.0, %v1317
      %1319 = vdwg.mxu0
      %v1320 = vadd.f32 %v1118, %v1241
      %v1321 = vadd.f32 %v1119, %v1243
      %v1322 = vadd.f32 %v1120, %v1246
      %v1323 = vadd.f32 %v1121, %v1248
      %v1324 = vadd.f32 %v1122, %v1251
      %v1325 = vadd.f32 %v1123, %v1253
      %v1326 = vadd.f32 %v1124, %v1256
      %v1327 = vadd.f32 %v1125, %v1258
      %v1328 = vadd.f32 %v1126, %v1261
      %v1329 = vadd.f32 %v1127, %v1263
      %v1330 = vadd.f32 %v1128, %v1266
      %v1331 = vadd.f32 %v1129, %v1268
      %v1332 = vadd.f32 %v1130, %v1271
      %v1333 = vadd.f32 %v1131, %v1273
      %v1334 = vadd.f32 %v1132, %v1276
      %v1335 = vadd.f32 %v1133, %v1278
      %v1336 = vadd.f32 %v1134, %v1281
      %v1337 = vadd.f32 %v1135, %v1283
      %v1338 = vadd.f32 %v1136, %v1286
      %v1339 = vadd.f32 %v1137, %v1288
      %v1340 = vadd.f32 %v1138, %v1291
      %v1341 = vadd.f32 %v1139, %v1293
      %v1342 = vadd.f32 %v1140, %v1296
      %v1343 = vadd.f32 %v1141, %v1298
      %v1344 = vadd.f32 %v1142, %v1301
      %v1345 = vadd.f32 %v1143, %v1303
      %v1346 = vadd.f32 %v1144, %v1306
      %v1347 = vadd.f32 %v1145, %v1308
      %v1348 = vadd.f32 %v1146, %v1311
      %v1349 = vadd.f32 %v1147, %v1313
      %v1350 = vadd.f32 %v1148, %v1316
      %v1351 = vadd.f32 %v1149, %v1318
      %1352 = vst [vmem:[#allocation3] sm:$0xff] %v1320
      %1353 = vst [vmem:[#allocation3 + $0x8] sm:$0xff] %v1321
      %1354 = vst [vmem:[#allocation3 + $0x10] sm:$0xff] %v1322
      %1355 = vst [vmem:[#allocation3 + $0x18] sm:$0xff] %v1323
      %1356 = vst [vmem:[#allocation3 + $0x20] sm:$0xff] %v1324
      %1357 = vst [vmem:[#allocation3 + $0x28] sm:$0xff] %v1325
      %1358 = vst [vmem:[#allocation3 + $0x30] sm:$0xff] %v1326
      %1359 = vst [vmem:[#allocation3 + $0x38] sm:$0xff] %v1327
      %1360 = vst [vmem:[#allocation3 + $0x40] sm:$0xff] %v1328
      %1361 = vst [vmem:[#allocation3 + $0x48] sm:$0xff] %v1329
      %1362 = vst [vmem:[#allocation3 + $0x50] sm:$0xff] %v1330
      %1363 = vst [vmem:[#allocation3 + $0x58] sm:$0xff] %v1331
      %1364 = vst [vmem:[#allocation3 + $0x60] sm:$0xff] %v1332
      %1365 = vst [vmem:[#allocation3 + $0x68] sm:$0xff] %v1333
      %1366 = vst [vmem:[#allocation3 + $0x70] sm:$0xff] %v1334
      %1367 = vst [vmem:[#allocation3 + $0x78] sm:$0xff] %v1335
      %1368 = vst [vmem:[#allocation3 + $0x80] sm:$0xff] %v1336
      %1369 = vst [vmem:[#allocation3 + $0x88] sm:$0xff] %v1337
      %1370 = vst [vmem:[#allocation3 + $0x90] sm:$0xff] %v1338
      %1371 = vst [vmem:[#allocation3 + $0x98] sm:$0xff] %v1339
      %1372 = vst [vmem:[#allocation3 + $0xa0] sm:$0xff] %v1340
      %1373 = vst [vmem:[#allocation3 + $0xa8] sm:$0xff] %v1341
      %1374 = vst [vmem:[#allocation3 + $0xb0] sm:$0xff] %v1342
      %1375 = vst [vmem:[#allocation3 + $0xb8] sm:$0xff] %v1343
      %1376 = vst [vmem:[#allocation3 + $0xc0] sm:$0xff] %v1344
      %1377 = vst [vmem:[#allocation3 + $0xc8] sm:$0xff] %v1345
      %1378 = vst [vmem:[#allocation3 + $0xd0] sm:$0xff] %v1346
      %1379 = vst [vmem:[#allocation3 + $0xd8] sm:$0xff] %v1347
      %1380 = vst [vmem:[#allocation3 + $0xe0] sm:$0xff] %v1348
      %1381 = vst [vmem:[#allocation3 + $0xe8] sm:$0xff] %v1349
      %1382 = vst [vmem:[#allocation3 + $0xf0] sm:$0xff] %v1350
      %1383 = vst [vmem:[#allocation3 + $0xf8] sm:$0xff] %v1351
      %v1384 = vld [vmem:[%s426] sm:$0xff]
      %v1385 = vld [vmem:[%s426 + $0x8] sm:$0xff]
      %v1386 = vld [vmem:[%s426 + $0x18] sm:$0xff]
      %v1387 = vld [vmem:[%s426 + $0x20] sm:$0xff]
      %v1388 = vld [vmem:[%s426 + $0x30] sm:$0xff]
      %v1389 = vld [vmem:[%s426 + $0x38] sm:$0xff]
      %v1390 = vld [vmem:[%s426 + $0x48] sm:$0xff]
      %v1391 = vld [vmem:[%s426 + $0x50] sm:$0xff]
      %v1392 = vld [vmem:[%s426 + $0x60] sm:$0xff]
      %v1393 = vld [vmem:[%s426 + $0x68] sm:$0xff]
      %v1394 = vld [vmem:[%s426 + $0x78] sm:$0xff]
      %v1395 = vld [vmem:[%s426 + $0x80] sm:$0xff]
      %v1396 = vld [vmem:[%s426 + $0x90] sm:$0xff]
      %v1397 = vld [vmem:[%s426 + $0x98] sm:$0xff]
      %v1398 = vld [vmem:[%s426 + $0xa8] sm:$0xff]
      %v1399 = vld [vmem:[%s426 + $0xb0] sm:$0xff]
      %v1400 = vld [vmem:[%s426 + $0xc0] sm:$0xff]
      %v1401 = vld [vmem:[%s426 + $0xc8] sm:$0xff]
      %v1402 = vld [vmem:[%s426 + $0xd8] sm:$0xff]
      %v1403 = vld [vmem:[%s426 + $0xe0] sm:$0xff]
      %v1404 = vld [vmem:[%s426 + $0xf0] sm:$0xff]
      %v1405 = vld [vmem:[%s426 + $0xf8] sm:$0xff]
      %v1406 = vld [vmem:[%s426 + $0x108] sm:$0xff]
      %v1407 = vld [vmem:[%s426 + $0x110] sm:$0xff]
      %v1408 = vld [vmem:[%s426 + $0x120] sm:$0xff]
      %v1409 = vld [vmem:[%s426 + $0x128] sm:$0xff]
      %v1410 = vld [vmem:[%s426 + $0x138] sm:$0xff]
      %v1411 = vld [vmem:[%s426 + $0x140] sm:$0xff]
      %v1412 = vld [vmem:[%s426 + $0x150] sm:$0xff]
      %v1413 = vld [vmem:[%s426 + $0x158] sm:$0xff]
      %v1414 = vld [vmem:[%s426 + $0x168] sm:$0xff]
      %v1415 = vld [vmem:[%s426 + $0x170] sm:$0xff]
      %v1416 = vld [vmem:[#allocation3] sm:$0xff]
      %v1417 = vld [vmem:[#allocation3 + $0x8] sm:$0xff]
      %v1418 = vld [vmem:[#allocation3 + $0x10] sm:$0xff]
      %v1419 = vld [vmem:[#allocation3 + $0x18] sm:$0xff]
      %v1420 = vld [vmem:[#allocation3 + $0x20] sm:$0xff]
      %v1421 = vld [vmem:[#allocation3 + $0x28] sm:$0xff]
      %v1422 = vld [vmem:[#allocation3 + $0x30] sm:$0xff]
      %v1423 = vld [vmem:[#allocation3 + $0x38] sm:$0xff]
      %v1424 = vld [vmem:[#allocation3 + $0x40] sm:$0xff]
      %v1425 = vld [vmem:[#allocation3 + $0x48] sm:$0xff]
      %v1426 = vld [vmem:[#allocation3 + $0x50] sm:$0xff]
      %v1427 = vld [vmem:[#allocation3 + $0x58] sm:$0xff]
      %v1428 = vld [vmem:[#allocation3 + $0x60] sm:$0xff]
      %v1429 = vld [vmem:[#allocation3 + $0x68] sm:$0xff]
      %v1430 = vld [vmem:[#allocation3 + $0x70] sm:$0xff]
      %v1431 = vld [vmem:[#allocation3 + $0x78] sm:$0xff]
      %v1432 = vld [vmem:[#allocation3 + $0x80] sm:$0xff]
      %v1433 = vld [vmem:[#allocation3 + $0x88] sm:$0xff]
      %v1434 = vld [vmem:[#allocation3 + $0x90] sm:$0xff]
      %v1435 = vld [vmem:[#allocation3 + $0x98] sm:$0xff]
      %v1436 = vld [vmem:[#allocation3 + $0xa0] sm:$0xff]
      %v1437 = vld [vmem:[#allocation3 + $0xa8] sm:$0xff]
      %v1438 = vld [vmem:[#allocation3 + $0xb0] sm:$0xff]
      %v1439 = vld [vmem:[#allocation3 + $0xb8] sm:$0xff]
      %v1440 = vld [vmem:[#allocation3 + $0xc0] sm:$0xff]
      %v1441 = vld [vmem:[#allocation3 + $0xc8] sm:$0xff]
      %v1442 = vld [vmem:[#allocation3 + $0xd0] sm:$0xff]
      %v1443 = vld [vmem:[#allocation3 + $0xd8] sm:$0xff]
      %v1444 = vld [vmem:[#allocation3 + $0xe0] sm:$0xff]
      %v1445 = vld [vmem:[#allocation3 + $0xe8] sm:$0xff]
      %v1446 = vld [vmem:[#allocation3 + $0xf0] sm:$0xff]
      %v1447 = vld [vmem:[#allocation3 + $0xf8] sm:$0xff]
      %v1448 = vpack.c.bf16 %v1385, %v1384
      %v1449 = vpack.c.bf16 %v1387, %v1386
      %v1450 = vpack.c.bf16 %v1389, %v1388
      %v1451 = vpack.c.bf16 %v1391, %v1390
      %v1452 = vpack.c.bf16 %v1393, %v1392
      %v1453 = vpack.c.bf16 %v1395, %v1394
      %v1454 = vpack.c.bf16 %v1397, %v1396
      %v1455 = vpack.c.bf16 %v1399, %v1398
      %v1456 = vpack.c.bf16 %v1401, %v1400
      %v1457 = vpack.c.bf16 %v1403, %v1402
      %v1458 = vpack.c.bf16 %v1405, %v1404
      %v1459 = vpack.c.bf16 %v1407, %v1406
      %v1460 = vpack.c.bf16 %v1409, %v1408
      %v1461 = vpack.c.bf16 %v1411, %v1410
      %v1462 = vpack.c.bf16 %v1413, %v1412
      %v1463 = vpack.c.bf16 %v1415, %v1414
      %s1464 = scalar_lea.vmem %s3, 192
      %v1465 = vld [vmem:[%s1464] sm:$0xf]
      %v1466 = vld [vmem:[%s1464 + $0x4] sm:$0xf]
      %v1467 = vld [vmem:[%s1464 + $0x8] sm:$0xf]
      %v1468 = vld [vmem:[%s1464 + $0xc] sm:$0xf]
      %v1469 = vld [vmem:[%s1464 + $0x10] sm:$0xf]
      %v1470 = vld [vmem:[%s1464 + $0x14] sm:$0xf]
      %v1471 = vld [vmem:[%s1464 + $0x18] sm:$0xf]
      %v1472 = vld [vmem:[%s1464 + $0x1c] sm:$0xf]
      %v1473 = vld [vmem:[%s1464 + $0x20] sm:$0xf]
      %v1474 = vld [vmem:[%s1464 + $0x24] sm:$0xf]
      %v1475 = vld [vmem:[%s1464 + $0x28] sm:$0xf]
      %v1476 = vld [vmem:[%s1464 + $0x2c] sm:$0xf]
      %v1477 = vld [vmem:[%s1464 + $0x30] sm:$0xf]
      %v1478 = vld [vmem:[%s1464 + $0x34] sm:$0xf]
      %v1479 = vld [vmem:[%s1464 + $0x38] sm:$0xf]
      %v1480 = vld [vmem:[%s1464 + $0x3c] sm:$0xf]
      %v1497 = vunpack.c.l.b16 %v1465
      %v1498 = vunpack.c.l.b16 %v1466
      %v1499 = vunpack.c.l.b16 %v1467
      %v1500 = vunpack.c.l.b16 %v1468
      %v1501 = vunpack.c.l.b16 %v1469
      %v1502 = vunpack.c.l.b16 %v1470
      %v1503 = vunpack.c.l.b16 %v1471
      %v1504 = vunpack.c.l.b16 %v1472
      %v1505 = vunpack.c.l.b16 %v1473
      %v1506 = vunpack.c.l.b16 %v1474
      %v1507 = vunpack.c.l.b16 %v1475
      %v1508 = vunpack.c.l.b16 %v1476
      %v1509 = vunpack.c.l.b16 %v1477
      %v1510 = vunpack.c.l.b16 %v1478
      %v1511 = vunpack.c.l.b16 %v1479
      %v1512 = vunpack.c.l.b16 %v1480
      %v1513 = vpack.c.b16 %v1498, %v1497
      %v1514 = vpack.c.b16 %v1500, %v1499
      %v1515 = vpack.c.b16 %v1502, %v1501
      %v1516 = vpack.c.b16 %v1504, %v1503
      %v1517 = vpack.c.b16 %v1506, %v1505
      %v1518 = vpack.c.b16 %v1508, %v1507
      %v1519 = vpack.c.b16 %v1510, %v1509
      %v1520 = vpack.c.b16 %v1512, %v1511
      %1529 = vmatpush.bf16.msra.mxu0 %v1520
      %1530 = vmatpush.bf16.msra.mxu0 %v1519
      %1531 = vmatpush.bf16.msra.mxu0 %v1518
      %1532 = vmatpush.bf16.msra.mxu0 %v1517
      %1533 = vmatpush.bf16.msra.mxu0 %v1516
      %1534 = vmatpush.bf16.msra.mxu0 %v1515
      %1535 = vmatpush.bf16.msra.mxu0 %v1514
      %1536 = vmatpush.bf16.msra.mxu0 %v1513
      %1537 = vmatmul.bf16.gmra.mxu0 %v1448
      %v1538 = vpop.f32.mrf.mxu0
      %v1539 = vadd.f32 0.0, %v1538
      %v1540 = vpop.f32.mrf.mxu0
      %v1541 = vadd.f32 0.0, %v1540
      %1542 = vmatmul.bf16.gmra.mxu0 %v1449
      %v1543 = vpop.f32.mrf.mxu0
      %v1544 = vadd.f32 0.0, %v1543
      %v1545 = vpop.f32.mrf.mxu0
      %v1546 = vadd.f32 0.0, %v1545
      %1547 = vmatmul.bf16.gmra.mxu0 %v1450
      %v1548 = vpop.f32.mrf.mxu0
      %v1549 = vadd.f32 0.0, %v1548
      %v1550 = vpop.f32.mrf.mxu0
      %v1551 = vadd.f32 0.0, %v1550
      %1552 = vmatmul.bf16.gmra.mxu0 %v1451
      %v1553 = vpop.f32.mrf.mxu0
      %v1554 = vadd.f32 0.0, %v1553
      %v1555 = vpop.f32.mrf.mxu0
      %v1556 = vadd.f32 0.0, %v1555
      %1557 = vmatmul.bf16.gmra.mxu0 %v1452
      %v1558 = vpop.f32.mrf.mxu0
      %v1559 = vadd.f32 0.0, %v1558
      %v1560 = vpop.f32.mrf.mxu0
      %v1561 = vadd.f32 0.0, %v1560
      %1562 = vmatmul.bf16.gmra.mxu0 %v1453
      %v1563 = vpop.f32.mrf.mxu0
      %v1564 = vadd.f32 0.0, %v1563
      %v1565 = vpop.f32.mrf.mxu0
      %v1566 = vadd.f32 0.0, %v1565
      %1567 = vmatmul.bf16.gmra.mxu0 %v1454
      %v1568 = vpop.f32.mrf.mxu0
      %v1569 = vadd.f32 0.0, %v1568
      %v1570 = vpop.f32.mrf.mxu0
      %v1571 = vadd.f32 0.0, %v1570
      %1572 = vmatmul.bf16.gmra.mxu0 %v1455
      %v1573 = vpop.f32.mrf.mxu0
      %v1574 = vadd.f32 0.0, %v1573
      %v1575 = vpop.f32.mrf.mxu0
      %v1576 = vadd.f32 0.0, %v1575
      %1577 = vmatmul.bf16.gmra.mxu0 %v1456
      %v1578 = vpop.f32.mrf.mxu0
      %v1579 = vadd.f32 0.0, %v1578
      %v1580 = vpop.f32.mrf.mxu0
      %v1581 = vadd.f32 0.0, %v1580
      %1582 = vmatmul.bf16.gmra.mxu0 %v1457
      %v1583 = vpop.f32.mrf.mxu0
      %v1584 = vadd.f32 0.0, %v1583
      %v1585 = vpop.f32.mrf.mxu0
      %v1586 = vadd.f32 0.0, %v1585
      %1587 = vmatmul.bf16.gmra.mxu0 %v1458
      %v1588 = vpop.f32.mrf.mxu0
      %v1589 = vadd.f32 0.0, %v1588
      %v1590 = vpop.f32.mrf.mxu0
      %v1591 = vadd.f32 0.0, %v1590
      %1592 = vmatmul.bf16.gmra.mxu0 %v1459
      %v1593 = vpop.f32.mrf.mxu0
      %v1594 = vadd.f32 0.0, %v1593
      %v1595 = vpop.f32.mrf.mxu0
      %v1596 = vadd.f32 0.0, %v1595
      %1597 = vmatmul.bf16.gmra.mxu0 %v1460
      %v1598 = vpop.f32.mrf.mxu0
      %v1599 = vadd.f32 0.0, %v1598
      %v1600 = vpop.f32.mrf.mxu0
      %v1601 = vadd.f32 0.0, %v1600
      %1602 = vmatmul.bf16.gmra.mxu0 %v1461
      %v1603 = vpop.f32.mrf.mxu0
      %v1604 = vadd.f32 0.0, %v1603
      %v1605 = vpop.f32.mrf.mxu0
      %v1606 = vadd.f32 0.0, %v1605
      %1607 = vmatmul.bf16.gmra.mxu0 %v1462
      %v1608 = vpop.f32.mrf.mxu0
      %v1609 = vadd.f32 0.0, %v1608
      %v1610 = vpop.f32.mrf.mxu0
      %v1611 = vadd.f32 0.0, %v1610
      %1612 = vmatmul.bf16.gmra.mxu0 %v1463
      %v1613 = vpop.f32.mrf.mxu0
      %v1614 = vadd.f32 0.0, %v1613
      %v1615 = vpop.f32.mrf.mxu0
      %v1616 = vadd.f32 0.0, %v1615
      %1617 = vdwg.mxu0
      %v1618 = vadd.f32 %v1416, %v1539
      %v1619 = vadd.f32 %v1417, %v1541
      %v1620 = vadd.f32 %v1418, %v1544
      %v1621 = vadd.f32 %v1419, %v1546
      %v1622 = vadd.f32 %v1420, %v1549
      %v1623 = vadd.f32 %v1421, %v1551
      %v1624 = vadd.f32 %v1422, %v1554
      %v1625 = vadd.f32 %v1423, %v1556
      %v1626 = vadd.f32 %v1424, %v1559
      %v1627 = vadd.f32 %v1425, %v1561
      %v1628 = vadd.f32 %v1426, %v1564
      %v1629 = vadd.f32 %v1427, %v1566
      %v1630 = vadd.f32 %v1428, %v1569
      %v1631 = vadd.f32 %v1429, %v1571
      %v1632 = vadd.f32 %v1430, %v1574
      %v1633 = vadd.f32 %v1431, %v1576
      %v1634 = vadd.f32 %v1432, %v1579
      %v1635 = vadd.f32 %v1433, %v1581
      %v1636 = vadd.f32 %v1434, %v1584
      %v1637 = vadd.f32 %v1435, %v1586
      %v1638 = vadd.f32 %v1436, %v1589
      %v1639 = vadd.f32 %v1437, %v1591
      %v1640 = vadd.f32 %v1438, %v1594
      %v1641 = vadd.f32 %v1439, %v1596
      %v1642 = vadd.f32 %v1440, %v1599
      %v1643 = vadd.f32 %v1441, %v1601
      %v1644 = vadd.f32 %v1442, %v1604
      %v1645 = vadd.f32 %v1443, %v1606
      %v1646 = vadd.f32 %v1444, %v1609
      %v1647 = vadd.f32 %v1445, %v1611
      %v1648 = vadd.f32 %v1446, %v1614
      %v1649 = vadd.f32 %v1447, %v1616
      %1650 = vst [vmem:[#allocation3] sm:$0xff] %v1618
      %1651 = vst [vmem:[#allocation3 + $0x8] sm:$0xff] %v1619
      %1652 = vst [vmem:[#allocation3 + $0x10] sm:$0xff] %v1620
      %1653 = vst [vmem:[#allocation3 + $0x18] sm:$0xff] %v1621
      %1654 = vst [vmem:[#allocation3 + $0x20] sm:$0xff] %v1622
      %1655 = vst [vmem:[#allocation3 + $0x28] sm:$0xff] %v1623
      %1656 = vst [vmem:[#allocation3 + $0x30] sm:$0xff] %v1624
      %1657 = vst [vmem:[#allocation3 + $0x38] sm:$0xff] %v1625
      %1658 = vst [vmem:[#allocation3 + $0x40] sm:$0xff] %v1626
      %1659 = vst [vmem:[#allocation3 + $0x48] sm:$0xff] %v1627
      %1660 = vst [vmem:[#allocation3 + $0x50] sm:$0xff] %v1628
      %1661 = vst [vmem:[#allocation3 + $0x58] sm:$0xff] %v1629
      %1662 = vst [vmem:[#allocation3 + $0x60] sm:$0xff] %v1630
      %1663 = vst [vmem:[#allocation3 + $0x68] sm:$0xff] %v1631
      %1664 = vst [vmem:[#allocation3 + $0x70] sm:$0xff] %v1632
      %1665 = vst [vmem:[#allocation3 + $0x78] sm:$0xff] %v1633
      %1666 = vst [vmem:[#allocation3 + $0x80] sm:$0xff] %v1634
      %1667 = vst [vmem:[#allocation3 + $0x88] sm:$0xff] %v1635
      %1668 = vst [vmem:[#allocation3 + $0x90] sm:$0xff] %v1636
      %1669 = vst [vmem:[#allocation3 + $0x98] sm:$0xff] %v1637
      %1670 = vst [vmem:[#allocation3 + $0xa0] sm:$0xff] %v1638
      %1671 = vst [vmem:[#allocation3 + $0xa8] sm:$0xff] %v1639
      %1672 = vst [vmem:[#allocation3 + $0xb0] sm:$0xff] %v1640
      %1673 = vst [vmem:[#allocation3 + $0xb8] sm:$0xff] %v1641
      %1674 = vst [vmem:[#allocation3 + $0xc0] sm:$0xff] %v1642
      %1675 = vst [vmem:[#allocation3 + $0xc8] sm:$0xff] %v1643
      %1676 = vst [vmem:[#allocation3 + $0xd0] sm:$0xff] %v1644
      %1677 = vst [vmem:[#allocation3 + $0xd8] sm:$0xff] %v1645
      %1678 = vst [vmem:[#allocation3 + $0xe0] sm:$0xff] %v1646
      %1679 = vst [vmem:[#allocation3 + $0xe8] sm:$0xff] %v1647
      %1680 = vst [vmem:[#allocation3 + $0xf0] sm:$0xff] %v1648
      %1681 = vst [vmem:[#allocation3 + $0xf8] sm:$0xff] %v1649
      %v1682 = vld [vmem:[%s426 + $0x1] sm:$0xff]
      %v1683 = vld [vmem:[%s426 + $0x9] sm:$0xff]
      %v1684 = vld [vmem:[%s426 + $0x19] sm:$0xff]
      %v1685 = vld [vmem:[%s426 + $0x21] sm:$0xff]
      %v1686 = vld [vmem:[%s426 + $0x31] sm:$0xff]
      %v1687 = vld [vmem:[%s426 + $0x39] sm:$0xff]
      %v1688 = vld [vmem:[%s426 + $0x49] sm:$0xff]
      %v1689 = vld [vmem:[%s426 + $0x51] sm:$0xff]
      %v1690 = vld [vmem:[%s426 + $0x61] sm:$0xff]
      %v1691 = vld [vmem:[%s426 + $0x69] sm:$0xff]
      %v1692 = vld [vmem:[%s426 + $0x79] sm:$0xff]
      %v1693 = vld [vmem:[%s426 + $0x81] sm:$0xff]
      %v1694 = vld [vmem:[%s426 + $0x91] sm:$0xff]
      %v1695 = vld [vmem:[%s426 + $0x99] sm:$0xff]
      %v1696 = vld [vmem:[%s426 + $0xa9] sm:$0xff]
      %v1697 = vld [vmem:[%s426 + $0xb1] sm:$0xff]
      %v1698 = vld [vmem:[%s426 + $0xc1] sm:$0xff]
      %v1699 = vld [vmem:[%s426 + $0xc9] sm:$0xff]
      %v1700 = vld [vmem:[%s426 + $0xd9] sm:$0xff]
      %v1701 = vld [vmem:[%s426 + $0xe1] sm:$0xff]
      %v1702 = vld [vmem:[%s426 + $0xf1] sm:$0xff]
      %v1703 = vld [vmem:[%s426 + $0xf9] sm:$0xff]
      %v1704 = vld [vmem:[%s426 + $0x109] sm:$0xff]
      %v1705 = vld [vmem:[%s426 + $0x111] sm:$0xff]
      %v1706 = vld [vmem:[%s426 + $0x121] sm:$0xff]
      %v1707 = vld [vmem:[%s426 + $0x129] sm:$0xff]
      %v1708 = vld [vmem:[%s426 + $0x139] sm:$0xff]
      %v1709 = vld [vmem:[%s426 + $0x141] sm:$0xff]
      %v1710 = vld [vmem:[%s426 + $0x151] sm:$0xff]
      %v1711 = vld [vmem:[%s426 + $0x159] sm:$0xff]
      %v1712 = vld [vmem:[%s426 + $0x169] sm:$0xff]
      %v1713 = vld [vmem:[%s426 + $0x171] sm:$0xff]
      %v1714 = vld [vmem:[#allocation3] sm:$0xff]
      %v1715 = vld [vmem:[#allocation3 + $0x8] sm:$0xff]
      %v1716 = vld [vmem:[#allocation3 + $0x10] sm:$0xff]
      %v1717 = vld [vmem:[#allocation3 + $0x18] sm:$0xff]
      %v1718 = vld [vmem:[#allocation3 + $0x20] sm:$0xff]
      %v1719 = vld [vmem:[#allocation3 + $0x28] sm:$0xff]
      %v1720 = vld [vmem:[#allocation3 + $0x30] sm:$0xff]
      %v1721 = vld [vmem:[#allocation3 + $0x38] sm:$0xff]
      %v1722 = vld [vmem:[#allocation3 + $0x40] sm:$0xff]
      %v1723 = vld [vmem:[#allocation3 + $0x48] sm:$0xff]
      %v1724 = vld [vmem:[#allocation3 + $0x50] sm:$0xff]
      %v1725 = vld [vmem:[#allocation3 + $0x58] sm:$0xff]
      %v1726 = vld [vmem:[#allocation3 + $0x60] sm:$0xff]
      %v1727 = vld [vmem:[#allocation3 + $0x68] sm:$0xff]
      %v1728 = vld [vmem:[#allocation3 + $0x70] sm:$0xff]
      %v1729 = vld [vmem:[#allocation3 + $0x78] sm:$0xff]
      %v1730 = vld [vmem:[#allocation3 + $0x80] sm:$0xff]
      %v1731 = vld [vmem:[#allocation3 + $0x88] sm:$0xff]
      %v1732 = vld [vmem:[#allocation3 + $0x90] sm:$0xff]
      %v1733 = vld [vmem:[#allocation3 + $0x98] sm:$0xff]
      %v1734 = vld [vmem:[#allocation3 + $0xa0] sm:$0xff]
      %v1735 = vld [vmem:[#allocation3 + $0xa8] sm:$0xff]
      %v1736 = vld [vmem:[#allocation3 + $0xb0] sm:$0xff]
      %v1737 = vld [vmem:[#allocation3 + $0xb8] sm:$0xff]
      %v1738 = vld [vmem:[#allocation3 + $0xc0] sm:$0xff]
      %v1739 = vld [vmem:[#allocation3 + $0xc8] sm:$0xff]
      %v1740 = vld [vmem:[#allocation3 + $0xd0] sm:$0xff]
      %v1741 = vld [vmem:[#allocation3 + $0xd8] sm:$0xff]
      %v1742 = vld [vmem:[#allocation3 + $0xe0] sm:$0xff]
      %v1743 = vld [vmem:[#allocation3 + $0xe8] sm:$0xff]
      %v1744 = vld [vmem:[#allocation3 + $0xf0] sm:$0xff]
      %v1745 = vld [vmem:[#allocation3 + $0xf8] sm:$0xff]
      %v1746 = vpack.c.bf16 %v1683, %v1682
      %v1747 = vpack.c.bf16 %v1685, %v1684
      %v1748 = vpack.c.bf16 %v1687, %v1686
      %v1749 = vpack.c.bf16 %v1689, %v1688
      %v1750 = vpack.c.bf16 %v1691, %v1690
      %v1751 = vpack.c.bf16 %v1693, %v1692
      %v1752 = vpack.c.bf16 %v1695, %v1694
      %v1753 = vpack.c.bf16 %v1697, %v1696
      %v1754 = vpack.c.bf16 %v1699, %v1698
      %v1755 = vpack.c.bf16 %v1701, %v1700
      %v1756 = vpack.c.bf16 %v1703, %v1702
      %v1757 = vpack.c.bf16 %v1705, %v1704
      %v1758 = vpack.c.bf16 %v1707, %v1706
      %v1759 = vpack.c.bf16 %v1709, %v1708
      %v1760 = vpack.c.bf16 %v1711, %v1710
      %v1761 = vpack.c.bf16 %v1713, %v1712
      %s1762 = scalar_lea.vmem %s3, 256
      %v1763 = vld [vmem:[%s1762] sm:$0xf]
      %v1764 = vld [vmem:[%s1762 + $0x4] sm:$0xf]
      %v1765 = vld [vmem:[%s1762 + $0x8] sm:$0xf]
      %v1766 = vld [vmem:[%s1762 + $0xc] sm:$0xf]
      %v1767 = vld [vmem:[%s1762 + $0x10] sm:$0xf]
      %v1768 = vld [vmem:[%s1762 + $0x14] sm:$0xf]
      %v1769 = vld [vmem:[%s1762 + $0x18] sm:$0xf]
      %v1770 = vld [vmem:[%s1762 + $0x1c] sm:$0xf]
      %v1771 = vld [vmem:[%s1762 + $0x20] sm:$0xf]
      %v1772 = vld [vmem:[%s1762 + $0x24] sm:$0xf]
      %v1773 = vld [vmem:[%s1762 + $0x28] sm:$0xf]
      %v1774 = vld [vmem:[%s1762 + $0x2c] sm:$0xf]
      %v1775 = vld [vmem:[%s1762 + $0x30] sm:$0xf]
      %v1776 = vld [vmem:[%s1762 + $0x34] sm:$0xf]
      %v1777 = vld [vmem:[%s1762 + $0x38] sm:$0xf]
      %v1778 = vld [vmem:[%s1762 + $0x3c] sm:$0xf]
      %v1795 = vunpack.c.l.b16 %v1763
      %v1796 = vunpack.c.l.b16 %v1764
      %v1797 = vunpack.c.l.b16 %v1765
      %v1798 = vunpack.c.l.b16 %v1766
      %v1799 = vunpack.c.l.b16 %v1767
      %v1800 = vunpack.c.l.b16 %v1768
      %v1801 = vunpack.c.l.b16 %v1769
      %v1802 = vunpack.c.l.b16 %v1770
      %v1803 = vunpack.c.l.b16 %v1771
      %v1804 = vunpack.c.l.b16 %v1772
      %v1805 = vunpack.c.l.b16 %v1773
      %v1806 = vunpack.c.l.b16 %v1774
      %v1807 = vunpack.c.l.b16 %v1775
      %v1808 = vunpack.c.l.b16 %v1776
      %v1809 = vunpack.c.l.b16 %v1777
      %v1810 = vunpack.c.l.b16 %v1778
      %v1811 = vpack.c.b16 %v1796, %v1795
      %v1812 = vpack.c.b16 %v1798, %v1797
      %v1813 = vpack.c.b16 %v1800, %v1799
      %v1814 = vpack.c.b16 %v1802, %v1801
      %v1815 = vpack.c.b16 %v1804, %v1803
      %v1816 = vpack.c.b16 %v1806, %v1805
      %v1817 = vpack.c.b16 %v1808, %v1807
      %v1818 = vpack.c.b16 %v1810, %v1809
      %1827 = vmatpush.bf16.msra.mxu0 %v1818
      %1828 = vmatpush.bf16.msra.mxu0 %v1817
      %1829 = vmatpush.bf16.msra.mxu0 %v1816
      %1830 = vmatpush.bf16.msra.mxu0 %v1815
      %1831 = vmatpush.bf16.msra.mxu0 %v1814
      %1832 = vmatpush.bf16.msra.mxu0 %v1813
      %1833 = vmatpush.bf16.msra.mxu0 %v1812
      %1834 = vmatpush.bf16.msra.mxu0 %v1811
      %1835 = vmatmul.bf16.gmra.mxu0 %v1746
      %v1836 = vpop.f32.mrf.mxu0
      %v1837 = vadd.f32 0.0, %v1836
      %v1838 = vpop.f32.mrf.mxu0
      %v1839 = vadd.f32 0.0, %v1838
      %1840 = vmatmul.bf16.gmra.mxu0 %v1747
      %v1841 = vpop.f32.mrf.mxu0
      %v1842 = vadd.f32 0.0, %v1841
      %v1843 = vpop.f32.mrf.mxu0
      %v1844 = vadd.f32 0.0, %v1843
      %1845 = vmatmul.bf16.gmra.mxu0 %v1748
      %v1846 = vpop.f32.mrf.mxu0
      %v1847 = vadd.f32 0.0, %v1846
      %v1848 = vpop.f32.mrf.mxu0
      %v1849 = vadd.f32 0.0, %v1848
      %1850 = vmatmul.bf16.gmra.mxu0 %v1749
      %v1851 = vpop.f32.mrf.mxu0
      %v1852 = vadd.f32 0.0, %v1851
      %v1853 = vpop.f32.mrf.mxu0
      %v1854 = vadd.f32 0.0, %v1853
      %1855 = vmatmul.bf16.gmra.mxu0 %v1750
      %v1856 = vpop.f32.mrf.mxu0
      %v1857 = vadd.f32 0.0, %v1856
      %v1858 = vpop.f32.mrf.mxu0
      %v1859 = vadd.f32 0.0, %v1858
      %1860 = vmatmul.bf16.gmra.mxu0 %v1751
      %v1861 = vpop.f32.mrf.mxu0
      %v1862 = vadd.f32 0.0, %v1861
      %v1863 = vpop.f32.mrf.mxu0
      %v1864 = vadd.f32 0.0, %v1863
      %1865 = vmatmul.bf16.gmra.mxu0 %v1752
      %v1866 = vpop.f32.mrf.mxu0
      %v1867 = vadd.f32 0.0, %v1866
      %v1868 = vpop.f32.mrf.mxu0
      %v1869 = vadd.f32 0.0, %v1868
      %1870 = vmatmul.bf16.gmra.mxu0 %v1753
      %v1871 = vpop.f32.mrf.mxu0
      %v1872 = vadd.f32 0.0, %v1871
      %v1873 = vpop.f32.mrf.mxu0
      %v1874 = vadd.f32 0.0, %v1873
      %1875 = vmatmul.bf16.gmra.mxu0 %v1754
      %v1876 = vpop.f32.mrf.mxu0
      %v1877 = vadd.f32 0.0, %v1876
      %v1878 = vpop.f32.mrf.mxu0
      %v1879 = vadd.f32 0.0, %v1878
      %1880 = vmatmul.bf16.gmra.mxu0 %v1755
      %v1881 = vpop.f32.mrf.mxu0
      %v1882 = vadd.f32 0.0, %v1881
      %v1883 = vpop.f32.mrf.mxu0
      %v1884 = vadd.f32 0.0, %v1883
      %1885 = vmatmul.bf16.gmra.mxu0 %v1756
      %v1886 = vpop.f32.mrf.mxu0
      %v1887 = vadd.f32 0.0, %v1886
      %v1888 = vpop.f32.mrf.mxu0
      %v1889 = vadd.f32 0.0, %v1888
      %1890 = vmatmul.bf16.gmra.mxu0 %v1757
      %v1891 = vpop.f32.mrf.mxu0
      %v1892 = vadd.f32 0.0, %v1891
      %v1893 = vpop.f32.mrf.mxu0
      %v1894 = vadd.f32 0.0, %v1893
      %1895 = vmatmul.bf16.gmra.mxu0 %v1758
      %v1896 = vpop.f32.mrf.mxu0
      %v1897 = vadd.f32 0.0, %v1896
      %v1898 = vpop.f32.mrf.mxu0
      %v1899 = vadd.f32 0.0, %v1898
      %1900 = vmatmul.bf16.gmra.mxu0 %v1759
      %v1901 = vpop.f32.mrf.mxu0
      %v1902 = vadd.f32 0.0, %v1901
      %v1903 = vpop.f32.mrf.mxu0
      %v1904 = vadd.f32 0.0, %v1903
      %1905 = vmatmul.bf16.gmra.mxu0 %v1760
      %v1906 = vpop.f32.mrf.mxu0
      %v1907 = vadd.f32 0.0, %v1906
      %v1908 = vpop.f32.mrf.mxu0
      %v1909 = vadd.f32 0.0, %v1908
      %1910 = vmatmul.bf16.gmra.mxu0 %v1761
      %v1911 = vpop.f32.mrf.mxu0
      %v1912 = vadd.f32 0.0, %v1911
      %v1913 = vpop.f32.mrf.mxu0
      %v1914 = vadd.f32 0.0, %v1913
      %1915 = vdwg.mxu0
      %v1916 = vadd.f32 %v1714, %v1837
      %v1917 = vadd.f32 %v1715, %v1839
      %v1918 = vadd.f32 %v1716, %v1842
      %v1919 = vadd.f32 %v1717, %v1844
      %v1920 = vadd.f32 %v1718, %v1847
      %v1921 = vadd.f32 %v1719, %v1849
      %v1922 = vadd.f32 %v1720, %v1852
      %v1923 = vadd.f32 %v1721, %v1854
      %v1924 = vadd.f32 %v1722, %v1857
      %v1925 = vadd.f32 %v1723, %v1859
      %v1926 = vadd.f32 %v1724, %v1862
      %v1927 = vadd.f32 %v1725, %v1864
      %v1928 = vadd.f32 %v1726, %v1867
      %v1929 = vadd.f32 %v1727, %v1869
      %v1930 = vadd.f32 %v1728, %v1872
      %v1931 = vadd.f32 %v1729, %v1874
      %v1932 = vadd.f32 %v1730, %v1877
      %v1933 = vadd.f32 %v1731, %v1879
      %v1934 = vadd.f32 %v1732, %v1882
      %v1935 = vadd.f32 %v1733, %v1884
      %v1936 = vadd.f32 %v1734, %v1887
      %v1937 = vadd.f32 %v1735, %v1889
      %v1938 = vadd.f32 %v1736, %v1892
      %v1939 = vadd.f32 %v1737, %v1894
      %v1940 = vadd.f32 %v1738, %v1897
      %v1941 = vadd.f32 %v1739, %v1899
      %v1942 = vadd.f32 %v1740, %v1902
      %v1943 = vadd.f32 %v1741, %v1904
      %v1944 = vadd.f32 %v1742, %v1907
      %v1945 = vadd.f32 %v1743, %v1909
      %v1946 = vadd.f32 %v1744, %v1912
      %v1947 = vadd.f32 %v1745, %v1914
      %1948 = vst [vmem:[#allocation3] sm:$0xff] %v1916
      %1949 = vst [vmem:[#allocation3 + $0x8] sm:$0xff] %v1917
      %1950 = vst [vmem:[#allocation3 + $0x10] sm:$0xff] %v1918
      %1951 = vst [vmem:[#allocation3 + $0x18] sm:$0xff] %v1919
      %1952 = vst [vmem:[#allocation3 + $0x20] sm:$0xff] %v1920
      %1953 = vst [vmem:[#allocation3 + $0x28] sm:$0xff] %v1921
      %1954 = vst [vmem:[#allocation3 + $0x30] sm:$0xff] %v1922
      %1955 = vst [vmem:[#allocation3 + $0x38] sm:$0xff] %v1923
      %1956 = vst [vmem:[#allocation3 + $0x40] sm:$0xff] %v1924
      %1957 = vst [vmem:[#allocation3 + $0x48] sm:$0xff] %v1925
      %1958 = vst [vmem:[#allocation3 + $0x50] sm:$0xff] %v1926
      %1959 = vst [vmem:[#allocation3 + $0x58] sm:$0xff] %v1927
      %1960 = vst [vmem:[#allocation3 + $0x60] sm:$0xff] %v1928
      %1961 = vst [vmem:[#allocation3 + $0x68] sm:$0xff] %v1929
      %1962 = vst [vmem:[#allocation3 + $0x70] sm:$0xff] %v1930
      %1963 = vst [vmem:[#allocation3 + $0x78] sm:$0xff] %v1931
      %1964 = vst [vmem:[#allocation3 + $0x80] sm:$0xff] %v1932
      %1965 = vst [vmem:[#allocation3 + $0x88] sm:$0xff] %v1933
      %1966 = vst [vmem:[#allocation3 + $0x90] sm:$0xff] %v1934
      %1967 = vst [vmem:[#allocation3 + $0x98] sm:$0xff] %v1935
      %1968 = vst [vmem:[#allocation3 + $0xa0] sm:$0xff] %v1936
      %1969 = vst [vmem:[#allocation3 + $0xa8] sm:$0xff] %v1937
      %1970 = vst [vmem:[#allocation3 + $0xb0] sm:$0xff] %v1938
      %1971 = vst [vmem:[#allocation3 + $0xb8] sm:$0xff] %v1939
      %1972 = vst [vmem:[#allocation3 + $0xc0] sm:$0xff] %v1940
      %1973 = vst [vmem:[#allocation3 + $0xc8] sm:$0xff] %v1941
      %1974 = vst [vmem:[#allocation3 + $0xd0] sm:$0xff] %v1942
      %1975 = vst [vmem:[#allocation3 + $0xd8] sm:$0xff] %v1943
      %1976 = vst [vmem:[#allocation3 + $0xe0] sm:$0xff] %v1944
      %1977 = vst [vmem:[#allocation3 + $0xe8] sm:$0xff] %v1945
      %1978 = vst [vmem:[#allocation3 + $0xf0] sm:$0xff] %v1946
      %1979 = vst [vmem:[#allocation3 + $0xf8] sm:$0xff] %v1947
      %v1980 = vld [vmem:[%s426 + $0x2] sm:$0xff]
      %v1981 = vld [vmem:[%s426 + $0xa] sm:$0xff]
      %v1982 = vld [vmem:[%s426 + $0x1a] sm:$0xff]
      %v1983 = vld [vmem:[%s426 + $0x22] sm:$0xff]
      %v1984 = vld [vmem:[%s426 + $0x32] sm:$0xff]
      %v1985 = vld [vmem:[%s426 + $0x3a] sm:$0xff]
      %v1986 = vld [vmem:[%s426 + $0x4a] sm:$0xff]
      %v1987 = vld [vmem:[%s426 + $0x52] sm:$0xff]
      %v1988 = vld [vmem:[%s426 + $0x62] sm:$0xff]
      %v1989 = vld [vmem:[%s426 + $0x6a] sm:$0xff]
      %v1990 = vld [vmem:[%s426 + $0x7a] sm:$0xff]
      %v1991 = vld [vmem:[%s426 + $0x82] sm:$0xff]
      %v1992 = vld [vmem:[%s426 + $0x92] sm:$0xff]
      %v1993 = vld [vmem:[%s426 + $0x9a] sm:$0xff]
      %v1994 = vld [vmem:[%s426 + $0xaa] sm:$0xff]
      %v1995 = vld [vmem:[%s426 + $0xb2] sm:$0xff]
      %v1996 = vld [vmem:[%s426 + $0xc2] sm:$0xff]
      %v1997 = vld [vmem:[%s426 + $0xca] sm:$0xff]
      %v1998 = vld [vmem:[%s426 + $0xda] sm:$0xff]
      %v1999 = vld [vmem:[%s426 + $0xe2] sm:$0xff]
      %v2000 = vld [vmem:[%s426 + $0xf2] sm:$0xff]
      %v2001 = vld [vmem:[%s426 + $0xfa] sm:$0xff]
      %v2002 = vld [vmem:[%s426 + $0x10a] sm:$0xff]
      %v2003 = vld [vmem:[%s426 + $0x112] sm:$0xff]
      %v2004 = vld [vmem:[%s426 + $0x122] sm:$0xff]
      %v2005 = vld [vmem:[%s426 + $0x12a] sm:$0xff]
      %v2006 = vld [vmem:[%s426 + $0x13a] sm:$0xff]
      %v2007 = vld [vmem:[%s426 + $0x142] sm:$0xff]
      %v2008 = vld [vmem:[%s426 + $0x152] sm:$0xff]
      %v2009 = vld [vmem:[%s426 + $0x15a] sm:$0xff]
      %v2010 = vld [vmem:[%s426 + $0x16a] sm:$0xff]
      %v2011 = vld [vmem:[%s426 + $0x172] sm:$0xff]
      %v2012 = vld [vmem:[#allocation3] sm:$0xff]
      %v2013 = vld [vmem:[#allocation3 + $0x8] sm:$0xff]
      %v2014 = vld [vmem:[#allocation3 + $0x10] sm:$0xff]
      %v2015 = vld [vmem:[#allocation3 + $0x18] sm:$0xff]
      %v2016 = vld [vmem:[#allocation3 + $0x20] sm:$0xff]
      %v2017 = vld [vmem:[#allocation3 + $0x28] sm:$0xff]
      %v2018 = vld [vmem:[#allocation3 + $0x30] sm:$0xff]
      %v2019 = vld [vmem:[#allocation3 + $0x38] sm:$0xff]
      %v2020 = vld [vmem:[#allocation3 + $0x40] sm:$0xff]
      %v2021 = vld [vmem:[#allocation3 + $0x48] sm:$0xff]
      %v2022 = vld [vmem:[#allocation3 + $0x50] sm:$0xff]
      %v2023 = vld [vmem:[#allocation3 + $0x58] sm:$0xff]
      %v2024 = vld [vmem:[#allocation3 + $0x60] sm:$0xff]
      %v2025 = vld [vmem:[#allocation3 + $0x68] sm:$0xff]
      %v2026 = vld [vmem:[#allocation3 + $0x70] sm:$0xff]
      %v2027 = vld [vmem:[#allocation3 + $0x78] sm:$0xff]
      %v2028 = vld [vmem:[#allocation3 + $0x80] sm:$0xff]
      %v2029 = vld [vmem:[#allocation3 + $0x88] sm:$0xff]
      %v2030 = vld [vmem:[#allocation3 + $0x90] sm:$0xff]
      %v2031 = vld [vmem:[#allocation3 + $0x98] sm:$0xff]
      %v2032 = vld [vmem:[#allocation3 + $0xa0] sm:$0xff]
      %v2033 = vld [vmem:[#allocation3 + $0xa8] sm:$0xff]
      %v2034 = vld [vmem:[#allocation3 + $0xb0] sm:$0xff]
      %v2035 = vld [vmem:[#allocation3 + $0xb8] sm:$0xff]
      %v2036 = vld [vmem:[#allocation3 + $0xc0] sm:$0xff]
      %v2037 = vld [vmem:[#allocation3 + $0xc8] sm:$0xff]
      %v2038 = vld [vmem:[#allocation3 + $0xd0] sm:$0xff]
      %v2039 = vld [vmem:[#allocation3 + $0xd8] sm:$0xff]
      %v2040 = vld [vmem:[#allocation3 + $0xe0] sm:$0xff]
      %v2041 = vld [vmem:[#allocation3 + $0xe8] sm:$0xff]
      %v2042 = vld [vmem:[#allocation3 + $0xf0] sm:$0xff]
      %v2043 = vld [vmem:[#allocation3 + $0xf8] sm:$0xff]
      %v2044 = vpack.c.bf16 %v1981, %v1980
      %v2045 = vpack.c.bf16 %v1983, %v1982
      %v2046 = vpack.c.bf16 %v1985, %v1984
      %v2047 = vpack.c.bf16 %v1987, %v1986
      %v2048 = vpack.c.bf16 %v1989, %v1988
      %v2049 = vpack.c.bf16 %v1991, %v1990
      %v2050 = vpack.c.bf16 %v1993, %v1992
      %v2051 = vpack.c.bf16 %v1995, %v1994
      %v2052 = vpack.c.bf16 %v1997, %v1996
      %v2053 = vpack.c.bf16 %v1999, %v1998
      %v2054 = vpack.c.bf16 %v2001, %v2000
      %v2055 = vpack.c.bf16 %v2003, %v2002
      %v2056 = vpack.c.bf16 %v2005, %v2004
      %v2057 = vpack.c.bf16 %v2007, %v2006
      %v2058 = vpack.c.bf16 %v2009, %v2008
      %v2059 = vpack.c.bf16 %v2011, %v2010
      %s2060 = scalar_lea.vmem %s3, 320
      %v2061 = vld [vmem:[%s2060] sm:$0xf]
      %v2062 = vld [vmem:[%s2060 + $0x4] sm:$0xf]
      %v2063 = vld [vmem:[%s2060 + $0x8] sm:$0xf]
      %v2064 = vld [vmem:[%s2060 + $0xc] sm:$0xf]
      %v2065 = vld [vmem:[%s2060 + $0x10] sm:$0xf]
      %v2066 = vld [vmem:[%s2060 + $0x14] sm:$0xf]
      %v2067 = vld [vmem:[%s2060 + $0x18] sm:$0xf]
      %v2068 = vld [vmem:[%s2060 + $0x1c] sm:$0xf]
      %v2069 = vld [vmem:[%s2060 + $0x20] sm:$0xf]
      %v2070 = vld [vmem:[%s2060 + $0x24] sm:$0xf]
      %v2071 = vld [vmem:[%s2060 + $0x28] sm:$0xf]
      %v2072 = vld [vmem:[%s2060 + $0x2c] sm:$0xf]
      %v2073 = vld [vmem:[%s2060 + $0x30] sm:$0xf]
      %v2074 = vld [vmem:[%s2060 + $0x34] sm:$0xf]
      %v2075 = vld [vmem:[%s2060 + $0x38] sm:$0xf]
      %v2076 = vld [vmem:[%s2060 + $0x3c] sm:$0xf]
      %v2093 = vunpack.c.l.b16 %v2061
      %v2094 = vunpack.c.l.b16 %v2062
      %v2095 = vunpack.c.l.b16 %v2063
      %v2096 = vunpack.c.l.b16 %v2064
      %v2097 = vunpack.c.l.b16 %v2065
      %v2098 = vunpack.c.l.b16 %v2066
      %v2099 = vunpack.c.l.b16 %v2067
      %v2100 = vunpack.c.l.b16 %v2068
      %v2101 = vunpack.c.l.b16 %v2069
      %v2102 = vunpack.c.l.b16 %v2070
      %v2103 = vunpack.c.l.b16 %v2071
      %v2104 = vunpack.c.l.b16 %v2072
      %v2105 = vunpack.c.l.b16 %v2073
      %v2106 = vunpack.c.l.b16 %v2074
      %v2107 = vunpack.c.l.b16 %v2075
      %v2108 = vunpack.c.l.b16 %v2076
      %v2109 = vpack.c.b16 %v2094, %v2093
      %v2110 = vpack.c.b16 %v2096, %v2095
      %v2111 = vpack.c.b16 %v2098, %v2097
      %v2112 = vpack.c.b16 %v2100, %v2099
      %v2113 = vpack.c.b16 %v2102, %v2101
      %v2114 = vpack.c.b16 %v2104, %v2103
      %v2115 = vpack.c.b16 %v2106, %v2105
      %v2116 = vpack.c.b16 %v2108, %v2107
      %2125 = vmatpush.bf16.msra.mxu0 %v2116
      %2126 = vmatpush.bf16.msra.mxu0 %v2115
      %2127 = vmatpush.bf16.msra.mxu0 %v2114
      %2128 = vmatpush.bf16.msra.mxu0 %v2113
      %2129 = vmatpush.bf16.msra.mxu0 %v2112
      %2130 = vmatpush.bf16.msra.mxu0 %v2111
      %2131 = vmatpush.bf16.msra.mxu0 %v2110
      %2132 = vmatpush.bf16.msra.mxu0 %v2109
      %2133 = vmatmul.bf16.gmra.mxu0 %v2044
      %v2134 = vpop.f32.mrf.mxu0
      %v2135 = vadd.f32 0.0, %v2134
      %v2136 = vpop.f32.mrf.mxu0
      %v2137 = vadd.f32 0.0, %v2136
      %2138 = vmatmul.bf16.gmra.mxu0 %v2045
      %v2139 = vpop.f32.mrf.mxu0
      %v2140 = vadd.f32 0.0, %v2139
      %v2141 = vpop.f32.mrf.mxu0
      %v2142 = vadd.f32 0.0, %v2141
      %2143 = vmatmul.bf16.gmra.mxu0 %v2046
      %v2144 = vpop.f32.mrf.mxu0
      %v2145 = vadd.f32 0.0, %v2144
      %v2146 = vpop.f32.mrf.mxu0
      %v2147 = vadd.f32 0.0, %v2146
      %2148 = vmatmul.bf16.gmra.mxu0 %v2047
      %v2149 = vpop.f32.mrf.mxu0
      %v2150 = vadd.f32 0.0, %v2149
      %v2151 = vpop.f32.mrf.mxu0
      %v2152 = vadd.f32 0.0, %v2151
      %2153 = vmatmul.bf16.gmra.mxu0 %v2048
      %v2154 = vpop.f32.mrf.mxu0
      %v2155 = vadd.f32 0.0, %v2154
      %v2156 = vpop.f32.mrf.mxu0
      %v2157 = vadd.f32 0.0, %v2156
      %2158 = vmatmul.bf16.gmra.mxu0 %v2049
      %v2159 = vpop.f32.mrf.mxu0
      %v2160 = vadd.f32 0.0, %v2159
      %v2161 = vpop.f32.mrf.mxu0
      %v2162 = vadd.f32 0.0, %v2161
      %2163 = vmatmul.bf16.gmra.mxu0 %v2050
      %v2164 = vpop.f32.mrf.mxu0
      %v2165 = vadd.f32 0.0, %v2164
      %v2166 = vpop.f32.mrf.mxu0
      %v2167 = vadd.f32 0.0, %v2166
      %2168 = vmatmul.bf16.gmra.mxu0 %v2051
      %v2169 = vpop.f32.mrf.mxu0
      %v2170 = vadd.f32 0.0, %v2169
      %v2171 = vpop.f32.mrf.mxu0
      %v2172 = vadd.f32 0.0, %v2171
      %2173 = vmatmul.bf16.gmra.mxu0 %v2052
      %v2174 = vpop.f32.mrf.mxu0
      %v2175 = vadd.f32 0.0, %v2174
      %v2176 = vpop.f32.mrf.mxu0
      %v2177 = vadd.f32 0.0, %v2176
      %2178 = vmatmul.bf16.gmra.mxu0 %v2053
      %v2179 = vpop.f32.mrf.mxu0
      %v2180 = vadd.f32 0.0, %v2179
      %v2181 = vpop.f32.mrf.mxu0
      %v2182 = vadd.f32 0.0, %v2181
      %2183 = vmatmul.bf16.gmra.mxu0 %v2054
      %v2184 = vpop.f32.mrf.mxu0
      %v2185 = vadd.f32 0.0, %v2184
      %v2186 = vpop.f32.mrf.mxu0
      %v2187 = vadd.f32 0.0, %v2186
      %2188 = vmatmul.bf16.gmra.mxu0 %v2055
      %v2189 = vpop.f32.mrf.mxu0
      %v2190 = vadd.f32 0.0, %v2189
      %v2191 = vpop.f32.mrf.mxu0
      %v2192 = vadd.f32 0.0, %v2191
      %2193 = vmatmul.bf16.gmra.mxu0 %v2056
      %v2194 = vpop.f32.mrf.mxu0
      %v2195 = vadd.f32 0.0, %v2194
      %v2196 = vpop.f32.mrf.mxu0
      %v2197 = vadd.f32 0.0, %v2196
      %2198 = vmatmul.bf16.gmra.mxu0 %v2057
      %v2199 = vpop.f32.mrf.mxu0
      %v2200 = vadd.f32 0.0, %v2199
      %v2201 = vpop.f32.mrf.mxu0
      %v2202 = vadd.f32 0.0, %v2201
      %2203 = vmatmul.bf16.gmra.mxu0 %v2058
      %v2204 = vpop.f32.mrf.mxu0
      %v2205 = vadd.f32 0.0, %v2204
      %v2206 = vpop.f32.mrf.mxu0
      %v2207 = vadd.f32 0.0, %v2206
      %2208 = vmatmul.bf16.gmra.mxu0 %v2059
      %v2209 = vpop.f32.mrf.mxu0
      %v2210 = vadd.f32 0.0, %v2209
      %v2211 = vpop.f32.mrf.mxu0
      %v2212 = vadd.f32 0.0, %v2211
      %2213 = vdwg.mxu0
      %v2214 = vadd.f32 %v2012, %v2135
      %v2215 = vadd.f32 %v2013, %v2137
      %v2216 = vadd.f32 %v2014, %v2140
      %v2217 = vadd.f32 %v2015, %v2142
      %v2218 = vadd.f32 %v2016, %v2145
      %v2219 = vadd.f32 %v2017, %v2147
      %v2220 = vadd.f32 %v2018, %v2150
      %v2221 = vadd.f32 %v2019, %v2152
      %v2222 = vadd.f32 %v2020, %v2155
      %v2223 = vadd.f32 %v2021, %v2157
      %v2224 = vadd.f32 %v2022, %v2160
      %v2225 = vadd.f32 %v2023, %v2162
      %v2226 = vadd.f32 %v2024, %v2165
      %v2227 = vadd.f32 %v2025, %v2167
      %v2228 = vadd.f32 %v2026, %v2170
      %v2229 = vadd.f32 %v2027, %v2172
      %v2230 = vadd.f32 %v2028, %v2175
      %v2231 = vadd.f32 %v2029, %v2177
      %v2232 = vadd.f32 %v2030, %v2180
      %v2233 = vadd.f32 %v2031, %v2182
      %v2234 = vadd.f32 %v2032, %v2185
      %v2235 = vadd.f32 %v2033, %v2187
      %v2236 = vadd.f32 %v2034, %v2190
      %v2237 = vadd.f32 %v2035, %v2192
      %v2238 = vadd.f32 %v2036, %v2195
      %v2239 = vadd.f32 %v2037, %v2197
      %v2240 = vadd.f32 %v2038, %v2200
      %v2241 = vadd.f32 %v2039, %v2202
      %v2242 = vadd.f32 %v2040, %v2205
      %v2243 = vadd.f32 %v2041, %v2207
      %v2244 = vadd.f32 %v2042, %v2210
      %v2245 = vadd.f32 %v2043, %v2212
      %2246 = vst [vmem:[#allocation3] sm:$0xff] %v2214
      %2247 = vst [vmem:[#allocation3 + $0x8] sm:$0xff] %v2215
      %2248 = vst [vmem:[#allocation3 + $0x10] sm:$0xff] %v2216
      %2249 = vst [vmem:[#allocation3 + $0x18] sm:$0xff] %v2217
      %2250 = vst [vmem:[#allocation3 + $0x20] sm:$0xff] %v2218
      %2251 = vst [vmem:[#allocation3 + $0x28] sm:$0xff] %v2219
      %2252 = vst [vmem:[#allocation3 + $0x30] sm:$0xff] %v2220
      %2253 = vst [vmem:[#allocation3 + $0x38] sm:$0xff] %v2221
      %2254 = vst [vmem:[#allocation3 + $0x40] sm:$0xff] %v2222
      %2255 = vst [vmem:[#allocation3 + $0x48] sm:$0xff] %v2223
      %2256 = vst [vmem:[#allocation3 + $0x50] sm:$0xff] %v2224
      %2257 = vst [vmem:[#allocation3 + $0x58] sm:$0xff] %v2225
      %2258 = vst [vmem:[#allocation3 + $0x60] sm:$0xff] %v2226
      %2259 = vst [vmem:[#allocation3 + $0x68] sm:$0xff] %v2227
      %2260 = vst [vmem:[#allocation3 + $0x70] sm:$0xff] %v2228
      %2261 = vst [vmem:[#allocation3 + $0x78] sm:$0xff] %v2229
      %2262 = vst [vmem:[#allocation3 + $0x80] sm:$0xff] %v2230
      %2263 = vst [vmem:[#allocation3 + $0x88] sm:$0xff] %v2231
      %2264 = vst [vmem:[#allocation3 + $0x90] sm:$0xff] %v2232
      %2265 = vst [vmem:[#allocation3 + $0x98] sm:$0xff] %v2233
      %2266 = vst [vmem:[#allocation3 + $0xa0] sm:$0xff] %v2234
      %2267 = vst [vmem:[#allocation3 + $0xa8] sm:$0xff] %v2235
      %2268 = vst [vmem:[#allocation3 + $0xb0] sm:$0xff] %v2236
      %2269 = vst [vmem:[#allocation3 + $0xb8] sm:$0xff] %v2237
      %2270 = vst [vmem:[#allocation3 + $0xc0] sm:$0xff] %v2238
      %2271 = vst [vmem:[#allocation3 + $0xc8] sm:$0xff] %v2239
      %2272 = vst [vmem:[#allocation3 + $0xd0] sm:$0xff] %v2240
      %2273 = vst [vmem:[#allocation3 + $0xd8] sm:$0xff] %v2241
      %2274 = vst [vmem:[#allocation3 + $0xe0] sm:$0xff] %v2242
      %2275 = vst [vmem:[#allocation3 + $0xe8] sm:$0xff] %v2243
      %2276 = vst [vmem:[#allocation3 + $0xf0] sm:$0xff] %v2244
      %2277 = vst [vmem:[#allocation3 + $0xf8] sm:$0xff] %v2245
      %s2278 = scalar_lea.vmem [#allocation2], 48
      %v2279 = vld [vmem:[%s2278] sm:$0xff]
      %v2280 = vld [vmem:[%s2278 + $0x8] sm:$0xff]
      %v2281 = vld [vmem:[%s2278 + $0x18] sm:$0xff]
      %v2282 = vld [vmem:[%s2278 + $0x20] sm:$0xff]
      %v2283 = vld [vmem:[%s2278 + $0x30] sm:$0xff]
      %v2284 = vld [vmem:[%s2278 + $0x38] sm:$0xff]
      %v2285 = vld [vmem:[%s2278 + $0x48] sm:$0xff]
      %v2286 = vld [vmem:[%s2278 + $0x50] sm:$0xff]
      %v2287 = vld [vmem:[%s2278 + $0x60] sm:$0xff]
      %v2288 = vld [vmem:[%s2278 + $0x68] sm:$0xff]
      %v2289 = vld [vmem:[%s2278 + $0x78] sm:$0xff]
      %v2290 = vld [vmem:[%s2278 + $0x80] sm:$0xff]
      %v2291 = vld [vmem:[%s2278 + $0x90] sm:$0xff]
      %v2292 = vld [vmem:[%s2278 + $0x98] sm:$0xff]
      %v2293 = vld [vmem:[%s2278 + $0xa8] sm:$0xff]
      %v2294 = vld [vmem:[%s2278 + $0xb0] sm:$0xff]
      %v2295 = vld [vmem:[%s2278 + $0xc0] sm:$0xff]
      %v2296 = vld [vmem:[%s2278 + $0xc8] sm:$0xff]
      %v2297 = vld [vmem:[%s2278 + $0xd8] sm:$0xff]
      %v2298 = vld [vmem:[%s2278 + $0xe0] sm:$0xff]
      %v2299 = vld [vmem:[%s2278 + $0xf0] sm:$0xff]
      %v2300 = vld [vmem:[%s2278 + $0xf8] sm:$0xff]
      %v2301 = vld [vmem:[%s2278 + $0x108] sm:$0xff]
      %v2302 = vld [vmem:[%s2278 + $0x110] sm:$0xff]
      %v2303 = vld [vmem:[%s2278 + $0x120] sm:$0xff]
      %v2304 = vld [vmem:[%s2278 + $0x128] sm:$0xff]
      %v2305 = vld [vmem:[%s2278 + $0x138] sm:$0xff]
      %v2306 = vld [vmem:[%s2278 + $0x140] sm:$0xff]
      %v2307 = vld [vmem:[%s2278 + $0x150] sm:$0xff]
      %v2308 = vld [vmem:[%s2278 + $0x158] sm:$0xff]
      %v2309 = vld [vmem:[%s2278 + $0x168] sm:$0xff]
      %v2310 = vld [vmem:[%s2278 + $0x170] sm:$0xff]
      %v2311 = vld [vmem:[#allocation3] sm:$0xff]
      %v2312 = vld [vmem:[#allocation3 + $0x8] sm:$0xff]
      %v2313 = vld [vmem:[#allocation3 + $0x10] sm:$0xff]
      %v2314 = vld [vmem:[#allocation3 + $0x18] sm:$0xff]
      %v2315 = vld [vmem:[#allocation3 + $0x20] sm:$0xff]
      %v2316 = vld [vmem:[#allocation3 + $0x28] sm:$0xff]
      %v2317 = vld [vmem:[#allocation3 + $0x30] sm:$0xff]
      %v2318 = vld [vmem:[#allocation3 + $0x38] sm:$0xff]
      %v2319 = vld [vmem:[#allocation3 + $0x40] sm:$0xff]
      %v2320 = vld [vmem:[#allocation3 + $0x48] sm:$0xff]
      %v2321 = vld [vmem:[#allocation3 + $0x50] sm:$0xff]
      %v2322 = vld [vmem:[#allocation3 + $0x58] sm:$0xff]
      %v2323 = vld [vmem:[#allocation3 + $0x60] sm:$0xff]
      %v2324 = vld [vmem:[#allocation3 + $0x68] sm:$0xff]
      %v2325 = vld [vmem:[#allocation3 + $0x70] sm:$0xff]
      %v2326 = vld [vmem:[#allocation3 + $0x78] sm:$0xff]
      %v2327 = vld [vmem:[#allocation3 + $0x80] sm:$0xff]
      %v2328 = vld [vmem:[#allocation3 + $0x88] sm:$0xff]
      %v2329 = vld [vmem:[#allocation3 + $0x90] sm:$0xff]
      %v2330 = vld [vmem:[#allocation3 + $0x98] sm:$0xff]
      %v2331 = vld [vmem:[#allocation3 + $0xa0] sm:$0xff]
      %v2332 = vld [vmem:[#allocation3 + $0xa8] sm:$0xff]
      %v2333 = vld [vmem:[#allocation3 + $0xb0] sm:$0xff]
      %v2334 = vld [vmem:[#allocation3 + $0xb8] sm:$0xff]
      %v2335 = vld [vmem:[#allocation3 + $0xc0] sm:$0xff]
      %v2336 = vld [vmem:[#allocation3 + $0xc8] sm:$0xff]
      %v2337 = vld [vmem:[#allocation3 + $0xd0] sm:$0xff]
      %v2338 = vld [vmem:[#allocation3 + $0xd8] sm:$0xff]
      %v2339 = vld [vmem:[#allocation3 + $0xe0] sm:$0xff]
      %v2340 = vld [vmem:[#allocation3 + $0xe8] sm:$0xff]
      %v2341 = vld [vmem:[#allocation3 + $0xf0] sm:$0xff]
      %v2342 = vld [vmem:[#allocation3 + $0xf8] sm:$0xff]
      %v2343 = vpack.c.bf16 %v2280, %v2279
      %v2344 = vpack.c.bf16 %v2282, %v2281
      %v2345 = vpack.c.bf16 %v2284, %v2283
      %v2346 = vpack.c.bf16 %v2286, %v2285
      %v2347 = vpack.c.bf16 %v2288, %v2287
      %v2348 = vpack.c.bf16 %v2290, %v2289
      %v2349 = vpack.c.bf16 %v2292, %v2291
      %v2350 = vpack.c.bf16 %v2294, %v2293
      %v2351 = vpack.c.bf16 %v2296, %v2295
      %v2352 = vpack.c.bf16 %v2298, %v2297
      %v2353 = vpack.c.bf16 %v2300, %v2299
      %v2354 = vpack.c.bf16 %v2302, %v2301
      %v2355 = vpack.c.bf16 %v2304, %v2303
      %v2356 = vpack.c.bf16 %v2306, %v2305
      %v2357 = vpack.c.bf16 %v2308, %v2307
      %v2358 = vpack.c.bf16 %v2310, %v2309
      %s2359 = scalar_lea.vmem %s3, 384
      %v2360 = vld [vmem:[%s2359] sm:$0xf]
      %v2361 = vld [vmem:[%s2359 + $0x4] sm:$0xf]
      %v2362 = vld [vmem:[%s2359 + $0x8] sm:$0xf]
      %v2363 = vld [vmem:[%s2359 + $0xc] sm:$0xf]
      %v2364 = vld [vmem:[%s2359 + $0x10] sm:$0xf]
      %v2365 = vld [vmem:[%s2359 + $0x14] sm:$0xf]
      %v2366 = vld [vmem:[%s2359 + $0x18] sm:$0xf]
      %v2367 = vld [vmem:[%s2359 + $0x1c] sm:$0xf]
      %v2368 = vld [vmem:[%s2359 + $0x20] sm:$0xf]
      %v2369 = vld [vmem:[%s2359 + $0x24] sm:$0xf]
      %v2370 = vld [vmem:[%s2359 + $0x28] sm:$0xf]
      %v2371 = vld [vmem:[%s2359 + $0x2c] sm:$0xf]
      %v2372 = vld [vmem:[%s2359 + $0x30] sm:$0xf]
      %v2373 = vld [vmem:[%s2359 + $0x34] sm:$0xf]
      %v2374 = vld [vmem:[%s2359 + $0x38] sm:$0xf]
      %v2375 = vld [vmem:[%s2359 + $0x3c] sm:$0xf]
      %v2392 = vunpack.c.l.b16 %v2360
      %v2393 = vunpack.c.l.b16 %v2361
      %v2394 = vunpack.c.l.b16 %v2362
      %v2395 = vunpack.c.l.b16 %v2363
      %v2396 = vunpack.c.l.b16 %v2364
      %v2397 = vunpack.c.l.b16 %v2365
      %v2398 = vunpack.c.l.b16 %v2366
      %v2399 = vunpack.c.l.b16 %v2367
      %v2400 = vunpack.c.l.b16 %v2368
      %v2401 = vunpack.c.l.b16 %v2369
      %v2402 = vunpack.c.l.b16 %v2370
      %v2403 = vunpack.c.l.b16 %v2371
      %v2404 = vunpack.c.l.b16 %v2372
      %v2405 = vunpack.c.l.b16 %v2373
      %v2406 = vunpack.c.l.b16 %v2374
      %v2407 = vunpack.c.l.b16 %v2375
      %v2408 = vpack.c.b16 %v2393, %v2392
      %v2409 = vpack.c.b16 %v2395, %v2394
      %v2410 = vpack.c.b16 %v2397, %v2396
      %v2411 = vpack.c.b16 %v2399, %v2398
      %v2412 = vpack.c.b16 %v2401, %v2400
      %v2413 = vpack.c.b16 %v2403, %v2402
      %v2414 = vpack.c.b16 %v2405, %v2404
      %v2415 = vpack.c.b16 %v2407, %v2406
      %2424 = vmatpush.bf16.msra.mxu0 %v2415
      %2425 = vmatpush.bf16.msra.mxu0 %v2414
      %2426 = vmatpush.bf16.msra.mxu0 %v2413
      %2427 = vmatpush.bf16.msra.mxu0 %v2412
      %2428 = vmatpush.bf16.msra.mxu0 %v2411
      %2429 = vmatpush.bf16.msra.mxu0 %v2410
      %2430 = vmatpush.bf16.msra.mxu0 %v2409
      %2431 = vmatpush.bf16.msra.mxu0 %v2408
      %2432 = vmatmul.bf16.gmra.mxu0 %v2343
      %v2433 = vpop.f32.mrf.mxu0
      %v2434 = vadd.f32 0.0, %v2433
      %v2435 = vpop.f32.mrf.mxu0
      %v2436 = vadd.f32 0.0, %v2435
      %2437 = vmatmul.bf16.gmra.mxu0 %v2344
      %v2438 = vpop.f32.mrf.mxu0
      %v2439 = vadd.f32 0.0, %v2438
      %v2440 = vpop.f32.mrf.mxu0
      %v2441 = vadd.f32 0.0, %v2440
      %2442 = vmatmul.bf16.gmra.mxu0 %v2345
      %v2443 = vpop.f32.mrf.mxu0
      %v2444 = vadd.f32 0.0, %v2443
      %v2445 = vpop.f32.mrf.mxu0
      %v2446 = vadd.f32 0.0, %v2445
      %2447 = vmatmul.bf16.gmra.mxu0 %v2346
      %v2448 = vpop.f32.mrf.mxu0
      %v2449 = vadd.f32 0.0, %v2448
      %v2450 = vpop.f32.mrf.mxu0
      %v2451 = vadd.f32 0.0, %v2450
      %2452 = vmatmul.bf16.gmra.mxu0 %v2347
      %v2453 = vpop.f32.mrf.mxu0
      %v2454 = vadd.f32 0.0, %v2453
      %v2455 = vpop.f32.mrf.mxu0
      %v2456 = vadd.f32 0.0, %v2455
      %2457 = vmatmul.bf16.gmra.mxu0 %v2348
      %v2458 = vpop.f32.mrf.mxu0
      %v2459 = vadd.f32 0.0, %v2458
      %v2460 = vpop.f32.mrf.mxu0
      %v2461 = vadd.f32 0.0, %v2460
      %2462 = vmatmul.bf16.gmra.mxu0 %v2349
      %v2463 = vpop.f32.mrf.mxu0
      %v2464 = vadd.f32 0.0, %v2463
      %v2465 = vpop.f32.mrf.mxu0
      %v2466 = vadd.f32 0.0, %v2465
      %2467 = vmatmul.bf16.gmra.mxu0 %v2350
      %v2468 = vpop.f32.mrf.mxu0
      %v2469 = vadd.f32 0.0, %v2468
      %v2470 = vpop.f32.mrf.mxu0
      %v2471 = vadd.f32 0.0, %v2470
      %2472 = vmatmul.bf16.gmra.mxu0 %v2351
      %v2473 = vpop.f32.mrf.mxu0
      %v2474 = vadd.f32 0.0, %v2473
      %v2475 = vpop.f32.mrf.mxu0
      %v2476 = vadd.f32 0.0, %v2475
      %2477 = vmatmul.bf16.gmra.mxu0 %v2352
      %v2478 = vpop.f32.mrf.mxu0
      %v2479 = vadd.f32 0.0, %v2478
      %v2480 = vpop.f32.mrf.mxu0
      %v2481 = vadd.f32 0.0, %v2480
      %2482 = vmatmul.bf16.gmra.mxu0 %v2353
      %v2483 = vpop.f32.mrf.mxu0
      %v2484 = vadd.f32 0.0, %v2483
      %v2485 = vpop.f32.mrf.mxu0
      %v2486 = vadd.f32 0.0, %v2485
      %2487 = vmatmul.bf16.gmra.mxu0 %v2354
      %v2488 = vpop.f32.mrf.mxu0
      %v2489 = vadd.f32 0.0, %v2488
      %v2490 = vpop.f32.mrf.mxu0
      %v2491 = vadd.f32 0.0, %v2490
      %2492 = vmatmul.bf16.gmra.mxu0 %v2355
      %v2493 = vpop.f32.mrf.mxu0
      %v2494 = vadd.f32 0.0, %v2493
      %v2495 = vpop.f32.mrf.mxu0
      %v2496 = vadd.f32 0.0, %v2495
      %2497 = vmatmul.bf16.gmra.mxu0 %v2356
      %v2498 = vpop.f32.mrf.mxu0
      %v2499 = vadd.f32 0.0, %v2498
      %v2500 = vpop.f32.mrf.mxu0
      %v2501 = vadd.f32 0.0, %v2500
      %2502 = vmatmul.bf16.gmra.mxu0 %v2357
      %v2503 = vpop.f32.mrf.mxu0
      %v2504 = vadd.f32 0.0, %v2503
      %v2505 = vpop.f32.mrf.mxu0
      %v2506 = vadd.f32 0.0, %v2505
      %2507 = vmatmul.bf16.gmra.mxu0 %v2358
      %v2508 = vpop.f32.mrf.mxu0
      %v2509 = vadd.f32 0.0, %v2508
      %v2510 = vpop.f32.mrf.mxu0
      %v2511 = vadd.f32 0.0, %v2510
      %2512 = vdwg.mxu0
      %v2513 = vadd.f32 %v2311, %v2434
      %v2514 = vadd.f32 %v2312, %v2436
      %v2515 = vadd.f32 %v2313, %v2439
      %v2516 = vadd.f32 %v2314, %v2441
      %v2517 = vadd.f32 %v2315, %v2444
      %v2518 = vadd.f32 %v2316, %v2446
      %v2519 = vadd.f32 %v2317, %v2449
      %v2520 = vadd.f32 %v2318, %v2451
      %v2521 = vadd.f32 %v2319, %v2454
      %v2522 = vadd.f32 %v2320, %v2456
      %v2523 = vadd.f32 %v2321, %v2459
      %v2524 = vadd.f32 %v2322, %v2461
      %v2525 = vadd.f32 %v2323, %v2464
      %v2526 = vadd.f32 %v2324, %v2466
      %v2527 = vadd.f32 %v2325, %v2469
      %v2528 = vadd.f32 %v2326, %v2471
      %v2529 = vadd.f32 %v2327, %v2474
      %v2530 = vadd.f32 %v2328, %v2476
      %v2531 = vadd.f32 %v2329, %v2479
      %v2532 = vadd.f32 %v2330, %v2481
      %v2533 = vadd.f32 %v2331, %v2484
      %v2534 = vadd.f32 %v2332, %v2486
      %v2535 = vadd.f32 %v2333, %v2489
      %v2536 = vadd.f32 %v2334, %v2491
      %v2537 = vadd.f32 %v2335, %v2494
      %v2538 = vadd.f32 %v2336, %v2496
      %v2539 = vadd.f32 %v2337, %v2499
      %v2540 = vadd.f32 %v2338, %v2501
      %v2541 = vadd.f32 %v2339, %v2504
      %v2542 = vadd.f32 %v2340, %v2506
      %v2543 = vadd.f32 %v2341, %v2509
      %v2544 = vadd.f32 %v2342, %v2511
      %2545 = vst [vmem:[#allocation3] sm:$0xff] %v2513
      %2546 = vst [vmem:[#allocation3 + $0x8] sm:$0xff] %v2514
      %2547 = vst [vmem:[#allocation3 + $0x10] sm:$0xff] %v2515
      %2548 = vst [vmem:[#allocation3 + $0x18] sm:$0xff] %v2516
      %2549 = vst [vmem:[#allocation3 + $0x20] sm:$0xff] %v2517
      %2550 = vst [vmem:[#allocation3 + $0x28] sm:$0xff] %v2518
      %2551 = vst [vmem:[#allocation3 + $0x30] sm:$0xff] %v2519
      %2552 = vst [vmem:[#allocation3 + $0x38] sm:$0xff] %v2520
      %2553 = vst [vmem:[#allocation3 + $0x40] sm:$0xff] %v2521
      %2554 = vst [vmem:[#allocation3 + $0x48] sm:$0xff] %v2522
      %2555 = vst [vmem:[#allocation3 + $0x50] sm:$0xff] %v2523
      %2556 = vst [vmem:[#allocation3 + $0x58] sm:$0xff] %v2524
      %2557 = vst [vmem:[#allocation3 + $0x60] sm:$0xff] %v2525
      %2558 = vst [vmem:[#allocation3 + $0x68] sm:$0xff] %v2526
      %2559 = vst [vmem:[#allocation3 + $0x70] sm:$0xff] %v2527
      %2560 = vst [vmem:[#allocation3 + $0x78] sm:$0xff] %v2528
      %2561 = vst [vmem:[#allocation3 + $0x80] sm:$0xff] %v2529
      %2562 = vst [vmem:[#allocation3 + $0x88] sm:$0xff] %v2530
      %2563 = vst [vmem:[#allocation3 + $0x90] sm:$0xff] %v2531
      %2564 = vst [vmem:[#allocation3 + $0x98] sm:$0xff] %v2532
      %2565 = vst [vmem:[#allocation3 + $0xa0] sm:$0xff] %v2533
      %2566 = vst [vmem:[#allocation3 + $0xa8] sm:$0xff] %v2534
      %2567 = vst [vmem:[#allocation3 + $0xb0] sm:$0xff] %v2535
      %2568 = vst [vmem:[#allocation3 + $0xb8] sm:$0xff] %v2536
      %2569 = vst [vmem:[#allocation3 + $0xc0] sm:$0xff] %v2537
      %2570 = vst [vmem:[#allocation3 + $0xc8] sm:$0xff] %v2538
      %2571 = vst [vmem:[#allocation3 + $0xd0] sm:$0xff] %v2539
      %2572 = vst [vmem:[#allocation3 + $0xd8] sm:$0xff] %v2540
      %2573 = vst [vmem:[#allocation3 + $0xe0] sm:$0xff] %v2541
      %2574 = vst [vmem:[#allocation3 + $0xe8] sm:$0xff] %v2542
      %2575 = vst [vmem:[#allocation3 + $0xf0] sm:$0xff] %v2543
      %2576 = vst [vmem:[#allocation3 + $0xf8] sm:$0xff] %v2544
      %v2577 = vld [vmem:[%s2278 + $0x1] sm:$0xff]
      %v2578 = vld [vmem:[%s2278 + $0x9] sm:$0xff]
      %v2579 = vld [vmem:[%s2278 + $0x19] sm:$0xff]
      %v2580 = vld [vmem:[%s2278 + $0x21] sm:$0xff]
      %v2581 = vld [vmem:[%s2278 + $0x31] sm:$0xff]
      %v2582 = vld [vmem:[%s2278 + $0x39] sm:$0xff]
      %v2583 = vld [vmem:[%s2278 + $0x49] sm:$0xff]
      %v2584 = vld [vmem:[%s2278 + $0x51] sm:$0xff]
      %v2585 = vld [vmem:[%s2278 + $0x61] sm:$0xff]
      %v2586 = vld [vmem:[%s2278 + $0x69] sm:$0xff]
      %v2587 = vld [vmem:[%s2278 + $0x79] sm:$0xff]
      %v2588 = vld [vmem:[%s2278 + $0x81] sm:$0xff]
      %v2589 = vld [vmem:[%s2278 + $0x91] sm:$0xff]
      %v2590 = vld [vmem:[%s2278 + $0x99] sm:$0xff]
      %v2591 = vld [vmem:[%s2278 + $0xa9] sm:$0xff]
      %v2592 = vld [vmem:[%s2278 + $0xb1] sm:$0xff]
      %v2593 = vld [vmem:[%s2278 + $0xc1] sm:$0xff]
      %v2594 = vld [vmem:[%s2278 + $0xc9] sm:$0xff]
      %v2595 = vld [vmem:[%s2278 + $0xd9] sm:$0xff]
      %v2596 = vld [vmem:[%s2278 + $0xe1] sm:$0xff]
      %v2597 = vld [vmem:[%s2278 + $0xf1] sm:$0xff]
      %v2598 = vld [vmem:[%s2278 + $0xf9] sm:$0xff]
      %v2599 = vld [vmem:[%s2278 + $0x109] sm:$0xff]
      %v2600 = vld [vmem:[%s2278 + $0x111] sm:$0xff]
      %v2601 = vld [vmem:[%s2278 + $0x121] sm:$0xff]
      %v2602 = vld [vmem:[%s2278 + $0x129] sm:$0xff]
      %v2603 = vld [vmem:[%s2278 + $0x139] sm:$0xff]
      %v2604 = vld [vmem:[%s2278 + $0x141] sm:$0xff]
      %v2605 = vld [vmem:[%s2278 + $0x151] sm:$0xff]
      %v2606 = vld [vmem:[%s2278 + $0x159] sm:$0xff]
      %v2607 = vld [vmem:[%s2278 + $0x169] sm:$0xff]
      %v2608 = vld [vmem:[%s2278 + $0x171] sm:$0xff]
      %v2609 = vld [vmem:[#allocation3] sm:$0xff]
      %v2610 = vld [vmem:[#allocation3 + $0x8] sm:$0xff]
      %v2611 = vld [vmem:[#allocation3 + $0x10] sm:$0xff]
      %v2612 = vld [vmem:[#allocation3 + $0x18] sm:$0xff]
      %v2613 = vld [vmem:[#allocation3 + $0x20] sm:$0xff]
      %v2614 = vld [vmem:[#allocation3 + $0x28] sm:$0xff]
      %v2615 = vld [vmem:[#allocation3 + $0x30] sm:$0xff]
      %v2616 = vld [vmem:[#allocation3 + $0x38] sm:$0xff]
      %v2617 = vld [vmem:[#allocation3 + $0x40] sm:$0xff]
      %v2618 = vld [vmem:[#allocation3 + $0x48] sm:$0xff]
      %v2619 = vld [vmem:[#allocation3 + $0x50] sm:$0xff]
      %v2620 = vld [vmem:[#allocation3 + $0x58] sm:$0xff]
      %v2621 = vld [vmem:[#allocation3 + $0x60] sm:$0xff]
      %v2622 = vld [vmem:[#allocation3 + $0x68] sm:$0xff]
      %v2623 = vld [vmem:[#allocation3 + $0x70] sm:$0xff]
      %v2624 = vld [vmem:[#allocation3 + $0x78] sm:$0xff]
      %v2625 = vld [vmem:[#allocation3 + $0x80] sm:$0xff]
      %v2626 = vld [vmem:[#allocation3 + $0x88] sm:$0xff]
      %v2627 = vld [vmem:[#allocation3 + $0x90] sm:$0xff]
      %v2628 = vld [vmem:[#allocation3 + $0x98] sm:$0xff]
      %v2629 = vld [vmem:[#allocation3 + $0xa0] sm:$0xff]
      %v2630 = vld [vmem:[#allocation3 + $0xa8] sm:$0xff]
      %v2631 = vld [vmem:[#allocation3 + $0xb0] sm:$0xff]
      %v2632 = vld [vmem:[#allocation3 + $0xb8] sm:$0xff]
      %v2633 = vld [vmem:[#allocation3 + $0xc0] sm:$0xff]
      %v2634 = vld [vmem:[#allocation3 + $0xc8] sm:$0xff]
      %v2635 = vld [vmem:[#allocation3 + $0xd0] sm:$0xff]
      %v2636 = vld [vmem:[#allocation3 + $0xd8] sm:$0xff]
      %v2637 = vld [vmem:[#allocation3 + $0xe0] sm:$0xff]
      %v2638 = vld [vmem:[#allocation3 + $0xe8] sm:$0xff]
      %v2639 = vld [vmem:[#allocation3 + $0xf0] sm:$0xff]
      %v2640 = vld [vmem:[#allocation3 + $0xf8] sm:$0xff]
      %v2641 = vpack.c.bf16 %v2578, %v2577
      %v2642 = vpack.c.bf16 %v2580, %v2579
      %v2643 = vpack.c.bf16 %v2582, %v2581
      %v2644 = vpack.c.bf16 %v2584, %v2583
      %v2645 = vpack.c.bf16 %v2586, %v2585
      %v2646 = vpack.c.bf16 %v2588, %v2587
      %v2647 = vpack.c.bf16 %v2590, %v2589
      %v2648 = vpack.c.bf16 %v2592, %v2591
      %v2649 = vpack.c.bf16 %v2594, %v2593
      %v2650 = vpack.c.bf16 %v2596, %v2595
      %v2651 = vpack.c.bf16 %v2598, %v2597
      %v2652 = vpack.c.bf16 %v2600, %v2599
      %v2653 = vpack.c.bf16 %v2602, %v2601
      %v2654 = vpack.c.bf16 %v2604, %v2603
      %v2655 = vpack.c.bf16 %v2606, %v2605
      %v2656 = vpack.c.bf16 %v2608, %v2607
      %s2657 = scalar_lea.vmem %s3, 448
      %v2658 = vld [vmem:[%s2657] sm:$0xf]
      %v2659 = vld [vmem:[%s2657 + $0x4] sm:$0xf]
      %v2660 = vld [vmem:[%s2657 + $0x8] sm:$0xf]
      %v2661 = vld [vmem:[%s2657 + $0xc] sm:$0xf]
      %v2662 = vld [vmem:[%s2657 + $0x10] sm:$0xf]
      %v2663 = vld [vmem:[%s2657 + $0x14] sm:$0xf]
      %v2664 = vld [vmem:[%s2657 + $0x18] sm:$0xf]
      %v2665 = vld [vmem:[%s2657 + $0x1c] sm:$0xf]
      %v2666 = vld [vmem:[%s2657 + $0x20] sm:$0xf]
      %v2667 = vld [vmem:[%s2657 + $0x24] sm:$0xf]
      %v2668 = vld [vmem:[%s2657 + $0x28] sm:$0xf]
      %v2669 = vld [vmem:[%s2657 + $0x2c] sm:$0xf]
      %v2670 = vld [vmem:[%s2657 + $0x30] sm:$0xf]
      %v2671 = vld [vmem:[%s2657 + $0x34] sm:$0xf]
      %v2672 = vld [vmem:[%s2657 + $0x38] sm:$0xf]
      %v2673 = vld [vmem:[%s2657 + $0x3c] sm:$0xf]
      %v2690 = vunpack.c.l.b16 %v2658
      %v2691 = vunpack.c.l.b16 %v2659
      %v2692 = vunpack.c.l.b16 %v2660
      %v2693 = vunpack.c.l.b16 %v2661
      %v2694 = vunpack.c.l.b16 %v2662
      %v2695 = vunpack.c.l.b16 %v2663
      %v2696 = vunpack.c.l.b16 %v2664
      %v2697 = vunpack.c.l.b16 %v2665
      %v2698 = vunpack.c.l.b16 %v2666
      %v2699 = vunpack.c.l.b16 %v2667
      %v2700 = vunpack.c.l.b16 %v2668
      %v2701 = vunpack.c.l.b16 %v2669
      %v2702 = vunpack.c.l.b16 %v2670
      %v2703 = vunpack.c.l.b16 %v2671
      %v2704 = vunpack.c.l.b16 %v2672
      %v2705 = vunpack.c.l.b16 %v2673
      %v2706 = vpack.c.b16 %v2691, %v2690
      %v2707 = vpack.c.b16 %v2693, %v2692
      %v2708 = vpack.c.b16 %v2695, %v2694
      %v2709 = vpack.c.b16 %v2697, %v2696
      %v2710 = vpack.c.b16 %v2699, %v2698
      %v2711 = vpack.c.b16 %v2701, %v2700
      %v2712 = vpack.c.b16 %v2703, %v2702
      %v2713 = vpack.c.b16 %v2705, %v2704
      %2722 = vmatpush.bf16.msra.mxu0 %v2713
      %2723 = vmatpush.bf16.msra.mxu0 %v2712
      %2724 = vmatpush.bf16.msra.mxu0 %v2711
      %2725 = vmatpush.bf16.msra.mxu0 %v2710
      %2726 = vmatpush.bf16.msra.mxu0 %v2709
      %2727 = vmatpush.bf16.msra.mxu0 %v2708
      %2728 = vmatpush.bf16.msra.mxu0 %v2707
      %2729 = vmatpush.bf16.msra.mxu0 %v2706
      %2730 = vmatmul.bf16.gmra.mxu0 %v2641
      %v2731 = vpop.f32.mrf.mxu0
      %v2732 = vadd.f32 0.0, %v2731
      %v2733 = vpop.f32.mrf.mxu0
      %v2734 = vadd.f32 0.0, %v2733
      %2735 = vmatmul.bf16.gmra.mxu0 %v2642
      %v2736 = vpop.f32.mrf.mxu0
      %v2737 = vadd.f32 0.0, %v2736
      %v2738 = vpop.f32.mrf.mxu0
      %v2739 = vadd.f32 0.0, %v2738
      %2740 = vmatmul.bf16.gmra.mxu0 %v2643
      %v2741 = vpop.f32.mrf.mxu0
      %v2742 = vadd.f32 0.0, %v2741
      %v2743 = vpop.f32.mrf.mxu0
      %v2744 = vadd.f32 0.0, %v2743
      %2745 = vmatmul.bf16.gmra.mxu0 %v2644
      %v2746 = vpop.f32.mrf.mxu0
      %v2747 = vadd.f32 0.0, %v2746
      %v2748 = vpop.f32.mrf.mxu0
      %v2749 = vadd.f32 0.0, %v2748
      %2750 = vmatmul.bf16.gmra.mxu0 %v2645
      %v2751 = vpop.f32.mrf.mxu0
      %v2752 = vadd.f32 0.0, %v2751
      %v2753 = vpop.f32.mrf.mxu0
      %v2754 = vadd.f32 0.0, %v2753
      %2755 = vmatmul.bf16.gmra.mxu0 %v2646
      %v2756 = vpop.f32.mrf.mxu0
      %v2757 = vadd.f32 0.0, %v2756
      %v2758 = vpop.f32.mrf.mxu0
      %v2759 = vadd.f32 0.0, %v2758
      %2760 = vmatmul.bf16.gmra.mxu0 %v2647
      %v2761 = vpop.f32.mrf.mxu0
      %v2762 = vadd.f32 0.0, %v2761
      %v2763 = vpop.f32.mrf.mxu0
      %v2764 = vadd.f32 0.0, %v2763
      %2765 = vmatmul.bf16.gmra.mxu0 %v2648
      %v2766 = vpop.f32.mrf.mxu0
      %v2767 = vadd.f32 0.0, %v2766
      %v2768 = vpop.f32.mrf.mxu0
      %v2769 = vadd.f32 0.0, %v2768
      %2770 = vmatmul.bf16.gmra.mxu0 %v2649
      %v2771 = vpop.f32.mrf.mxu0
      %v2772 = vadd.f32 0.0, %v2771
      %v2773 = vpop.f32.mrf.mxu0
      %v2774 = vadd.f32 0.0, %v2773
      %2775 = vmatmul.bf16.gmra.mxu0 %v2650
      %v2776 = vpop.f32.mrf.mxu0
      %v2777 = vadd.f32 0.0, %v2776
      %v2778 = vpop.f32.mrf.mxu0
      %v2779 = vadd.f32 0.0, %v2778
      %2780 = vmatmul.bf16.gmra.mxu0 %v2651
      %v2781 = vpop.f32.mrf.mxu0
      %v2782 = vadd.f32 0.0, %v2781
      %v2783 = vpop.f32.mrf.mxu0
      %v2784 = vadd.f32 0.0, %v2783
      %2785 = vmatmul.bf16.gmra.mxu0 %v2652
      %v2786 = vpop.f32.mrf.mxu0
      %v2787 = vadd.f32 0.0, %v2786
      %v2788 = vpop.f32.mrf.mxu0
      %v2789 = vadd.f32 0.0, %v2788
      %2790 = vmatmul.bf16.gmra.mxu0 %v2653
      %v2791 = vpop.f32.mrf.mxu0
      %v2792 = vadd.f32 0.0, %v2791
      %v2793 = vpop.f32.mrf.mxu0
      %v2794 = vadd.f32 0.0, %v2793
      %2795 = vmatmul.bf16.gmra.mxu0 %v2654
      %v2796 = vpop.f32.mrf.mxu0
      %v2797 = vadd.f32 0.0, %v2796
      %v2798 = vpop.f32.mrf.mxu0
      %v2799 = vadd.f32 0.0, %v2798
      %2800 = vmatmul.bf16.gmra.mxu0 %v2655
      %v2801 = vpop.f32.mrf.mxu0
      %v2802 = vadd.f32 0.0, %v2801
      %v2803 = vpop.f32.mrf.mxu0
      %v2804 = vadd.f32 0.0, %v2803
      %2805 = vmatmul.bf16.gmra.mxu0 %v2656
      %v2806 = vpop.f32.mrf.mxu0
      %v2807 = vadd.f32 0.0, %v2806
      %v2808 = vpop.f32.mrf.mxu0
      %v2809 = vadd.f32 0.0, %v2808
      %2810 = vdwg.mxu0
      %v2811 = vadd.f32 %v2609, %v2732
      %v2812 = vadd.f32 %v2610, %v2734
      %v2813 = vadd.f32 %v2611, %v2737
      %v2814 = vadd.f32 %v2612, %v2739
      %v2815 = vadd.f32 %v2613, %v2742
      %v2816 = vadd.f32 %v2614, %v2744
      %v2817 = vadd.f32 %v2615, %v2747
      %v2818 = vadd.f32 %v2616, %v2749
      %v2819 = vadd.f32 %v2617, %v2752
      %v2820 = vadd.f32 %v2618, %v2754
      %v2821 = vadd.f32 %v2619, %v2757
      %v2822 = vadd.f32 %v2620, %v2759
      %v2823 = vadd.f32 %v2621, %v2762
      %v2824 = vadd.f32 %v2622, %v2764
      %v2825 = vadd.f32 %v2623, %v2767
      %v2826 = vadd.f32 %v2624, %v2769
      %v2827 = vadd.f32 %v2625, %v2772
      %v2828 = vadd.f32 %v2626, %v2774
      %v2829 = vadd.f32 %v2627, %v2777
      %v2830 = vadd.f32 %v2628, %v2779
      %v2831 = vadd.f32 %v2629, %v2782
      %v2832 = vadd.f32 %v2630, %v2784
      %v2833 = vadd.f32 %v2631, %v2787
      %v2834 = vadd.f32 %v2632, %v2789
      %v2835 = vadd.f32 %v2633, %v2792
      %v2836 = vadd.f32 %v2634, %v2794
      %v2837 = vadd.f32 %v2635, %v2797
      %v2838 = vadd.f32 %v2636, %v2799
      %v2839 = vadd.f32 %v2637, %v2802
      %v2840 = vadd.f32 %v2638, %v2804
      %v2841 = vadd.f32 %v2639, %v2807
      %v2842 = vadd.f32 %v2640, %v2809
      %2843 = vst [vmem:[#allocation3] sm:$0xff] %v2811
      %2844 = vst [vmem:[#allocation3 + $0x8] sm:$0xff] %v2812
      %2845 = vst [vmem:[#allocation3 + $0x10] sm:$0xff] %v2813
      %2846 = vst [vmem:[#allocation3 + $0x18] sm:$0xff] %v2814
      %2847 = vst [vmem:[#allocation3 + $0x20] sm:$0xff] %v2815
      %2848 = vst [vmem:[#allocation3 + $0x28] sm:$0xff] %v2816
      %2849 = vst [vmem:[#allocation3 + $0x30] sm:$0xff] %v2817
      %2850 = vst [vmem:[#allocation3 + $0x38] sm:$0xff] %v2818
      %2851 = vst [vmem:[#allocation3 + $0x40] sm:$0xff] %v2819
      %2852 = vst [vmem:[#allocation3 + $0x48] sm:$0xff] %v2820
      %2853 = vst [vmem:[#allocation3 + $0x50] sm:$0xff] %v2821
      %2854 = vst [vmem:[#allocation3 + $0x58] sm:$0xff] %v2822
      %2855 = vst [vmem:[#allocation3 + $0x60] sm:$0xff] %v2823
      %2856 = vst [vmem:[#allocation3 + $0x68] sm:$0xff] %v2824
      %2857 = vst [vmem:[#allocation3 + $0x70] sm:$0xff] %v2825
      %2858 = vst [vmem:[#allocation3 + $0x78] sm:$0xff] %v2826
      %2859 = vst [vmem:[#allocation3 + $0x80] sm:$0xff] %v2827
      %2860 = vst [vmem:[#allocation3 + $0x88] sm:$0xff] %v2828
      %2861 = vst [vmem:[#allocation3 + $0x90] sm:$0xff] %v2829
      %2862 = vst [vmem:[#allocation3 + $0x98] sm:$0xff] %v2830
      %2863 = vst [vmem:[#allocation3 + $0xa0] sm:$0xff] %v2831
      %2864 = vst [vmem:[#allocation3 + $0xa8] sm:$0xff] %v2832
      %2865 = vst [vmem:[#allocation3 + $0xb0] sm:$0xff] %v2833
      %2866 = vst [vmem:[#allocation3 + $0xb8] sm:$0xff] %v2834
      %2867 = vst [vmem:[#allocation3 + $0xc0] sm:$0xff] %v2835
      %2868 = vst [vmem:[#allocation3 + $0xc8] sm:$0xff] %v2836
      %2869 = vst [vmem:[#allocation3 + $0xd0] sm:$0xff] %v2837
      %2870 = vst [vmem:[#allocation3 + $0xd8] sm:$0xff] %v2838
      %2871 = vst [vmem:[#allocation3 + $0xe0] sm:$0xff] %v2839
      %2872 = vst [vmem:[#allocation3 + $0xe8] sm:$0xff] %v2840
      %2873 = vst [vmem:[#allocation3 + $0xf0] sm:$0xff] %v2841
      %2874 = vst [vmem:[#allocation3 + $0xf8] sm:$0xff] %v2842
      %v2875 = vld [vmem:[%s2278 + $0x2] sm:$0xff]
      %v2876 = vld [vmem:[%s2278 + $0xa] sm:$0xff]
      %v2877 = vld [vmem:[%s2278 + $0x1a] sm:$0xff]
      %v2878 = vld [vmem:[%s2278 + $0x22] sm:$0xff]
      %v2879 = vld [vmem:[%s2278 + $0x32] sm:$0xff]
      %v2880 = vld [vmem:[%s2278 + $0x3a] sm:$0xff]
      %v2881 = vld [vmem:[%s2278 + $0x4a] sm:$0xff]
      %v2882 = vld [vmem:[%s2278 + $0x52] sm:$0xff]
      %v2883 = vld [vmem:[%s2278 + $0x62] sm:$0xff]
      %v2884 = vld [vmem:[%s2278 + $0x6a] sm:$0xff]
      %v2885 = vld [vmem:[%s2278 + $0x7a] sm:$0xff]
      %v2886 = vld [vmem:[%s2278 + $0x82] sm:$0xff]
      %v2887 = vld [vmem:[%s2278 + $0x92] sm:$0xff]
      %v2888 = vld [vmem:[%s2278 + $0x9a] sm:$0xff]
      %v2889 = vld [vmem:[%s2278 + $0xaa] sm:$0xff]
      %v2890 = vld [vmem:[%s2278 + $0xb2] sm:$0xff]
      %v2891 = vld [vmem:[%s2278 + $0xc2] sm:$0xff]
      %v2892 = vld [vmem:[%s2278 + $0xca] sm:$0xff]
      %v2893 = vld [vmem:[%s2278 + $0xda] sm:$0xff]
      %v2894 = vld [vmem:[%s2278 + $0xe2] sm:$0xff]
      %v2895 = vld [vmem:[%s2278 + $0xf2] sm:$0xff]
      %v2896 = vld [vmem:[%s2278 + $0xfa] sm:$0xff]
      %v2897 = vld [vmem:[%s2278 + $0x10a] sm:$0xff]
      %v2898 = vld [vmem:[%s2278 + $0x112] sm:$0xff]
      %v2899 = vld [vmem:[%s2278 + $0x122] sm:$0xff]
      %v2900 = vld [vmem:[%s2278 + $0x12a] sm:$0xff]
      %v2901 = vld [vmem:[%s2278 + $0x13a] sm:$0xff]
      %v2902 = vld [vmem:[%s2278 + $0x142] sm:$0xff]
      %v2903 = vld [vmem:[%s2278 + $0x152] sm:$0xff]
      %v2904 = vld [vmem:[%s2278 + $0x15a] sm:$0xff]
      %v2905 = vld [vmem:[%s2278 + $0x16a] sm:$0xff]
      %v2906 = vld [vmem:[%s2278 + $0x172] sm:$0xff]
      %v2907 = vld [vmem:[#allocation3] sm:$0xff]
      %v2908 = vld [vmem:[#allocation3 + $0x8] sm:$0xff]
      %v2909 = vld [vmem:[#allocation3 + $0x10] sm:$0xff]
      %v2910 = vld [vmem:[#allocation3 + $0x18] sm:$0xff]
      %v2911 = vld [vmem:[#allocation3 + $0x20] sm:$0xff]
      %v2912 = vld [vmem:[#allocation3 + $0x28] sm:$0xff]
      %v2913 = vld [vmem:[#allocation3 + $0x30] sm:$0xff]
      %v2914 = vld [vmem:[#allocation3 + $0x38] sm:$0xff]
      %v2915 = vld [vmem:[#allocation3 + $0x40] sm:$0xff]
      %v2916 = vld [vmem:[#allocation3 + $0x48] sm:$0xff]
      %v2917 = vld [vmem:[#allocation3 + $0x50] sm:$0xff]
      %v2918 = vld [vmem:[#allocation3 + $0x58] sm:$0xff]
      %v2919 = vld [vmem:[#allocation3 + $0x60] sm:$0xff]
      %v2920 = vld [vmem:[#allocation3 + $0x68] sm:$0xff]
      %v2921 = vld [vmem:[#allocation3 + $0x70] sm:$0xff]
      %v2922 = vld [vmem:[#allocation3 + $0x78] sm:$0xff]
      %v2923 = vld [vmem:[#allocation3 + $0x80] sm:$0xff]
      %v2924 = vld [vmem:[#allocation3 + $0x88] sm:$0xff]
      %v2925 = vld [vmem:[#allocation3 + $0x90] sm:$0xff]
      %v2926 = vld [vmem:[#allocation3 + $0x98] sm:$0xff]
      %v2927 = vld [vmem:[#allocation3 + $0xa0] sm:$0xff]
      %v2928 = vld [vmem:[#allocation3 + $0xa8] sm:$0xff]
      %v2929 = vld [vmem:[#allocation3 + $0xb0] sm:$0xff]
      %v2930 = vld [vmem:[#allocation3 + $0xb8] sm:$0xff]
      %v2931 = vld [vmem:[#allocation3 + $0xc0] sm:$0xff]
      %v2932 = vld [vmem:[#allocation3 + $0xc8] sm:$0xff]
      %v2933 = vld [vmem:[#allocation3 + $0xd0] sm:$0xff]
      %v2934 = vld [vmem:[#allocation3 + $0xd8] sm:$0xff]
      %v2935 = vld [vmem:[#allocation3 + $0xe0] sm:$0xff]
      %v2936 = vld [vmem:[#allocation3 + $0xe8] sm:$0xff]
      %v2937 = vld [vmem:[#allocation3 + $0xf0] sm:$0xff]
      %v2938 = vld [vmem:[#allocation3 + $0xf8] sm:$0xff]
      %v2939 = vpack.c.bf16 %v2876, %v2875
      %v2940 = vpack.c.bf16 %v2878, %v2877
      %v2941 = vpack.c.bf16 %v2880, %v2879
      %v2942 = vpack.c.bf16 %v2882, %v2881
      %v2943 = vpack.c.bf16 %v2884, %v2883
      %v2944 = vpack.c.bf16 %v2886, %v2885
      %v2945 = vpack.c.bf16 %v2888, %v2887
      %v2946 = vpack.c.bf16 %v2890, %v2889
      %v2947 = vpack.c.bf16 %v2892, %v2891
      %v2948 = vpack.c.bf16 %v2894, %v2893
      %v2949 = vpack.c.bf16 %v2896, %v2895
      %v2950 = vpack.c.bf16 %v2898, %v2897
      %v2951 = vpack.c.bf16 %v2900, %v2899
      %v2952 = vpack.c.bf16 %v2902, %v2901
      %v2953 = vpack.c.bf16 %v2904, %v2903
      %v2954 = vpack.c.bf16 %v2906, %v2905
      %s2955 = scalar_lea.vmem %s3, 512
      %v2956 = vld [vmem:[%s2955] sm:$0xf]
      %v2957 = vld [vmem:[%s2955 + $0x4] sm:$0xf]
      %v2958 = vld [vmem:[%s2955 + $0x8] sm:$0xf]
      %v2959 = vld [vmem:[%s2955 + $0xc] sm:$0xf]
      %v2960 = vld [vmem:[%s2955 + $0x10] sm:$0xf]
      %v2961 = vld [vmem:[%s2955 + $0x14] sm:$0xf]
      %v2962 = vld [vmem:[%s2955 + $0x18] sm:$0xf]
      %v2963 = vld [vmem:[%s2955 + $0x1c] sm:$0xf]
      %v2964 = vld [vmem:[%s2955 + $0x20] sm:$0xf]
      %v2965 = vld [vmem:[%s2955 + $0x24] sm:$0xf]
      %v2966 = vld [vmem:[%s2955 + $0x28] sm:$0xf]
      %v2967 = vld [vmem:[%s2955 + $0x2c] sm:$0xf]
      %v2968 = vld [vmem:[%s2955 + $0x30] sm:$0xf]
      %v2969 = vld [vmem:[%s2955 + $0x34] sm:$0xf]
      %v2970 = vld [vmem:[%s2955 + $0x38] sm:$0xf]
      %v2971 = vld [vmem:[%s2955 + $0x3c] sm:$0xf]
      %v2988 = vunpack.c.l.b16 %v2956
      %v2989 = vunpack.c.l.b16 %v2957
      %v2990 = vunpack.c.l.b16 %v2958
      %v2991 = vunpack.c.l.b16 %v2959
      %v2992 = vunpack.c.l.b16 %v2960
      %v2993 = vunpack.c.l.b16 %v2961
      %v2994 = vunpack.c.l.b16 %v2962
      %v2995 = vunpack.c.l.b16 %v2963
      %v2996 = vunpack.c.l.b16 %v2964
      %v2997 = vunpack.c.l.b16 %v2965
      %v2998 = vunpack.c.l.b16 %v2966
      %v2999 = vunpack.c.l.b16 %v2967
      %v3000 = vunpack.c.l.b16 %v2968
      %v3001 = vunpack.c.l.b16 %v2969
      %v3002 = vunpack.c.l.b16 %v2970
      %v3003 = vunpack.c.l.b16 %v2971
      %v3004 = vpack.c.b16 %v2989, %v2988
      %v3005 = vpack.c.b16 %v2991, %v2990
      %v3006 = vpack.c.b16 %v2993, %v2992
      %v3007 = vpack.c.b16 %v2995, %v2994
      %v3008 = vpack.c.b16 %v2997, %v2996
      %v3009 = vpack.c.b16 %v2999, %v2998
      %v3010 = vpack.c.b16 %v3001, %v3000
      %v3011 = vpack.c.b16 %v3003, %v3002
      %3020 = vmatpush.bf16.msra.mxu0 %v3011
      %3021 = vmatpush.bf16.msra.mxu0 %v3010
      %3022 = vmatpush.bf16.msra.mxu0 %v3009
      %3023 = vmatpush.bf16.msra.mxu0 %v3008
      %3024 = vmatpush.bf16.msra.mxu0 %v3007
      %3025 = vmatpush.bf16.msra.mxu0 %v3006
      %3026 = vmatpush.bf16.msra.mxu0 %v3005
      %3027 = vmatpush.bf16.msra.mxu0 %v3004
      %3028 = vmatmul.bf16.gmra.mxu0 %v2939
      %v3029 = vpop.f32.mrf.mxu0
      %v3030 = vadd.f32 0.0, %v3029
      %v3031 = vpop.f32.mrf.mxu0
      %v3032 = vadd.f32 0.0, %v3031
      %3033 = vmatmul.bf16.gmra.mxu0 %v2940
      %v3034 = vpop.f32.mrf.mxu0
      %v3035 = vadd.f32 0.0, %v3034
      %v3036 = vpop.f32.mrf.mxu0
      %v3037 = vadd.f32 0.0, %v3036
      %3038 = vmatmul.bf16.gmra.mxu0 %v2941
      %v3039 = vpop.f32.mrf.mxu0
      %v3040 = vadd.f32 0.0, %v3039
      %v3041 = vpop.f32.mrf.mxu0
      %v3042 = vadd.f32 0.0, %v3041
      %3043 = vmatmul.bf16.gmra.mxu0 %v2942
      %v3044 = vpop.f32.mrf.mxu0
      %v3045 = vadd.f32 0.0, %v3044
      %v3046 = vpop.f32.mrf.mxu0
      %v3047 = vadd.f32 0.0, %v3046
      %3048 = vmatmul.bf16.gmra.mxu0 %v2943
      %v3049 = vpop.f32.mrf.mxu0
      %v3050 = vadd.f32 0.0, %v3049
      %v3051 = vpop.f32.mrf.mxu0
      %v3052 = vadd.f32 0.0, %v3051
      %3053 = vmatmul.bf16.gmra.mxu0 %v2944
      %v3054 = vpop.f32.mrf.mxu0
      %v3055 = vadd.f32 0.0, %v3054
      %v3056 = vpop.f32.mrf.mxu0
      %v3057 = vadd.f32 0.0, %v3056
      %3058 = vmatmul.bf16.gmra.mxu0 %v2945
      %v3059 = vpop.f32.mrf.mxu0
      %v3060 = vadd.f32 0.0, %v3059
      %v3061 = vpop.f32.mrf.mxu0
      %v3062 = vadd.f32 0.0, %v3061
      %3063 = vmatmul.bf16.gmra.mxu0 %v2946
      %v3064 = vpop.f32.mrf.mxu0
      %v3065 = vadd.f32 0.0, %v3064
      %v3066 = vpop.f32.mrf.mxu0
      %v3067 = vadd.f32 0.0, %v3066
      %3068 = vmatmul.bf16.gmra.mxu0 %v2947
      %v3069 = vpop.f32.mrf.mxu0
      %v3070 = vadd.f32 0.0, %v3069
      %v3071 = vpop.f32.mrf.mxu0
      %v3072 = vadd.f32 0.0, %v3071
      %3073 = vmatmul.bf16.gmra.mxu0 %v2948
      %v3074 = vpop.f32.mrf.mxu0
      %v3075 = vadd.f32 0.0, %v3074
      %v3076 = vpop.f32.mrf.mxu0
      %v3077 = vadd.f32 0.0, %v3076
      %3078 = vmatmul.bf16.gmra.mxu0 %v2949
      %v3079 = vpop.f32.mrf.mxu0
      %v3080 = vadd.f32 0.0, %v3079
      %v3081 = vpop.f32.mrf.mxu0
      %v3082 = vadd.f32 0.0, %v3081
      %3083 = vmatmul.bf16.gmra.mxu0 %v2950
      %v3084 = vpop.f32.mrf.mxu0
      %v3085 = vadd.f32 0.0, %v3084
      %v3086 = vpop.f32.mrf.mxu0
      %v3087 = vadd.f32 0.0, %v3086
      %3088 = vmatmul.bf16.gmra.mxu0 %v2951
      %v3089 = vpop.f32.mrf.mxu0
      %v3090 = vadd.f32 0.0, %v3089
      %v3091 = vpop.f32.mrf.mxu0
      %v3092 = vadd.f32 0.0, %v3091
      %3093 = vmatmul.bf16.gmra.mxu0 %v2952
      %v3094 = vpop.f32.mrf.mxu0
      %v3095 = vadd.f32 0.0, %v3094
      %v3096 = vpop.f32.mrf.mxu0
      %v3097 = vadd.f32 0.0, %v3096
      %3098 = vmatmul.bf16.gmra.mxu0 %v2953
      %v3099 = vpop.f32.mrf.mxu0
      %v3100 = vadd.f32 0.0, %v3099
      %v3101 = vpop.f32.mrf.mxu0
      %v3102 = vadd.f32 0.0, %v3101
      %3103 = vmatmul.bf16.gmra.mxu0 %v2954
      %v3104 = vpop.f32.mrf.mxu0
      %v3105 = vadd.f32 0.0, %v3104
      %v3106 = vpop.f32.mrf.mxu0
      %v3107 = vadd.f32 0.0, %v3106
      %3108 = vdwg.mxu0
      %v3109 = vadd.f32 %v2907, %v3030
      %v3110 = vadd.f32 %v2908, %v3032
      %v3111 = vadd.f32 %v2909, %v3035
      %v3112 = vadd.f32 %v2910, %v3037
      %v3113 = vadd.f32 %v2911, %v3040
      %v3114 = vadd.f32 %v2912, %v3042
      %v3115 = vadd.f32 %v2913, %v3045
      %v3116 = vadd.f32 %v2914, %v3047
      %v3117 = vadd.f32 %v2915, %v3050
      %v3118 = vadd.f32 %v2916, %v3052
      %v3119 = vadd.f32 %v2917, %v3055
      %v3120 = vadd.f32 %v2918, %v3057
      %v3121 = vadd.f32 %v2919, %v3060
      %v3122 = vadd.f32 %v2920, %v3062
      %v3123 = vadd.f32 %v2921, %v3065
      %v3124 = vadd.f32 %v2922, %v3067
      %v3125 = vadd.f32 %v2923, %v3070
      %v3126 = vadd.f32 %v2924, %v3072
      %v3127 = vadd.f32 %v2925, %v3075
      %v3128 = vadd.f32 %v2926, %v3077
      %v3129 = vadd.f32 %v2927, %v3080
      %v3130 = vadd.f32 %v2928, %v3082
      %v3131 = vadd.f32 %v2929, %v3085
      %v3132 = vadd.f32 %v2930, %v3087
      %v3133 = vadd.f32 %v2931, %v3090
      %v3134 = vadd.f32 %v2932, %v3092
      %v3135 = vadd.f32 %v2933, %v3095
      %v3136 = vadd.f32 %v2934, %v3097
      %v3137 = vadd.f32 %v2935, %v3100
      %v3138 = vadd.f32 %v2936, %v3102
      %v3139 = vadd.f32 %v2937, %v3105
      %v3140 = vadd.f32 %v2938, %v3107
      %3141 = vst [vmem:[#allocation3] sm:$0xff] %v3109
      %3142 = vst [vmem:[#allocation3 + $0x8] sm:$0xff] %v3110
      %3143 = vst [vmem:[#allocation3 + $0x10] sm:$0xff] %v3111
      %3144 = vst [vmem:[#allocation3 + $0x18] sm:$0xff] %v3112
      %3145 = vst [vmem:[#allocation3 + $0x20] sm:$0xff] %v3113
      %3146 = vst [vmem:[#allocation3 + $0x28] sm:$0xff] %v3114
      %3147 = vst [vmem:[#allocation3 + $0x30] sm:$0xff] %v3115
      %3148 = vst [vmem:[#allocation3 + $0x38] sm:$0xff] %v3116
      %3149 = vst [vmem:[#allocation3 + $0x40] sm:$0xff] %v3117
      %3150 = vst [vmem:[#allocation3 + $0x48] sm:$0xff] %v3118
      %3151 = vst [vmem:[#allocation3 + $0x50] sm:$0xff] %v3119
      %3152 = vst [vmem:[#allocation3 + $0x58] sm:$0xff] %v3120
      %3153 = vst [vmem:[#allocation3 + $0x60] sm:$0xff] %v3121
      %3154 = vst [vmem:[#allocation3 + $0x68] sm:$0xff] %v3122
      %3155 = vst [vmem:[#allocation3 + $0x70] sm:$0xff] %v3123
      %3156 = vst [vmem:[#allocation3 + $0x78] sm:$0xff] %v3124
      %3157 = vst [vmem:[#allocation3 + $0x80] sm:$0xff] %v3125
      %3158 = vst [vmem:[#allocation3 + $0x88] sm:$0xff] %v3126
      %3159 = vst [vmem:[#allocation3 + $0x90] sm:$0xff] %v3127
      %3160 = vst [vmem:[#allocation3 + $0x98] sm:$0xff] %v3128
      %3161 = vst [vmem:[#allocation3 + $0xa0] sm:$0xff] %v3129
      %3162 = vst [vmem:[#allocation3 + $0xa8] sm:$0xff] %v3130
      %3163 = vst [vmem:[#allocation3 + $0xb0] sm:$0xff] %v3131
      %3164 = vst [vmem:[#allocation3 + $0xb8] sm:$0xff] %v3132
      %3165 = vst [vmem:[#allocation3 + $0xc0] sm:$0xff] %v3133
      %3166 = vst [vmem:[#allocation3 + $0xc8] sm:$0xff] %v3134
      %3167 = vst [vmem:[#allocation3 + $0xd0] sm:$0xff] %v3135
      %3168 = vst [vmem:[#allocation3 + $0xd8] sm:$0xff] %v3136
      %3169 = vst [vmem:[#allocation3 + $0xe0] sm:$0xff] %v3137
      %3170 = vst [vmem:[#allocation3 + $0xe8] sm:$0xff] %v3138
      %3171 = vst [vmem:[#allocation3 + $0xf0] sm:$0xff] %v3139
      %3172 = vst [vmem:[#allocation3 + $0xf8] sm:$0xff] %v3140
      %v3173 = vld [vmem:[#allocation3] sm:$0xff]
      %v3174 = vld [vmem:[#allocation3 + $0x8] sm:$0xff]
      %v3175 = vld [vmem:[#allocation3 + $0x10] sm:$0xff]
      %v3176 = vld [vmem:[#allocation3 + $0x18] sm:$0xff]
      %v3177 = vld [vmem:[#allocation3 + $0x20] sm:$0xff]
      %v3178 = vld [vmem:[#allocation3 + $0x28] sm:$0xff]
      %v3179 = vld [vmem:[#allocation3 + $0x30] sm:$0xff]
      %v3180 = vld [vmem:[#allocation3 + $0x38] sm:$0xff]
      %v3181 = vld [vmem:[#allocation3 + $0x40] sm:$0xff]
      %v3182 = vld [vmem:[#allocation3 + $0x48] sm:$0xff]
      %v3183 = vld [vmem:[#allocation3 + $0x50] sm:$0xff]
      %v3184 = vld [vmem:[#allocation3 + $0x58] sm:$0xff]
      %v3185 = vld [vmem:[#allocation3 + $0x60] sm:$0xff]
      %v3186 = vld [vmem:[#allocation3 + $0x68] sm:$0xff]
      %v3187 = vld [vmem:[#allocation3 + $0x70] sm:$0xff]
      %v3188 = vld [vmem:[#allocation3 + $0x78] sm:$0xff]
      %v3189 = vld [vmem:[#allocation3 + $0x80] sm:$0xff]
      %v3190 = vld [vmem:[#allocation3 + $0x88] sm:$0xff]
      %v3191 = vld [vmem:[#allocation3 + $0x90] sm:$0xff]
      %v3192 = vld [vmem:[#allocation3 + $0x98] sm:$0xff]
      %v3193 = vld [vmem:[#allocation3 + $0xa0] sm:$0xff]
      %v3194 = vld [vmem:[#allocation3 + $0xa8] sm:$0xff]
      %v3195 = vld [vmem:[#allocation3 + $0xb0] sm:$0xff]
      %v3196 = vld [vmem:[#allocation3 + $0xb8] sm:$0xff]
      %v3197 = vld [vmem:[#allocation3 + $0xc0] sm:$0xff]
      %v3198 = vld [vmem:[#allocation3 + $0xc8] sm:$0xff]
      %v3199 = vld [vmem:[#allocation3 + $0xd0] sm:$0xff]
      %v3200 = vld [vmem:[#allocation3 + $0xd8] sm:$0xff]
      %v3201 = vld [vmem:[#allocation3 + $0xe0] sm:$0xff]
      %v3202 = vld [vmem:[#allocation3 + $0xe8] sm:$0xff]
      %v3203 = vld [vmem:[#allocation3 + $0xf0] sm:$0xff]
      %v3204 = vld [vmem:[#allocation3 + $0xf8] sm:$0xff]
      %3205 = vst [vmem:[%s231] sm:$0xff] %v3173
      %3206 = vst [vmem:[%s231 + $0x8] sm:$0xff] %v3174
      %3207 = vst [vmem:[%s231 + $0x10] sm:$0xff] %v3175
      %3208 = vst [vmem:[%s231 + $0x18] sm:$0xff] %v3176
      %3209 = vst [vmem:[%s231 + $0x20] sm:$0xff] %v3177
      %3210 = vst [vmem:[%s231 + $0x28] sm:$0xff] %v3178
      %3211 = vst [vmem:[%s231 + $0x30] sm:$0xff] %v3179
      %3212 = vst [vmem:[%s231 + $0x38] sm:$0xff] %v3180
      %3213 = vst [vmem:[%s231 + $0x40] sm:$0xff] %v3181
      %3214 = vst [vmem:[%s231 + $0x48] sm:$0xff] %v3182
      %3215 = vst [vmem:[%s231 + $0x50] sm:$0xff] %v3183
      %3216 = vst [vmem:[%s231 + $0x58] sm:$0xff] %v3184
      %3217 = vst [vmem:[%s231 + $0x60] sm:$0xff] %v3185
      %3218 = vst [vmem:[%s231 + $0x68] sm:$0xff] %v3186
      %3219 = vst [vmem:[%s231 + $0x70] sm:$0xff] %v3187
      %3220 = vst [vmem:[%s231 + $0x78] sm:$0xff] %v3188
      %3221 = vst [vmem:[%s231 + $0x80] sm:$0xff] %v3189
      %3222 = vst [vmem:[%s231 + $0x88] sm:$0xff] %v3190
      %3223 = vst [vmem:[%s231 + $0x90] sm:$0xff] %v3191
      %3224 = vst [vmem:[%s231 + $0x98] sm:$0xff] %v3192
      %3225 = vst [vmem:[%s231 + $0xa0] sm:$0xff] %v3193
      %3226 = vst [vmem:[%s231 + $0xa8] sm:$0xff] %v3194
      %3227 = vst [vmem:[%s231 + $0xb0] sm:$0xff] %v3195
      %3228 = vst [vmem:[%s231 + $0xb8] sm:$0xff] %v3196
      %3229 = vst [vmem:[%s231 + $0xc0] sm:$0xff] %v3197
      %3230 = vst [vmem:[%s231 + $0xc8] sm:$0xff] %v3198
      %3231 = vst [vmem:[%s231 + $0xd0] sm:$0xff] %v3199
      %3232 = vst [vmem:[%s231 + $0xd8] sm:$0xff] %v3200
      %3233 = vst [vmem:[%s231 + $0xe0] sm:$0xff] %v3201
      %3234 = vst [vmem:[%s231 + $0xe8] sm:$0xff] %v3202
      %3235 = vst [vmem:[%s231 + $0xf0] sm:$0xff] %v3203
      %3236 = vst [vmem:[%s231 + $0xf8] sm:$0xff] %v3204
      %v3237 = vadd.f32 %v3173, %v3174
      %v3238 = vadd.f32 %v3237, %v3175
      %v3239 = vadd.f32 %v3238, %v3176
      %v3240 = vadd.f32 %v3239, %v3177
      %v3241 = vadd.f32 %v3240, %v3178
      %v3242 = vadd.f32 %v3241, %v3179
      %v3243 = vadd.f32 %v3242, %v3180
      %v3244 = vadd.f32 %v3243, %v3181
      %v3245 = vadd.f32 %v3244, %v3182
      %v3246 = vadd.f32 %v3245, %v3183
      %v3247 = vadd.f32 %v3246, %v3184
      %v3248 = vadd.f32 %v3247, %v3185
      %v3249 = vadd.f32 %v3248, %v3186
      %v3250 = vadd.f32 %v3249, %v3187
      %v3251 = vadd.f32 %v3250, %v3188
      %v3252 = vadd.f32 %v3251, %v3189
      %v3253 = vadd.f32 %v3252, %v3190
      %v3254 = vadd.f32 %v3253, %v3191
      %v3255 = vadd.f32 %v3254, %v3192
      %v3256 = vadd.f32 %v3255, %v3193
      %v3257 = vadd.f32 %v3256, %v3194
      %v3258 = vadd.f32 %v3257, %v3195
      %v3259 = vadd.f32 %v3258, %v3196
      %v3260 = vadd.f32 %v3259, %v3197
      %v3261 = vadd.f32 %v3260, %v3198
      %v3262 = vadd.f32 %v3261, %v3199
      %v3263 = vadd.f32 %v3262, %v3200
      %v3264 = vadd.f32 %v3263, %v3201
      %v3265 = vadd.f32 %v3264, %v3202
      %v3266 = vadd.f32 %v3265, %v3203
      %v3267 = vadd.f32 %v3266, %v3204
      %v3268 = vrot.slane %v3267, 4
      %v3269 = vadd.f32 %v3267, %v3268
      %v3270 = vrot.slane %v3269, 2
      %v3271 = vadd.f32 %v3269, %v3270
      %v3272 = vrot.slane %v3271, 1
      %v3273 = vadd.f32 %v3271, %v3272
      %v3274 = vmul.f32 %v3173, %v3173
      %v3275 = vmul.f32 %v3174, %v3174
      %v3276 = vmul.f32 %v3175, %v3175
      %v3277 = vmul.f32 %v3176, %v3176
      %v3278 = vmul.f32 %v3177, %v3177
      %v3279 = vmul.f32 %v3178, %v3178
      %v3280 = vmul.f32 %v3179, %v3179
      %v3281 = vmul.f32 %v3180, %v3180
      %v3282 = vmul.f32 %v3181, %v3181
      %v3283 = vmul.f32 %v3182, %v3182
      %v3284 = vmul.f32 %v3183, %v3183
      %v3285 = vmul.f32 %v3184, %v3184
      %v3286 = vmul.f32 %v3185, %v3185
      %v3287 = vmul.f32 %v3186, %v3186
      %v3288 = vmul.f32 %v3187, %v3187
      %v3289 = vmul.f32 %v3188, %v3188
      %v3290 = vmul.f32 %v3189, %v3189
      %v3291 = vmul.f32 %v3190, %v3190
      %v3292 = vmul.f32 %v3191, %v3191
      %v3293 = vmul.f32 %v3192, %v3192
      %v3294 = vmul.f32 %v3193, %v3193
      %v3295 = vmul.f32 %v3194, %v3194
      %v3296 = vmul.f32 %v3195, %v3195
      %v3297 = vmul.f32 %v3196, %v3196
      %v3298 = vmul.f32 %v3197, %v3197
      %v3299 = vmul.f32 %v3198, %v3198
      %v3300 = vmul.f32 %v3199, %v3199
      %v3301 = vmul.f32 %v3200, %v3200
      %v3302 = vmul.f32 %v3201, %v3201
      %v3303 = vmul.f32 %v3202, %v3202
      %v3304 = vmul.f32 %v3203, %v3203
      %v3305 = vmul.f32 %v3204, %v3204
      %v3306 = vadd.f32 %v3274, %v3275
      %v3307 = vadd.f32 %v3306, %v3276
      %v3308 = vadd.f32 %v3307, %v3277
      %v3309 = vadd.f32 %v3308, %v3278
      %v3310 = vadd.f32 %v3309, %v3279
      %v3311 = vadd.f32 %v3310, %v3280
      %v3312 = vadd.f32 %v3311, %v3281
      %v3313 = vadd.f32 %v3312, %v3282
      %v3314 = vadd.f32 %v3313, %v3283
      %v3315 = vadd.f32 %v3314, %v3284
      %v3316 = vadd.f32 %v3315, %v3285
      %v3317 = vadd.f32 %v3316, %v3286
      %v3318 = vadd.f32 %v3317, %v3287
      %v3319 = vadd.f32 %v3318, %v3288
      %v3320 = vadd.f32 %v3319, %v3289
      %v3321 = vadd.f32 %v3320, %v3290
      %v3322 = vadd.f32 %v3321, %v3291
      %v3323 = vadd.f32 %v3322, %v3292
      %v3324 = vadd.f32 %v3323, %v3293
      %v3325 = vadd.f32 %v3324, %v3294
      %v3326 = vadd.f32 %v3325, %v3295
      %v3327 = vadd.f32 %v3326, %v3296
      %v3328 = vadd.f32 %v3327, %v3297
      %v3329 = vadd.f32 %v3328, %v3298
      %v3330 = vadd.f32 %v3329, %v3299
      %v3331 = vadd.f32 %v3330, %v3300
      %v3332 = vadd.f32 %v3331, %v3301
      %v3333 = vadd.f32 %v3332, %v3302
      %v3334 = vadd.f32 %v3333, %v3303
      %v3335 = vadd.f32 %v3334, %v3304
      %v3336 = vadd.f32 %v3335, %v3305
      %v3337 = vrot.slane %v3336, 4
      %v3338 = vadd.f32 %v3336, %v3337
      %v3339 = vrot.slane %v3338, 2
      %v3340 = vadd.f32 %v3338, %v3339
      %v3341 = vrot.slane %v3340, 1
      %v3342 = vadd.f32 %v3340, %v3341
      %vm3343 = vcmask 1040384
      %v3344 = vsel %vm3343, %v3273, %v3342
      %3345 = vst [vmem:[%s235] sm:$0x3] %v3344
      %p3346 = scmp.lt.s32.totalorder %s17, 1
      %s3347 = scalar_select %p3346, %s17, 1
      %s3348 = smul.addr %s3347, 32
      %s3349 = smul.addr %s3348, 8
      %s3350 = scalar_lea.vmem %s4, %s3349
      %p3351 = scmp.lt.s32.totalorder %s17, 1
      %s3352 = scalar_select %p3351, %s17, 1
      %s3353 = smul.addr %s3352, 2
      %s3354 = scalar_lea.vmem %s5, %s3353
      // Predicated region
      $region37: #{bottleneck_forward.5} parent=35 // pred_check
        %p3355 = pneg %p124
      $region38: #{bottleneck_forward.5} parent=35 // pred_check_branch
        %3357 = sbr.rel (%p3355) target = $region40
      $region39: #{bottleneck_forward.5} parent=35 // pred_region
        _
      $region40: #{bottleneck_forward.5} parent=35 // pred_fallthru
        _
      // Predicated region
      $region41: #{bottleneck_forward.5} parent=35 // pred_check
        %p3358 = pneg %p150
      $region42: #{bottleneck_forward.5} parent=35 // pred_check_branch
        %3360 = sbr.rel (%p3358) target = $region44
      $region43: #{bottleneck_forward.5} parent=35 // pred_region
        _
      $region44: #{bottleneck_forward.5} parent=35 // pred_fallthru
        _
    $region36: #{bottleneck_forward.5} parent=5 // pred_fallthru
      _
    %p3361 = scmp.le.s32.totalorder 2, %s12
    // Predicated region
    $region45: #{bottleneck_forward.5} parent=5 // pred_check
      %p3362 = pneg %p3361
    $region46: #{bottleneck_forward.5} parent=5 // pred_check_branch
      %3364 = sbr.rel (%p3362) target = $region48
    $region47: #{bottleneck_forward.5} parent=5 // pred_region
      %s3365 = ssub.s32 %s12, 2
      // Predicated region
      $region49: #{bottleneck_forward.5} parent=47 // pred_check
        %p3366 = pneg %p130
      $region50: #{bottleneck_forward.5} parent=47 // pred_check_branch
        %3368 = sbr.rel (%p3366) target = $region52
      $region51: #{bottleneck_forward.5} parent=47 // pred_region
        %p3369 = scmp.lt.s32.totalorder %s18, 1
        %s3370 = scalar_select %p3369, %s18, 1
        %s3371 = smul.addr %s3370, 32
        %s3372 = smul.addr %s3371, 8
        %s3373 = scalar_lea.vmem %s4, %s3372
      $region52: #{bottleneck_forward.5} parent=47 // pred_fallthru
        _
      // Predicated region
      $region53: #{bottleneck_forward.5} parent=47 // pred_check
        %p3374 = pneg %p156
      $region54: #{bottleneck_forward.5} parent=47 // pred_check_branch
        %3376 = sbr.rel (%p3374) target = $region56
      $region55: #{bottleneck_forward.5} parent=47 // pred_region
        %p3377 = scmp.lt.s32.totalorder %s18, 1
        %s3378 = scalar_select %p3377, %s18, 1
        %s3379 = smul.addr %s3378, 2
        %s3380 = scalar_lea.vmem %s5, %s3379
      $region56: #{bottleneck_forward.5} parent=47 // pred_fallthru
        _
    $region48: #{bottleneck_forward.5} parent=5 // pred_fallthru
      _
  $region6: #{bottleneck_forward.5} parent=0 // loop_footer
    %s16 = sadd.s32 1, %s12
  $region7: #{bottleneck_forward.5} parent=0 // loop_footer_branch
    %11 = sbr.rel target = $region3
  $region8: #{bottleneck_forward.5} parent=0 // loop_exit
    _

</llo_original>
